<compile_context>
chip_gen: v6e
topology: v6e:2x2x1
jax: 0.10.0
libtpu: 0.0.40
codegen_flags: <defaults>
</compile_context>

<pallas_src>
import functools
import math

import jax
import jax.numpy as jnp
from jax.experimental import pallas as pl
from jax.experimental.pallas import tpu as pltpu


# Order in which stacked per-layer parameter arrays are passed to the kernel.
PARAM_ORDER = (
    "sa_wq", "sa_bq", "sa_wk", "sa_bk", "sa_wv", "sa_bv", "sa_wo", "sa_bo",
    "ca_wq", "ca_bq", "ca_wk", "ca_bk", "ca_wv", "ca_bv", "ca_wo", "ca_bo",
    "ffn_w1", "ffn_b1", "ffn_w2", "ffn_b2",
    "ln1_g", "ln1_b", "ln2_g", "ln2_b", "ln3_g", "ln3_b",
)


# ---------------------------------------------------------------------------
# Fused decoder kernel: one grid step == one (batch element, layer).
# Grid = (B, n_layers); layer axis is innermost so the output block (resident
# in VMEM for a fixed b) carries the activation from layer l to layer l+1.
# ---------------------------------------------------------------------------
def _decoder_kernel(trg_ref, enc_ref, tmask_ref, smask_ref,
                    sa_wq, sa_bq, sa_wk, sa_bk, sa_wv, sa_bv, sa_wo, sa_bo,
                    ca_wq, ca_bq, ca_wk, ca_bk, ca_wv, ca_bv, ca_wo, ca_bo,
                    ffn_w1, ffn_b1, ffn_w2, ffn_b2,
                    ln1_g, ln1_b, ln2_g, ln2_b, ln3_g, ln3_b,
                    o_ref, *, num_heads, sm_scale, eps):
    layer = pl.program_id(1)

    # Seed the per-batch carry with the decoder input at the first layer.
    @pl.when(layer == 0)
    def _():
        o_ref[...] = trg_ref[...]

    x = o_ref[...]                         # (Tt, d) f32 — current layer input
    enc = enc_ref[...]                     # (Ts, d) f32
    enc_bf = enc.astype(jnp.bfloat16)

    def layer_norm(z, g_ref, b_ref):
        mu = jnp.mean(z, axis=-1, keepdims=True)
        var = jnp.mean((z - mu) ** 2, axis=-1, keepdims=True)
        return (z - mu) * jax.lax.rsqrt(var + eps) * g_ref[...] + b_ref[...]

    def mha(xq, xkv_bf, mask, wq, bq, wk, bk, wv, bv, wo, bo):
        xq_bf = xq.astype(jnp.bfloat16)
        acc = None
        for h in range(num_heads):          # statically unrolled, all in VMEM
            qh = jnp.dot(xq_bf, wq[h],
                         preferred_element_type=jnp.float32) + bq[h]   # (Tq, dh)
            kh = jnp.dot(xkv_bf, wk[h],
                         preferred_element_type=jnp.float32) + bk[h]   # (Tk, dh)
            vh = jnp.dot(xkv_bf, wv[h],
                         preferred_element_type=jnp.float32) + bv[h]   # (Tk, dh)

            s = jnp.dot(qh.astype(jnp.bfloat16), kh.T.astype(jnp.bfloat16),
                        preferred_element_type=jnp.float32) * sm_scale  # (Tq, Tk)
            s = jnp.where(mask > 0.0, jnp.float32(-1e9), s)
            s = s - jnp.max(s, axis=-1, keepdims=True)
            p = jnp.exp(s)
            p = p * pl.reciprocal(jnp.sum(p, axis=-1, keepdims=True), approx=True)

            oh = jnp.dot(p.astype(jnp.bfloat16), vh.astype(jnp.bfloat16),
                         preferred_element_type=jnp.float32)            # (Tq, dh)
            ch = jnp.dot(oh.astype(jnp.bfloat16), wo[h],
                         preferred_element_type=jnp.float32)            # (Tq, d)
            acc = ch if acc is None else acc + ch
        return acc + bo[...]               # dropout is identity (eval mode)

    # self-attention -> dropout(identity) -> norm1(x + .)
    a1 = mha(x, x.astype(jnp.bfloat16), tmask_ref[...],
             sa_wq, sa_bq, sa_wk, sa_bk, sa_wv, sa_bv, sa_wo, sa_bo)
    out1 = layer_norm(x + a1, ln1_g, ln1_b)

    # cross-attention -> dropout(identity) -> norm2(out1 + .)
    a2 = mha(out1, enc_bf, smask_ref[...],
             ca_wq, ca_bq, ca_wk, ca_bk, ca_wv, ca_bv, ca_wo, ca_bo)
    ff_in = layer_norm(out1 + a2, ln2_g, ln2_b)

    # FFN -> dropout(identity) -> norm3(ff_in + .)
    h1 = jnp.dot(ff_in.astype(jnp.bfloat16), ffn_w1[...],
                 preferred_element_type=jnp.float32) + ffn_b1[...]
    h1 = jnp.maximum(h1, 0.0)                                           # ReLU
    y = jnp.dot(h1.astype(jnp.bfloat16), ffn_w2[...],
                preferred_element_type=jnp.float32) + ffn_b2[...]
    o_ref[...] = layer_norm(ff_in + y, ln3_g, ln3_b)   # carry / final output


# ---------------------------------------------------------------------------
# Wrapper: one pallas_call for the whole Decoder forward.
# ---------------------------------------------------------------------------
def decoder_forward(params, trg, enc_src, trg_mask=None, src_mask=None, *,
                    num_heads, eps=1e-6):
    B, Tt, d = trg.shape
    Ts = enc_src.shape[1]
    n_layers = params["sa_wq"].shape[0]
    dh = d // num_heads
    sm_scale = 1.0 / math.sqrt(float(dh))

    if trg_mask is None:
        trg_mask = jnp.zeros((B, Tt, Tt), jnp.float32)
    if src_mask is None:
        src_mask = jnp.zeros((B, Tt, Ts), jnp.float32)

    def batch_spec(t, dd):
        # batch axis squeezed; constant across the layer axis -> DMA'd once per b.
        return pl.BlockSpec((None, t, dd), lambda b, l: (b, 0, 0))

    def layer_spec(shape):
        nd = len(shape)
        # layer axis squeezed; next layer's weights prefetched while computing.
        return pl.BlockSpec((None,) + tuple(shape),
                            lambda b, l, _nd=nd: (l,) + (0,) * _nd)

    in_specs = [
        batch_spec(Tt, d),          # trg
        batch_spec(Ts, d),          # enc_src
        batch_spec(Tt, Tt),         # trg_mask
        batch_spec(Tt, Ts),         # src_mask
    ] + [layer_spec(params[name].shape[1:]) for name in PARAM_ORDER]

    kernel = functools.partial(_decoder_kernel, num_heads=num_heads,
                               sm_scale=sm_scale, eps=eps)
    return pl.pallas_call(
        kernel,
        out_shape=jax.ShapeDtypeStruct((B, Tt, d), jnp.float32),
        grid=(B, n_layers),
        in_specs=in_specs,
        out_specs=pl.BlockSpec((None, Tt, d), lambda b, l: (b, 0, 0)),
        compiler_params=pltpu.CompilerParams(
            dimension_semantics=("parallel", "arbitrary")),
    )(trg, enc_src, trg_mask, src_mask, *[params[n] for n in PARAM_ORDER])


# ---------------------------------------------------------------------------
# Parameter init (mirrors module __init__ shapes; weights stored in bf16 for
# the MXU, biases / LayerNorm params in f32).  Per-layer params are stacked
# along a leading layer axis for the fused kernel.
# ---------------------------------------------------------------------------
def _xavier(key, din, dout):
    bound = math.sqrt(6.0 / (din + dout))
    return jax.random.uniform(key, (din, dout), jnp.float32, -bound, bound)


def _mha_layer_params(key, d, num_heads, prefix, out):
    dh = d // num_heads
    ks = jax.random.split(key, 4)
    wq, wk, wv, wo = (_xavier(k, d, d) for k in ks)

    def split_cols(w):   # (d, d) -> (H, d, dh): split output columns per head
        return jnp.transpose(w.reshape(d, num_heads, dh), (1, 0, 2)).astype(jnp.bfloat16)

    def split_rows(w):   # (d, d) -> (H, dh, d): split input rows per head
        return w.reshape(num_heads, dh, d).astype(jnp.bfloat16)

    zb = jnp.zeros((num_heads, 1, dh), jnp.float32)
    out[f"{prefix}_wq"] = split_cols(wq); out[f"{prefix}_bq"] = zb
    out[f"{prefix}_wk"] = split_cols(wk); out[f"{prefix}_bk"] = zb
    out[f"{prefix}_wv"] = split_cols(wv); out[f"{prefix}_bv"] = zb
    out[f"{prefix}_wo"] = split_rows(wo)
    out[f"{prefix}_bo"] = jnp.zeros((1, d), jnp.float32)


def init_decoder_params(key, n_layers, d_model, num_heads, ffn_hidden):
    keys = jax.random.split(key, n_layers)
    per_layer = []
    for i in range(n_layers):
        ka, kc, kf = jax.random.split(keys[i], 3)
        lp = {}
        _mha_layer_params(ka, d_model, num_heads, "sa", lp)
        _mha_layer_params(kc, d_model, num_heads, "ca", lp)
        k1, k2 = jax.random.split(kf)
        lp["ffn_w1"] = _xavier(k1, d_model, ffn_hidden).astype(jnp.bfloat16)
        lp["ffn_b1"] = jnp.zeros((1, ffn_hidden), jnp.float32)
        lp["ffn_w2"] = _xavier(k2, ffn_hidden, d_model).astype(jnp.bfloat16)
        lp["ffn_b2"] = jnp.zeros((1, d_model), jnp.float32)
        for n in ("ln1", "ln2", "ln3"):
            lp[f"{n}_g"] = jnp.ones((1, d_model), jnp.float32)
            lp[f"{n}_b"] = jnp.zeros((1, d_model), jnp.float32)
        per_layer.append(lp)
    return {name: jnp.stack([lp[name] for lp in per_layer])
            for name in PARAM_ORDER}


# ---------------------------------------------------------------------------
if __name__ == "__main__":
    # Small config: n_layers=2, d_model=32, heads=4 (dh=8), ffn_hidden=64,
    # batch=2, target seq=16, source seq=16.
    N_LAYERS, D, H, F = 2, 32, 4, 64
    B, TT, TS = 2, 16, 16

    root = jax.random.PRNGKey(0)
    kp, kt, ke = jax.random.split(root, 3)
    params = init_decoder_params(kp, N_LAYERS, D, H, F)

    trg = jax.random.normal(kt, (B, TT, D), jnp.float32)       # decoder input
    enc_src = jax.random.normal(ke, (B, TS, D), jnp.float32)   # encoder output

    # causal look-ahead mask for self-attention (1.0 == masked out)
    trg_mask = jnp.broadcast_to(
        jnp.triu(jnp.ones((TT, TT), jnp.float32), k=1), (B, TT, TT))
    # simulate source padding on the last 3 positions for cross-attention
    src_pad = jnp.zeros((B, TS), jnp.float32).at[:, -3:].set(1.0)
    src_mask = jnp.broadcast_to(src_pad[:, None, :], (B, TT, TS))

    out = decoder_forward(params, trg, enc_src,
                          trg_mask=trg_mask, src_mask=src_mask, num_heads=H)
    out = jax.block_until_ready(out)
    assert out.shape == (B, TT, D)
    assert bool(jnp.all(jnp.isfinite(out)))
    print("KERNEL_OK")
</pallas_src>

<mosaic_0001>
module attributes {stable_mosaic.version = 11 : i64} {
  func.func @_decoder_kernel(%arg0: i32, %arg1: i32, %arg2: memref<1x16x32xf32, #tpu.memory_space<vmem>>, %arg3: memref<1x16x32xf32, #tpu.memory_space<vmem>>, %arg4: memref<1x16x16xf32, #tpu.memory_space<vmem>>, %arg5: memref<1x16x16xf32, #tpu.memory_space<vmem>>, %arg6: memref<1x4x32x8xbf16, #tpu.memory_space<vmem>>, %arg7: memref<1x4x1x8xf32, #tpu.memory_space<vmem>>, %arg8: memref<1x4x32x8xbf16, #tpu.memory_space<vmem>>, %arg9: memref<1x4x1x8xf32, #tpu.memory_space<vmem>>, %arg10: memref<1x4x32x8xbf16, #tpu.memory_space<vmem>>, %arg11: memref<1x4x1x8xf32, #tpu.memory_space<vmem>>, %arg12: memref<1x4x8x32xbf16, #tpu.memory_space<vmem>>, %arg13: memref<1x1x32xf32, #tpu.memory_space<vmem>>, %arg14: memref<1x4x32x8xbf16, #tpu.memory_space<vmem>>, %arg15: memref<1x4x1x8xf32, #tpu.memory_space<vmem>>, %arg16: memref<1x4x32x8xbf16, #tpu.memory_space<vmem>>, %arg17: memref<1x4x1x8xf32, #tpu.memory_space<vmem>>, %arg18: memref<1x4x32x8xbf16, #tpu.memory_space<vmem>>, %arg19: memref<1x4x1x8xf32, #tpu.memory_space<vmem>>, %arg20: memref<1x4x8x32xbf16, #tpu.memory_space<vmem>>, %arg21: memref<1x1x32xf32, #tpu.memory_space<vmem>>, %arg22: memref<1x32x64xbf16, #tpu.memory_space<vmem>>, %arg23: memref<1x1x64xf32, #tpu.memory_space<vmem>>, %arg24: memref<1x64x32xbf16, #tpu.memory_space<vmem>>, %arg25: memref<1x1x32xf32, #tpu.memory_space<vmem>>, %arg26: memref<1x1x32xf32, #tpu.memory_space<vmem>>, %arg27: memref<1x1x32xf32, #tpu.memory_space<vmem>>, %arg28: memref<1x1x32xf32, #tpu.memory_space<vmem>>, %arg29: memref<1x1x32xf32, #tpu.memory_space<vmem>>, %arg30: memref<1x1x32xf32, #tpu.memory_space<vmem>>, %arg31: memref<1x1x32xf32, #tpu.memory_space<vmem>>, %arg32: memref<1x16x32xf32, #tpu.memory_space<vmem>>) attributes {dimension_semantics = [#tpu.dimension_semantics<parallel>, #tpu.dimension_semantics<arbitrary>], iteration_bounds = array<i64: 2, 2>, scalar_prefetch = 0 : i64, scratch_operands = 0 : i64, tpu.core_type = #tpu.core_type<tc>, window_params = [{transform_indices = @transform_0, window_bounds = array<i64: 1, 16, 32>}, {transform_indices = @transform_1, window_bounds = array<i64: 1, 16, 32>}, {transform_indices = @transform_2, window_bounds = array<i64: 1, 16, 16>}, {transform_indices = @transform_3, window_bounds = array<i64: 1, 16, 16>}, {transform_indices = @transform_4, window_bounds = array<i64: 1, 4, 32, 8>}, {transform_indices = @transform_5, window_bounds = array<i64: 1, 4, 1, 8>}, {transform_indices = @transform_6, window_bounds = array<i64: 1, 4, 32, 8>}, {transform_indices = @transform_7, window_bounds = array<i64: 1, 4, 1, 8>}, {transform_indices = @transform_8, window_bounds = array<i64: 1, 4, 32, 8>}, {transform_indices = @transform_9, window_bounds = array<i64: 1, 4, 1, 8>}, {transform_indices = @transform_10, window_bounds = array<i64: 1, 4, 8, 32>}, {transform_indices = @transform_11, window_bounds = array<i64: 1, 1, 32>}, {transform_indices = @transform_12, window_bounds = array<i64: 1, 4, 32, 8>}, {transform_indices = @transform_13, window_bounds = array<i64: 1, 4, 1, 8>}, {transform_indices = @transform_14, window_bounds = array<i64: 1, 4, 32, 8>}, {transform_indices = @transform_15, window_bounds = array<i64: 1, 4, 1, 8>}, {transform_indices = @transform_16, window_bounds = array<i64: 1, 4, 32, 8>}, {transform_indices = @transform_17, window_bounds = array<i64: 1, 4, 1, 8>}, {transform_indices = @transform_18, window_bounds = array<i64: 1, 4, 8, 32>}, {transform_indices = @transform_19, window_bounds = array<i64: 1, 1, 32>}, {transform_indices = @transform_20, window_bounds = array<i64: 1, 32, 64>}, {transform_indices = @transform_21, window_bounds = array<i64: 1, 1, 64>}, {transform_indices = @transform_22, window_bounds = array<i64: 1, 64, 32>}, {transform_indices = @transform_23, window_bounds = array<i64: 1, 1, 32>}, {transform_indices = @transform_24, window_bounds = array<i64: 1, 1, 32>}, {transform_indices = @transform_25, window_bounds = array<i64: 1, 1, 32>}, {transform_indices = @transform_26, window_bounds = array<i64: 1, 1, 32>}, {transform_indices = @transform_27, window_bounds = array<i64: 1, 1, 32>}, {transform_indices = @transform_28, window_bounds = array<i64: 1, 1, 32>}, {transform_indices = @transform_29, window_bounds = array<i64: 1, 1, 32>}, {transform_indices = @transform_30, window_bounds = array<i64: 1, 16, 32>}]} {
    %c0_i32 = arith.constant 0 : i32
    %0 = arith.cmpi eq, %arg1, %c0_i32 : i32
    %1 = arith.extui %0 : i1 to i32
    %c0_i32_0 = arith.constant 0 : i32
    %2 = arith.cmpi ne, %1, %c0_i32_0 : i32
    scf.if %2 {
      %c0_377 = arith.constant 0 : index
      %c0_378 = arith.constant 0 : index
      %c0_379 = arith.constant 0 : index
      %515 = vector.load %arg2[%c0_377, %c0_378, %c0_379] : memref<1x16x32xf32, #tpu.memory_space<vmem>>, vector<1x16x32xf32>
      %516 = vector.shape_cast %515 : vector<1x16x32xf32> to vector<16x32xf32>
      %c0_380 = arith.constant 0 : index
      %c0_381 = arith.constant 0 : index
      %c0_382 = arith.constant 0 : index
      %517 = vector.load %arg32[%c0_380, %c0_381, %c0_382] : memref<1x16x32xf32, #tpu.memory_space<vmem>>, vector<1x16x32xf32>
      %518 = vector.shape_cast %517 : vector<1x16x32xf32> to vector<16x32xf32>
      %519 = vector.shape_cast %516 : vector<16x32xf32> to vector<1x16x32xf32>
      tpu.vector_store %arg32[%c0_380, %c0_381, %c0_382], %519 {strides = array<i32>} : memref<1x16x32xf32, #tpu.memory_space<vmem>>, vector<1x16x32xf32>,
    } else {
    }
    %c0 = arith.constant 0 : index
    %c0_1 = arith.constant 0 : index
    %c0_2 = arith.constant 0 : index
    %3 = vector.load %arg32[%c0, %c0_1, %c0_2] : memref<1x16x32xf32, #tpu.memory_space<vmem>>, vector<1x16x32xf32>
    %4 = vector.shape_cast %3 : vector<1x16x32xf32> to vector<16x32xf32>
    %c0_3 = arith.constant 0 : index
    %c0_4 = arith.constant 0 : index
    %c0_5 = arith.constant 0 : index
    %5 = vector.load %arg3[%c0_3, %c0_4, %c0_5] : memref<1x16x32xf32, #tpu.memory_space<vmem>>, vector<1x16x32xf32>
    %6 = vector.shape_cast %5 : vector<1x16x32xf32> to vector<16x32xf32>
    %7 = arith.truncf %6 : vector<16x32xf32> to vector<16x32xbf16>
    %8 = arith.truncf %4 : vector<16x32xf32> to vector<16x32xbf16>
    %c0_6 = arith.constant 0 : index
    %c0_7 = arith.constant 0 : index
    %c0_8 = arith.constant 0 : index
    %9 = vector.load %arg4[%c0_6, %c0_7, %c0_8] : memref<1x16x16xf32, #tpu.memory_space<vmem>>, vector<1x16x16xf32>
    %10 = vector.shape_cast %9 : vector<1x16x16xf32> to vector<16x16xf32>
    %11 = arith.truncf %4 : vector<16x32xf32> to vector<16x32xbf16>
    %c0_9 = arith.constant 0 : index
    %c0_10 = arith.constant 0 : index
    %c0_11 = arith.constant 0 : index
    %c0_12 = arith.constant 0 : index
    %12 = vector.load %arg6[%c0_9, %c0_10, %c0_11, %c0_12] : memref<1x4x32x8xbf16, #tpu.memory_space<vmem>>, vector<1x1x32x8xbf16>
    %13 = vector.shape_cast %12 : vector<1x1x32x8xbf16> to vector<32x8xbf16>
    %cst = arith.constant dense<0.000000e+00> : vector<16x8xf32>
    %14 = tpu.matmul %11, %13, %cst {dimension_numbers = #tpu.dot_dimension_numbers<[1], [0], [0], [1], [0, 0, 1, 1], [], []>} : vector<16x32xbf16>, vector<32x8xbf16>, vector<16x8xf32> -> vector<16x8xf32>
    %c0_13 = arith.constant 0 : index
    %c0_14 = arith.constant 0 : index
    %c0_15 = arith.constant 0 : index
    %c0_16 = arith.constant 0 : index
    %15 = vector.load %arg7[%c0_13, %c0_14, %c0_15, %c0_16] : memref<1x4x1x8xf32, #tpu.memory_space<vmem>>, vector<1x1x1x8xf32>
    %16 = vector.shape_cast %15 : vector<1x1x1x8xf32> to vector<1x8xf32>
    %17 = vector.broadcast %16 : vector<1x8xf32> to vector<16x8xf32>
    %18 = arith.addf %14, %17 : vector<16x8xf32>
    %c0_17 = arith.constant 0 : index
    %c0_18 = arith.constant 0 : index
    %c0_19 = arith.constant 0 : index
    %c0_20 = arith.constant 0 : index
    %19 = vector.load %arg8[%c0_17, %c0_18, %c0_19, %c0_20] : memref<1x4x32x8xbf16, #tpu.memory_space<vmem>>, vector<1x1x32x8xbf16>
    %20 = vector.shape_cast %19 : vector<1x1x32x8xbf16> to vector<32x8xbf16>
    %cst_21 = arith.constant dense<0.000000e+00> : vector<16x8xf32>
    %21 = tpu.matmul %8, %20, %cst_21 {dimension_numbers = #tpu.dot_dimension_numbers<[1], [0], [0], [1], [0, 0, 1, 1], [], []>} : vector<16x32xbf16>, vector<32x8xbf16>, vector<16x8xf32> -> vector<16x8xf32>
    %c0_22 = arith.constant 0 : index
    %c0_23 = arith.constant 0 : index
    %c0_24 = arith.constant 0 : index
    %c0_25 = arith.constant 0 : index
    %22 = vector.load %arg9[%c0_22, %c0_23, %c0_24, %c0_25] : memref<1x4x1x8xf32, #tpu.memory_space<vmem>>, vector<1x1x1x8xf32>
    %23 = vector.shape_cast %22 : vector<1x1x1x8xf32> to vector<1x8xf32>
    %24 = vector.broadcast %23 : vector<1x8xf32> to vector<16x8xf32>
    %25 = arith.addf %21, %24 : vector<16x8xf32>
    %c0_26 = arith.constant 0 : index
    %c0_27 = arith.constant 0 : index
    %c0_28 = arith.constant 0 : index
    %c0_29 = arith.constant 0 : index
    %26 = vector.load %arg10[%c0_26, %c0_27, %c0_28, %c0_29] : memref<1x4x32x8xbf16, #tpu.memory_space<vmem>>, vector<1x1x32x8xbf16>
    %27 = vector.shape_cast %26 : vector<1x1x32x8xbf16> to vector<32x8xbf16>
    %cst_30 = arith.constant dense<0.000000e+00> : vector<16x8xf32>
    %28 = tpu.matmul %8, %27, %cst_30 {dimension_numbers = #tpu.dot_dimension_numbers<[1], [0], [0], [1], [0, 0, 1, 1], [], []>} : vector<16x32xbf16>, vector<32x8xbf16>, vector<16x8xf32> -> vector<16x8xf32>
    %c0_31 = arith.constant 0 : index
    %c0_32 = arith.constant 0 : index
    %c0_33 = arith.constant 0 : index
    %c0_34 = arith.constant 0 : index
    %29 = vector.load %arg11[%c0_31, %c0_32, %c0_33, %c0_34] : memref<1x4x1x8xf32, #tpu.memory_space<vmem>>, vector<1x1x1x8xf32>
    %30 = vector.shape_cast %29 : vector<1x1x1x8xf32> to vector<1x8xf32>
    %31 = vector.broadcast %30 : vector<1x8xf32> to vector<16x8xf32>
    %32 = arith.addf %28, %31 : vector<16x8xf32>
    %33 = arith.truncf %18 : vector<16x8xf32> to vector<16x8xbf16>
    %34 = tpu.transpose %25, [1, 0] : vector<16x8xf32> -> vector<8x16xf32>
    %35 = arith.truncf %34 : vector<8x16xf32> to vector<8x16xbf16>
    %cst_35 = arith.constant dense<0.000000e+00> : vector<16x16xf32>
    %36 = tpu.matmul %33, %35, %cst_35 {dimension_numbers = #tpu.dot_dimension_numbers<[1], [0], [0], [1], [0, 0, 1, 1], [], []>} : vector<16x8xbf16>, vector<8x16xbf16>, vector<16x16xf32> -> vector<16x16xf32>
    %cst_36 = arith.constant 0.353553385 : f32
    %37 = vector.broadcast %cst_36 : f32 to vector<16x16xf32>
    %38 = arith.mulf %36, %37 : vector<16x16xf32>
    %cst_37 = arith.constant 0.000000e+00 : f32
    %39 = vector.broadcast %cst_37 : f32 to vector<16x16xf32>
    %40 = arith.cmpf ogt, %10, %39 : vector<16x16xf32>
    %cst_38 = arith.constant -1.000000e+09 : f32
    %41 = vector.broadcast %cst_38 : f32 to vector<16x16xf32>
    %42 = arith.select %40, %41, %38 : vector<16x16xi1>, vector<16x16xf32>
    %cst_39 = arith.constant dense<0xFF800000> : vector<16xf32>
    %43 = vector.multi_reduction <maximumf>, %42, %cst_39 [1] : vector<16x16xf32> to vector<16xf32>
    %44 = vector.shape_cast %43 : vector<16xf32> to vector<16x1xf32>
    %45 = vector.broadcast %44 : vector<16x1xf32> to vector<16x16xf32>
    %46 = arith.subf %42, %45 : vector<16x16xf32>
    %47 = math.exp %46 : vector<16x16xf32>
    %cst_40 = arith.constant dense<0.000000e+00> : vector<16xf32>
    %48 = vector.multi_reduction <add>, %47, %cst_40 [1] : vector<16x16xf32> to vector<16xf32>
    %49 = vector.shape_cast %48 : vector<16xf32> to vector<16x1xf32>
    %50 = tpu.reciprocal %49 {approx = true} : vector<16x1xf32> -> vector<16x1xf32>
    %51 = vector.broadcast %50 : vector<16x1xf32> to vector<16x16xf32>
    %52 = arith.mulf %47, %51 : vector<16x16xf32>
    %53 = arith.truncf %52 : vector<16x16xf32> to vector<16x16xbf16>
    %54 = arith.truncf %32 : vector<16x8xf32> to vector<16x8xbf16>
    %cst_41 = arith.constant dense<0.000000e+00> : vector<16x8xf32>
    %55 = tpu.matmul %53, %54, %cst_41 {dimension_numbers = #tpu.dot_dimension_numbers<[1], [0], [0], [1], [0, 0, 1, 1], [], []>} : vector<16x16xbf16>, vector<16x8xbf16>, vector<16x8xf32> -> vector<16x8xf32>
    %56 = arith.truncf %55 : vector<16x8xf32> to vector<16x8xbf16>
    %c0_42 = arith.constant 0 : index
    %c0_43 = arith.constant 0 : index
    %c0_44 = arith.constant 0 : index
    %c0_45 = arith.constant 0 : index
    %57 = vector.load %arg12[%c0_42, %c0_43, %c0_44, %c0_45] : memref<1x4x8x32xbf16, #tpu.memory_space<vmem>>, vector<1x1x8x32xbf16>
    %58 = vector.shape_cast %57 : vector<1x1x8x32xbf16> to vector<8x32xbf16>
    %cst_46 = arith.constant dense<0.000000e+00> : vector<16x32xf32>
    %59 = tpu.matmul %56, %58, %cst_46 {dimension_numbers = #tpu.dot_dimension_numbers<[1], [0], [0], [1], [0, 0, 1, 1], [], []>} : vector<16x8xbf16>, vector<8x32xbf16>, vector<16x32xf32> -> vector<16x32xf32>
    %c0_47 = arith.constant 0 : index
    %c1 = arith.constant 1 : index
    %c0_48 = arith.constant 0 : index
    %c0_49 = arith.constant 0 : index
    %60 = vector.load %arg6[%c0_47, %c1, %c0_48, %c0_49] : memref<1x4x32x8xbf16, #tpu.memory_space<vmem>>, vector<1x1x32x8xbf16>
    %61 = vector.shape_cast %60 : vector<1x1x32x8xbf16> to vector<32x8xbf16>
    %cst_50 = arith.constant dense<0.000000e+00> : vector<16x8xf32>
    %62 = tpu.matmul %11, %61, %cst_50 {dimension_numbers = #tpu.dot_dimension_numbers<[1], [0], [0], [1], [0, 0, 1, 1], [], []>} : vector<16x32xbf16>, vector<32x8xbf16>, vector<16x8xf32> -> vector<16x8xf32>
    %c0_51 = arith.constant 0 : index
    %c1_52 = arith.constant 1 : index
    %c0_53 = arith.constant 0 : index
    %c0_54 = arith.constant 0 : index
    %63 = vector.load %arg7[%c0_51, %c1_52, %c0_53, %c0_54] : memref<1x4x1x8xf32, #tpu.memory_space<vmem>>, vector<1x1x1x8xf32>
    %64 = vector.shape_cast %63 : vector<1x1x1x8xf32> to vector<1x8xf32>
    %65 = vector.broadcast %64 : vector<1x8xf32> to vector<16x8xf32>
    %66 = arith.addf %62, %65 : vector<16x8xf32>
    %c0_55 = arith.constant 0 : index
    %c1_56 = arith.constant 1 : index
    %c0_57 = arith.constant 0 : index
    %c0_58 = arith.constant 0 : index
    %67 = vector.load %arg8[%c0_55, %c1_56, %c0_57, %c0_58] : memref<1x4x32x8xbf16, #tpu.memory_space<vmem>>, vector<1x1x32x8xbf16>
    %68 = vector.shape_cast %67 : vector<1x1x32x8xbf16> to vector<32x8xbf16>
    %cst_59 = arith.constant dense<0.000000e+00> : vector<16x8xf32>
    %69 = tpu.matmul %8, %68, %cst_59 {dimension_numbers = #tpu.dot_dimension_numbers<[1], [0], [0], [1], [0, 0, 1, 1], [], []>} : vector<16x32xbf16>, vector<32x8xbf16>, vector<16x8xf32> -> vector<16x8xf32>
    %c0_60 = arith.constant 0 : index
    %c1_61 = arith.constant 1 : index
    %c0_62 = arith.constant 0 : index
    %c0_63 = arith.constant 0 : index
    %70 = vector.load %arg9[%c0_60, %c1_61, %c0_62, %c0_63] : memref<1x4x1x8xf32, #tpu.memory_space<vmem>>, vector<1x1x1x8xf32>
    %71 = vector.shape_cast %70 : vector<1x1x1x8xf32> to vector<1x8xf32>
    %72 = vector.broadcast %71 : vector<1x8xf32> to vector<16x8xf32>
    %73 = arith.addf %69, %72 : vector<16x8xf32>
    %c0_64 = arith.constant 0 : index
    %c1_65 = arith.constant 1 : index
    %c0_66 = arith.constant 0 : index
    %c0_67 = arith.constant 0 : index
    %74 = vector.load %arg10[%c0_64, %c1_65, %c0_66, %c0_67] : memref<1x4x32x8xbf16, #tpu.memory_space<vmem>>, vector<1x1x32x8xbf16>
    %75 = vector.shape_cast %74 : vector<1x1x32x8xbf16> to vector<32x8xbf16>
    %cst_68 = arith.constant dense<0.000000e+00> : vector<16x8xf32>
    %76 = tpu.matmul %8, %75, %cst_68 {dimension_numbers = #tpu.dot_dimension_numbers<[1], [0], [0], [1], [0, 0, 1, 1], [], []>} : vector<16x32xbf16>, vector<32x8xbf16>, vector<16x8xf32> -> vector<16x8xf32>
    %c0_69 = arith.constant 0 : index
    %c1_70 = arith.constant 1 : index
    %c0_71 = arith.constant 0 : index
    %c0_72 = arith.constant 0 : index
    %77 = vector.load %arg11[%c0_69, %c1_70, %c0_71, %c0_72] : memref<1x4x1x8xf32, #tpu.memory_space<vmem>>, vector<1x1x1x8xf32>
    %78 = vector.shape_cast %77 : vector<1x1x1x8xf32> to vector<1x8xf32>
    %79 = vector.broadcast %78 : vector<1x8xf32> to vector<16x8xf32>
    %80 = arith.addf %76, %79 : vector<16x8xf32>
    %81 = arith.truncf %66 : vector<16x8xf32> to vector<16x8xbf16>
    %82 = tpu.transpose %73, [1, 0] : vector<16x8xf32> -> vector<8x16xf32>
    %83 = arith.truncf %82 : vector<8x16xf32> to vector<8x16xbf16>
    %cst_73 = arith.constant dense<0.000000e+00> : vector<16x16xf32>
    %84 = tpu.matmul %81, %83, %cst_73 {dimension_numbers = #tpu.dot_dimension_numbers<[1], [0], [0], [1], [0, 0, 1, 1], [], []>} : vector<16x8xbf16>, vector<8x16xbf16>, vector<16x16xf32> -> vector<16x16xf32>
    %cst_74 = arith.constant 0.353553385 : f32
    %85 = vector.broadcast %cst_74 : f32 to vector<16x16xf32>
    %86 = arith.mulf %84, %85 : vector<16x16xf32>
    %cst_75 = arith.constant 0.000000e+00 : f32
    %87 = vector.broadcast %cst_75 : f32 to vector<16x16xf32>
    %88 = arith.cmpf ogt, %10, %87 : vector<16x16xf32>
    %cst_76 = arith.constant -1.000000e+09 : f32
    %89 = vector.broadcast %cst_76 : f32 to vector<16x16xf32>
    %90 = arith.select %88, %89, %86 : vector<16x16xi1>, vector<16x16xf32>
    %cst_77 = arith.constant dense<0xFF800000> : vector<16xf32>
    %91 = vector.multi_reduction <maximumf>, %90, %cst_77 [1] : vector<16x16xf32> to vector<16xf32>
    %92 = vector.shape_cast %91 : vector<16xf32> to vector<16x1xf32>
    %93 = vector.broadcast %92 : vector<16x1xf32> to vector<16x16xf32>
    %94 = arith.subf %90, %93 : vector<16x16xf32>
    %95 = math.exp %94 : vector<16x16xf32>
    %cst_78 = arith.constant dense<0.000000e+00> : vector<16xf32>
    %96 = vector.multi_reduction <add>, %95, %cst_78 [1] : vector<16x16xf32> to vector<16xf32>
    %97 = vector.shape_cast %96 : vector<16xf32> to vector<16x1xf32>
    %98 = tpu.reciprocal %97 {approx = true} : vector<16x1xf32> -> vector<16x1xf32>
    %99 = vector.broadcast %98 : vector<16x1xf32> to vector<16x16xf32>
    %100 = arith.mulf %95, %99 : vector<16x16xf32>
    %101 = arith.truncf %100 : vector<16x16xf32> to vector<16x16xbf16>
    %102 = arith.truncf %80 : vector<16x8xf32> to vector<16x8xbf16>
    %cst_79 = arith.constant dense<0.000000e+00> : vector<16x8xf32>
    %103 = tpu.matmul %101, %102, %cst_79 {dimension_numbers = #tpu.dot_dimension_numbers<[1], [0], [0], [1], [0, 0, 1, 1], [], []>} : vector<16x16xbf16>, vector<16x8xbf16>, vector<16x8xf32> -> vector<16x8xf32>
    %104 = arith.truncf %103 : vector<16x8xf32> to vector<16x8xbf16>
    %c0_80 = arith.constant 0 : index
    %c1_81 = arith.constant 1 : index
    %c0_82 = arith.constant 0 : index
    %c0_83 = arith.constant 0 : index
    %105 = vector.load %arg12[%c0_80, %c1_81, %c0_82, %c0_83] : memref<1x4x8x32xbf16, #tpu.memory_space<vmem>>, vector<1x1x8x32xbf16>
    %106 = vector.shape_cast %105 : vector<1x1x8x32xbf16> to vector<8x32xbf16>
    %cst_84 = arith.constant dense<0.000000e+00> : vector<16x32xf32>
    %107 = tpu.matmul %104, %106, %cst_84 {dimension_numbers = #tpu.dot_dimension_numbers<[1], [0], [0], [1], [0, 0, 1, 1], [], []>} : vector<16x8xbf16>, vector<8x32xbf16>, vector<16x32xf32> -> vector<16x32xf32>
    %108 = arith.addf %59, %107 : vector<16x32xf32>
    %c0_85 = arith.constant 0 : index
    %c2 = arith.constant 2 : index
    %c0_86 = arith.constant 0 : index
    %c0_87 = arith.constant 0 : index
    %109 = vector.load %arg6[%c0_85, %c2, %c0_86, %c0_87] : memref<1x4x32x8xbf16, #tpu.memory_space<vmem>>, vector<1x1x32x8xbf16>
    %110 = vector.shape_cast %109 : vector<1x1x32x8xbf16> to vector<32x8xbf16>
    %cst_88 = arith.constant dense<0.000000e+00> : vector<16x8xf32>
    %111 = tpu.matmul %11, %110, %cst_88 {dimension_numbers = #tpu.dot_dimension_numbers<[1], [0], [0], [1], [0, 0, 1, 1], [], []>} : vector<16x32xbf16>, vector<32x8xbf16>, vector<16x8xf32> -> vector<16x8xf32>
    %c0_89 = arith.constant 0 : index
    %c2_90 = arith.constant 2 : index
    %c0_91 = arith.constant 0 : index
    %c0_92 = arith.constant 0 : index
    %112 = vector.load %arg7[%c0_89, %c2_90, %c0_91, %c0_92] : memref<1x4x1x8xf32, #tpu.memory_space<vmem>>, vector<1x1x1x8xf32>
    %113 = vector.shape_cast %112 : vector<1x1x1x8xf32> to vector<1x8xf32>
    %114 = vector.broadcast %113 : vector<1x8xf32> to vector<16x8xf32>
    %115 = arith.addf %111, %114 : vector<16x8xf32>
    %c0_93 = arith.constant 0 : index
    %c2_94 = arith.constant 2 : index
    %c0_95 = arith.constant 0 : index
    %c0_96 = arith.constant 0 : index
    %116 = vector.load %arg8[%c0_93, %c2_94, %c0_95, %c0_96] : memref<1x4x32x8xbf16, #tpu.memory_space<vmem>>, vector<1x1x32x8xbf16>
    %117 = vector.shape_cast %116 : vector<1x1x32x8xbf16> to vector<32x8xbf16>
    %cst_97 = arith.constant dense<0.000000e+00> : vector<16x8xf32>
    %118 = tpu.matmul %8, %117, %cst_97 {dimension_numbers = #tpu.dot_dimension_numbers<[1], [0], [0], [1], [0, 0, 1, 1], [], []>} : vector<16x32xbf16>, vector<32x8xbf16>, vector<16x8xf32> -> vector<16x8xf32>
    %c0_98 = arith.constant 0 : index
    %c2_99 = arith.constant 2 : index
    %c0_100 = arith.constant 0 : index
    %c0_101 = arith.constant 0 : index
    %119 = vector.load %arg9[%c0_98, %c2_99, %c0_100, %c0_101] : memref<1x4x1x8xf32, #tpu.memory_space<vmem>>, vector<1x1x1x8xf32>
    %120 = vector.shape_cast %119 : vector<1x1x1x8xf32> to vector<1x8xf32>
    %121 = vector.broadcast %120 : vector<1x8xf32> to vector<16x8xf32>
    %122 = arith.addf %118, %121 : vector<16x8xf32>
    %c0_102 = arith.constant 0 : index
    %c2_103 = arith.constant 2 : index
    %c0_104 = arith.constant 0 : index
    %c0_105 = arith.constant 0 : index
    %123 = vector.load %arg10[%c0_102, %c2_103, %c0_104, %c0_105] : memref<1x4x32x8xbf16, #tpu.memory_space<vmem>>, vector<1x1x32x8xbf16>
    %124 = vector.shape_cast %123 : vector<1x1x32x8xbf16> to vector<32x8xbf16>
    %cst_106 = arith.constant dense<0.000000e+00> : vector<16x8xf32>
    %125 = tpu.matmul %8, %124, %cst_106 {dimension_numbers = #tpu.dot_dimension_numbers<[1], [0], [0], [1], [0, 0, 1, 1], [], []>} : vector<16x32xbf16>, vector<32x8xbf16>, vector<16x8xf32> -> vector<16x8xf32>
    %c0_107 = arith.constant 0 : index
    %c2_108 = arith.constant 2 : index
    %c0_109 = arith.constant 0 : index
    %c0_110 = arith.constant 0 : index
    %126 = vector.load %arg11[%c0_107, %c2_108, %c0_109, %c0_110] : memref<1x4x1x8xf32, #tpu.memory_space<vmem>>, vector<1x1x1x8xf32>
    %127 = vector.shape_cast %126 : vector<1x1x1x8xf32> to vector<1x8xf32>
    %128 = vector.broadcast %127 : vector<1x8xf32> to vector<16x8xf32>
    %129 = arith.addf %125, %128 : vector<16x8xf32>
    %130 = arith.truncf %115 : vector<16x8xf32> to vector<16x8xbf16>
    %131 = tpu.transpose %122, [1, 0] : vector<16x8xf32> -> vector<8x16xf32>
    %132 = arith.truncf %131 : vector<8x16xf32> to vector<8x16xbf16>
    %cst_111 = arith.constant dense<0.000000e+00> : vector<16x16xf32>
    %133 = tpu.matmul %130, %132, %cst_111 {dimension_numbers = #tpu.dot_dimension_numbers<[1], [0], [0], [1], [0, 0, 1, 1], [], []>} : vector<16x8xbf16>, vector<8x16xbf16>, vector<16x16xf32> -> vector<16x16xf32>
    %cst_112 = arith.constant 0.353553385 : f32
    %134 = vector.broadcast %cst_112 : f32 to vector<16x16xf32>
    %135 = arith.mulf %133, %134 : vector<16x16xf32>
    %cst_113 = arith.constant 0.000000e+00 : f32
    %136 = vector.broadcast %cst_113 : f32 to vector<16x16xf32>
    %137 = arith.cmpf ogt, %10, %136 : vector<16x16xf32>
    %cst_114 = arith.constant -1.000000e+09 : f32
    %138 = vector.broadcast %cst_114 : f32 to vector<16x16xf32>
    %139 = arith.select %137, %138, %135 : vector<16x16xi1>, vector<16x16xf32>
    %cst_115 = arith.constant dense<0xFF800000> : vector<16xf32>
    %140 = vector.multi_reduction <maximumf>, %139, %cst_115 [1] : vector<16x16xf32> to vector<16xf32>
    %141 = vector.shape_cast %140 : vector<16xf32> to vector<16x1xf32>
    %142 = vector.broadcast %141 : vector<16x1xf32> to vector<16x16xf32>
    %143 = arith.subf %139, %142 : vector<16x16xf32>
    %144 = math.exp %143 : vector<16x16xf32>
    %cst_116 = arith.constant dense<0.000000e+00> : vector<16xf32>
    %145 = vector.multi_reduction <add>, %144, %cst_116 [1] : vector<16x16xf32> to vector<16xf32>
    %146 = vector.shape_cast %145 : vector<16xf32> to vector<16x1xf32>
    %147 = tpu.reciprocal %146 {approx = true} : vector<16x1xf32> -> vector<16x1xf32>
    %148 = vector.broadcast %147 : vector<16x1xf32> to vector<16x16xf32>
    %149 = arith.mulf %144, %148 : vector<16x16xf32>
    %150 = arith.truncf %149 : vector<16x16xf32> to vector<16x16xbf16>
    %151 = arith.truncf %129 : vector<16x8xf32> to vector<16x8xbf16>
    %cst_117 = arith.constant dense<0.000000e+00> : vector<16x8xf32>
    %152 = tpu.matmul %150, %151, %cst_117 {dimension_numbers = #tpu.dot_dimension_numbers<[1], [0], [0], [1], [0, 0, 1, 1], [], []>} : vector<16x16xbf16>, vector<16x8xbf16>, vector<16x8xf32> -> vector<16x8xf32>
    %153 = arith.truncf %152 : vector<16x8xf32> to vector<16x8xbf16>
    %c0_118 = arith.constant 0 : index
    %c2_119 = arith.constant 2 : index
    %c0_120 = arith.constant 0 : index
    %c0_121 = arith.constant 0 : index
    %154 = vector.load %arg12[%c0_118, %c2_119, %c0_120, %c0_121] : memref<1x4x8x32xbf16, #tpu.memory_space<vmem>>, vector<1x1x8x32xbf16>
    %155 = vector.shape_cast %154 : vector<1x1x8x32xbf16> to vector<8x32xbf16>
    %cst_122 = arith.constant dense<0.000000e+00> : vector<16x32xf32>
    %156 = tpu.matmul %153, %155, %cst_122 {dimension_numbers = #tpu.dot_dimension_numbers<[1], [0], [0], [1], [0, 0, 1, 1], [], []>} : vector<16x8xbf16>, vector<8x32xbf16>, vector<16x32xf32> -> vector<16x32xf32>
    %157 = arith.addf %108, %156 : vector<16x32xf32>
    %c0_123 = arith.constant 0 : index
    %c3 = arith.constant 3 : index
    %c0_124 = arith.constant 0 : index
    %c0_125 = arith.constant 0 : index
    %158 = vector.load %arg6[%c0_123, %c3, %c0_124, %c0_125] : memref<1x4x32x8xbf16, #tpu.memory_space<vmem>>, vector<1x1x32x8xbf16>
    %159 = vector.shape_cast %158 : vector<1x1x32x8xbf16> to vector<32x8xbf16>
    %cst_126 = arith.constant dense<0.000000e+00> : vector<16x8xf32>
    %160 = tpu.matmul %11, %159, %cst_126 {dimension_numbers = #tpu.dot_dimension_numbers<[1], [0], [0], [1], [0, 0, 1, 1], [], []>} : vector<16x32xbf16>, vector<32x8xbf16>, vector<16x8xf32> -> vector<16x8xf32>
    %c0_127 = arith.constant 0 : index
    %c3_128 = arith.constant 3 : index
    %c0_129 = arith.constant 0 : index
    %c0_130 = arith.constant 0 : index
    %161 = vector.load %arg7[%c0_127, %c3_128, %c0_129, %c0_130] : memref<1x4x1x8xf32, #tpu.memory_space<vmem>>, vector<1x1x1x8xf32>
    %162 = vector.shape_cast %161 : vector<1x1x1x8xf32> to vector<1x8xf32>
    %163 = vector.broadcast %162 : vector<1x8xf32> to vector<16x8xf32>
    %164 = arith.addf %160, %163 : vector<16x8xf32>
    %c0_131 = arith.constant 0 : index
    %c3_132 = arith.constant 3 : index
    %c0_133 = arith.constant 0 : index
    %c0_134 = arith.constant 0 : index
    %165 = vector.load %arg8[%c0_131, %c3_132, %c0_133, %c0_134] : memref<1x4x32x8xbf16, #tpu.memory_space<vmem>>, vector<1x1x32x8xbf16>
    %166 = vector.shape_cast %165 : vector<1x1x32x8xbf16> to vector<32x8xbf16>
    %cst_135 = arith.constant dense<0.000000e+00> : vector<16x8xf32>
    %167 = tpu.matmul %8, %166, %cst_135 {dimension_numbers = #tpu.dot_dimension_numbers<[1], [0], [0], [1], [0, 0, 1, 1], [], []>} : vector<16x32xbf16>, vector<32x8xbf16>, vector<16x8xf32> -> vector<16x8xf32>
    %c0_136 = arith.constant 0 : index
    %c3_137 = arith.constant 3 : index
    %c0_138 = arith.constant 0 : index
    %c0_139 = arith.constant 0 : index
    %168 = vector.load %arg9[%c0_136, %c3_137, %c0_138, %c0_139] : memref<1x4x1x8xf32, #tpu.memory_space<vmem>>, vector<1x1x1x8xf32>
    %169 = vector.shape_cast %168 : vector<1x1x1x8xf32> to vector<1x8xf32>
    %170 = vector.broadcast %169 : vector<1x8xf32> to vector<16x8xf32>
    %171 = arith.addf %167, %170 : vector<16x8xf32>
    %c0_140 = arith.constant 0 : index
    %c3_141 = arith.constant 3 : index
    %c0_142 = arith.constant 0 : index
    %c0_143 = arith.constant 0 : index
    %172 = vector.load %arg10[%c0_140, %c3_141, %c0_142, %c0_143] : memref<1x4x32x8xbf16, #tpu.memory_space<vmem>>, vector<1x1x32x8xbf16>
    %173 = vector.shape_cast %172 : vector<1x1x32x8xbf16> to vector<32x8xbf16>
    %cst_144 = arith.constant dense<0.000000e+00> : vector<16x8xf32>
    %174 = tpu.matmul %8, %173, %cst_144 {dimension_numbers = #tpu.dot_dimension_numbers<[1], [0], [0], [1], [0, 0, 1, 1], [], []>} : vector<16x32xbf16>, vector<32x8xbf16>, vector<16x8xf32> -> vector<16x8xf32>
    %c0_145 = arith.constant 0 : index
    %c3_146 = arith.constant 3 : index
    %c0_147 = arith.constant 0 : index
    %c0_148 = arith.constant 0 : index
    %175 = vector.load %arg11[%c0_145, %c3_146, %c0_147, %c0_148] : memref<1x4x1x8xf32, #tpu.memory_space<vmem>>, vector<1x1x1x8xf32>
    %176 = vector.shape_cast %175 : vector<1x1x1x8xf32> to vector<1x8xf32>
    %177 = vector.broadcast %176 : vector<1x8xf32> to vector<16x8xf32>
    %178 = arith.addf %174, %177 : vector<16x8xf32>
    %179 = arith.truncf %164 : vector<16x8xf32> to vector<16x8xbf16>
    %180 = tpu.transpose %171, [1, 0] : vector<16x8xf32> -> vector<8x16xf32>
    %181 = arith.truncf %180 : vector<8x16xf32> to vector<8x16xbf16>
    %cst_149 = arith.constant dense<0.000000e+00> : vector<16x16xf32>
    %182 = tpu.matmul %179, %181, %cst_149 {dimension_numbers = #tpu.dot_dimension_numbers<[1], [0], [0], [1], [0, 0, 1, 1], [], []>} : vector<16x8xbf16>, vector<8x16xbf16>, vector<16x16xf32> -> vector<16x16xf32>
    %cst_150 = arith.constant 0.353553385 : f32
    %183 = vector.broadcast %cst_150 : f32 to vector<16x16xf32>
    %184 = arith.mulf %182, %183 : vector<16x16xf32>
    %cst_151 = arith.constant 0.000000e+00 : f32
    %185 = vector.broadcast %cst_151 : f32 to vector<16x16xf32>
    %186 = arith.cmpf ogt, %10, %185 : vector<16x16xf32>
    %cst_152 = arith.constant -1.000000e+09 : f32
    %187 = vector.broadcast %cst_152 : f32 to vector<16x16xf32>
    %188 = arith.select %186, %187, %184 : vector<16x16xi1>, vector<16x16xf32>
    %cst_153 = arith.constant dense<0xFF800000> : vector<16xf32>
    %189 = vector.multi_reduction <maximumf>, %188, %cst_153 [1] : vector<16x16xf32> to vector<16xf32>
    %190 = vector.shape_cast %189 : vector<16xf32> to vector<16x1xf32>
    %191 = vector.broadcast %190 : vector<16x1xf32> to vector<16x16xf32>
    %192 = arith.subf %188, %191 : vector<16x16xf32>
    %193 = math.exp %192 : vector<16x16xf32>
    %cst_154 = arith.constant dense<0.000000e+00> : vector<16xf32>
    %194 = vector.multi_reduction <add>, %193, %cst_154 [1] : vector<16x16xf32> to vector<16xf32>
    %195 = vector.shape_cast %194 : vector<16xf32> to vector<16x1xf32>
    %196 = tpu.reciprocal %195 {approx = true} : vector<16x1xf32> -> vector<16x1xf32>
    %197 = vector.broadcast %196 : vector<16x1xf32> to vector<16x16xf32>
    %198 = arith.mulf %193, %197 : vector<16x16xf32>
    %199 = arith.truncf %198 : vector<16x16xf32> to vector<16x16xbf16>
    %200 = arith.truncf %178 : vector<16x8xf32> to vector<16x8xbf16>
    %cst_155 = arith.constant dense<0.000000e+00> : vector<16x8xf32>
    %201 = tpu.matmul %199, %200, %cst_155 {dimension_numbers = #tpu.dot_dimension_numbers<[1], [0], [0], [1], [0, 0, 1, 1], [], []>} : vector<16x16xbf16>, vector<16x8xbf16>, vector<16x8xf32> -> vector<16x8xf32>
    %202 = arith.truncf %201 : vector<16x8xf32> to vector<16x8xbf16>
    %c0_156 = arith.constant 0 : index
    %c3_157 = arith.constant 3 : index
    %c0_158 = arith.constant 0 : index
    %c0_159 = arith.constant 0 : index
    %203 = vector.load %arg12[%c0_156, %c3_157, %c0_158, %c0_159] : memref<1x4x8x32xbf16, #tpu.memory_space<vmem>>, vector<1x1x8x32xbf16>
    %204 = vector.shape_cast %203 : vector<1x1x8x32xbf16> to vector<8x32xbf16>
    %cst_160 = arith.constant dense<0.000000e+00> : vector<16x32xf32>
    %205 = tpu.matmul %202, %204, %cst_160 {dimension_numbers = #tpu.dot_dimension_numbers<[1], [0], [0], [1], [0, 0, 1, 1], [], []>} : vector<16x8xbf16>, vector<8x32xbf16>, vector<16x32xf32> -> vector<16x32xf32>
    %206 = arith.addf %157, %205 : vector<16x32xf32>
    %c0_161 = arith.constant 0 : index
    %c0_162 = arith.constant 0 : index
    %c0_163 = arith.constant 0 : index
    %207 = vector.load %arg13[%c0_161, %c0_162, %c0_163] : memref<1x1x32xf32, #tpu.memory_space<vmem>>, vector<1x1x32xf32>
    %208 = vector.shape_cast %207 : vector<1x1x32xf32> to vector<1x32xf32>
    %209 = vector.broadcast %208 : vector<1x32xf32> to vector<16x32xf32>
    %210 = arith.addf %206, %209 : vector<16x32xf32>
    %211 = arith.addf %4, %210 : vector<16x32xf32>
    %cst_164 = arith.constant dense<0.000000e+00> : vector<16xf32>
    %212 = vector.multi_reduction <add>, %211, %cst_164 [1] : vector<16x32xf32> to vector<16xf32>
    %213 = vector.shape_cast %212 : vector<16xf32> to vector<16x1xf32>
    %cst_165 = arith.constant 3.200000e+01 : f32
    %214 = vector.broadcast %cst_165 : f32 to vector<16x1xf32>
    %215 = arith.divf %213, %214 : vector<16x1xf32>
    %216 = vector.broadcast %215 : vector<16x1xf32> to vector<16x32xf32>
    %217 = arith.subf %211, %216 : vector<16x32xf32>
    %218 = arith.mulf %217, %217 : vector<16x32xf32>
    %cst_166 = arith.constant dense<0.000000e+00> : vector<16xf32>
    %219 = vector.multi_reduction <add>, %218, %cst_166 [1] : vector<16x32xf32> to vector<16xf32>
    %220 = vector.shape_cast %219 : vector<16xf32> to vector<16x1xf32>
    %cst_167 = arith.constant 3.200000e+01 : f32
    %221 = vector.broadcast %cst_167 : f32 to vector<16x1xf32>
    %222 = arith.divf %220, %221 : vector<16x1xf32>
    %223 = vector.broadcast %215 : vector<16x1xf32> to vector<16x32xf32>
    %224 = arith.subf %211, %223 : vector<16x32xf32>
    %cst_168 = arith.constant 9.99999997E-7 : f32
    %225 = vector.broadcast %cst_168 : f32 to vector<16x1xf32>
    %226 = arith.addf %222, %225 : vector<16x1xf32>
    %227 = math.rsqrt %226 : vector<16x1xf32>
    %228 = vector.broadcast %227 : vector<16x1xf32> to vector<16x32xf32>
    %229 = arith.mulf %224, %228 : vector<16x32xf32>
    %c0_169 = arith.constant 0 : index
    %c0_170 = arith.constant 0 : index
    %c0_171 = arith.constant 0 : index
    %230 = vector.load %arg26[%c0_169, %c0_170, %c0_171] : memref<1x1x32xf32, #tpu.memory_space<vmem>>, vector<1x1x32xf32>
    %231 = vector.shape_cast %230 : vector<1x1x32xf32> to vector<1x32xf32>
    %232 = vector.broadcast %231 : vector<1x32xf32> to vector<16x32xf32>
    %233 = arith.mulf %229, %232 : vector<16x32xf32>
    %c0_172 = arith.constant 0 : index
    %c0_173 = arith.constant 0 : index
    %c0_174 = arith.constant 0 : index
    %234 = vector.load %arg27[%c0_172, %c0_173, %c0_174] : memref<1x1x32xf32, #tpu.memory_space<vmem>>, vector<1x1x32xf32>
    %235 = vector.shape_cast %234 : vector<1x1x32xf32> to vector<1x32xf32>
    %236 = vector.broadcast %235 : vector<1x32xf32> to vector<16x32xf32>
    %237 = arith.addf %233, %236 : vector<16x32xf32>
    %c0_175 = arith.constant 0 : index
    %c0_176 = arith.constant 0 : index
    %c0_177 = arith.constant 0 : index
    %238 = vector.load %arg5[%c0_175, %c0_176, %c0_177] : memref<1x16x16xf32, #tpu.memory_space<vmem>>, vector<1x16x16xf32>
    %239 = vector.shape_cast %238 : vector<1x16x16xf32> to vector<16x16xf32>
    %240 = arith.truncf %237 : vector<16x32xf32> to vector<16x32xbf16>
    %c0_178 = arith.constant 0 : index
    %c0_179 = arith.constant 0 : index
    %c0_180 = arith.constant 0 : index
    %c0_181 = arith.constant 0 : index
    %241 = vector.load %arg14[%c0_178, %c0_179, %c0_180, %c0_181] : memref<1x4x32x8xbf16, #tpu.memory_space<vmem>>, vector<1x1x32x8xbf16>
    %242 = vector.shape_cast %241 : vector<1x1x32x8xbf16> to vector<32x8xbf16>
    %cst_182 = arith.constant dense<0.000000e+00> : vector<16x8xf32>
    %243 = tpu.matmul %240, %242, %cst_182 {dimension_numbers = #tpu.dot_dimension_numbers<[1], [0], [0], [1], [0, 0, 1, 1], [], []>} : vector<16x32xbf16>, vector<32x8xbf16>, vector<16x8xf32> -> vector<16x8xf32>
    %c0_183 = arith.constant 0 : index
    %c0_184 = arith.constant 0 : index
    %c0_185 = arith.constant 0 : index
    %c0_186 = arith.constant 0 : index
    %244 = vector.load %arg15[%c0_183, %c0_184, %c0_185, %c0_186] : memref<1x4x1x8xf32, #tpu.memory_space<vmem>>, vector<1x1x1x8xf32>
    %245 = vector.shape_cast %244 : vector<1x1x1x8xf32> to vector<1x8xf32>
    %246 = vector.broadcast %245 : vector<1x8xf32> to vector<16x8xf32>
    %247 = arith.addf %243, %246 : vector<16x8xf32>
    %c0_187 = arith.constant 0 : index
    %c0_188 = arith.constant 0 : index
    %c0_189 = arith.constant 0 : index
    %c0_190 = arith.constant 0 : index
    %248 = vector.load %arg16[%c0_187, %c0_188, %c0_189, %c0_190] : memref<1x4x32x8xbf16, #tpu.memory_space<vmem>>, vector<1x1x32x8xbf16>
    %249 = vector.shape_cast %248 : vector<1x1x32x8xbf16> to vector<32x8xbf16>
    %cst_191 = arith.constant dense<0.000000e+00> : vector<16x8xf32>
    %250 = tpu.matmul %7, %249, %cst_191 {dimension_numbers = #tpu.dot_dimension_numbers<[1], [0], [0], [1], [0, 0, 1, 1], [], []>} : vector<16x32xbf16>, vector<32x8xbf16>, vector<16x8xf32> -> vector<16x8xf32>
    %c0_192 = arith.constant 0 : index
    %c0_193 = arith.constant 0 : index
    %c0_194 = arith.constant 0 : index
    %c0_195 = arith.constant 0 : index
    %251 = vector.load %arg17[%c0_192, %c0_193, %c0_194, %c0_195] : memref<1x4x1x8xf32, #tpu.memory_space<vmem>>, vector<1x1x1x8xf32>
    %252 = vector.shape_cast %251 : vector<1x1x1x8xf32> to vector<1x8xf32>
    %253 = vector.broadcast %252 : vector<1x8xf32> to vector<16x8xf32>
    %254 = arith.addf %250, %253 : vector<16x8xf32>
    %c0_196 = arith.constant 0 : index
    %c0_197 = arith.constant 0 : index
    %c0_198 = arith.constant 0 : index
    %c0_199 = arith.constant 0 : index
    %255 = vector.load %arg18[%c0_196, %c0_197, %c0_198, %c0_199] : memref<1x4x32x8xbf16, #tpu.memory_space<vmem>>, vector<1x1x32x8xbf16>
    %256 = vector.shape_cast %255 : vector<1x1x32x8xbf16> to vector<32x8xbf16>
    %cst_200 = arith.constant dense<0.000000e+00> : vector<16x8xf32>
    %257 = tpu.matmul %7, %256, %cst_200 {dimension_numbers = #tpu.dot_dimension_numbers<[1], [0], [0], [1], [0, 0, 1, 1], [], []>} : vector<16x32xbf16>, vector<32x8xbf16>, vector<16x8xf32> -> vector<16x8xf32>
    %c0_201 = arith.constant 0 : index
    %c0_202 = arith.constant 0 : index
    %c0_203 = arith.constant 0 : index
    %c0_204 = arith.constant 0 : index
    %258 = vector.load %arg19[%c0_201, %c0_202, %c0_203, %c0_204] : memref<1x4x1x8xf32, #tpu.memory_space<vmem>>, vector<1x1x1x8xf32>
    %259 = vector.shape_cast %258 : vector<1x1x1x8xf32> to vector<1x8xf32>
    %260 = vector.broadcast %259 : vector<1x8xf32> to vector<16x8xf32>
    %261 = arith.addf %257, %260 : vector<16x8xf32>
    %262 = arith.truncf %247 : vector<16x8xf32> to vector<16x8xbf16>
    %263 = tpu.transpose %254, [1, 0] : vector<16x8xf32> -> vector<8x16xf32>
    %264 = arith.truncf %263 : vector<8x16xf32> to vector<8x16xbf16>
    %cst_205 = arith.constant dense<0.000000e+00> : vector<16x16xf32>
    %265 = tpu.matmul %262, %264, %cst_205 {dimension_numbers = #tpu.dot_dimension_numbers<[1], [0], [0], [1], [0, 0, 1, 1], [], []>} : vector<16x8xbf16>, vector<8x16xbf16>, vector<16x16xf32> -> vector<16x16xf32>
    %cst_206 = arith.constant 0.353553385 : f32
    %266 = vector.broadcast %cst_206 : f32 to vector<16x16xf32>
    %267 = arith.mulf %265, %266 : vector<16x16xf32>
    %cst_207 = arith.constant 0.000000e+00 : f32
    %268 = vector.broadcast %cst_207 : f32 to vector<16x16xf32>
    %269 = arith.cmpf ogt, %239, %268 : vector<16x16xf32>
    %cst_208 = arith.constant -1.000000e+09 : f32
    %270 = vector.broadcast %cst_208 : f32 to vector<16x16xf32>
    %271 = arith.select %269, %270, %267 : vector<16x16xi1>, vector<16x16xf32>
    %cst_209 = arith.constant dense<0xFF800000> : vector<16xf32>
    %272 = vector.multi_reduction <maximumf>, %271, %cst_209 [1] : vector<16x16xf32> to vector<16xf32>
    %273 = vector.shape_cast %272 : vector<16xf32> to vector<16x1xf32>
    %274 = vector.broadcast %273 : vector<16x1xf32> to vector<16x16xf32>
    %275 = arith.subf %271, %274 : vector<16x16xf32>
    %276 = math.exp %275 : vector<16x16xf32>
    %cst_210 = arith.constant dense<0.000000e+00> : vector<16xf32>
    %277 = vector.multi_reduction <add>, %276, %cst_210 [1] : vector<16x16xf32> to vector<16xf32>
    %278 = vector.shape_cast %277 : vector<16xf32> to vector<16x1xf32>
    %279 = tpu.reciprocal %278 {approx = true} : vector<16x1xf32> -> vector<16x1xf32>
    %280 = vector.broadcast %279 : vector<16x1xf32> to vector<16x16xf32>
    %281 = arith.mulf %276, %280 : vector<16x16xf32>
    %282 = arith.truncf %281 : vector<16x16xf32> to vector<16x16xbf16>
    %283 = arith.truncf %261 : vector<16x8xf32> to vector<16x8xbf16>
    %cst_211 = arith.constant dense<0.000000e+00> : vector<16x8xf32>
    %284 = tpu.matmul %282, %283, %cst_211 {dimension_numbers = #tpu.dot_dimension_numbers<[1], [0], [0], [1], [0, 0, 1, 1], [], []>} : vector<16x16xbf16>, vector<16x8xbf16>, vector<16x8xf32> -> vector<16x8xf32>
    %285 = arith.truncf %284 : vector<16x8xf32> to vector<16x8xbf16>
    %c0_212 = arith.constant 0 : index
    %c0_213 = arith.constant 0 : index
    %c0_214 = arith.constant 0 : index
    %c0_215 = arith.constant 0 : index
    %286 = vector.load %arg20[%c0_212, %c0_213, %c0_214, %c0_215] : memref<1x4x8x32xbf16, #tpu.memory_space<vmem>>, vector<1x1x8x32xbf16>
    %287 = vector.shape_cast %286 : vector<1x1x8x32xbf16> to vector<8x32xbf16>
    %cst_216 = arith.constant dense<0.000000e+00> : vector<16x32xf32>
    %288 = tpu.matmul %285, %287, %cst_216 {dimension_numbers = #tpu.dot_dimension_numbers<[1], [0], [0], [1], [0, 0, 1, 1], [], []>} : vector<16x8xbf16>, vector<8x32xbf16>, vector<16x32xf32> -> vector<16x32xf32>
    %c0_217 = arith.constant 0 : index
    %c1_218 = arith.constant 1 : index
    %c0_219 = arith.constant 0 : index
    %c0_220 = arith.constant 0 : index
    %289 = vector.load %arg14[%c0_217, %c1_218, %c0_219, %c0_220] : memref<1x4x32x8xbf16, #tpu.memory_space<vmem>>, vector<1x1x32x8xbf16>
    %290 = vector.shape_cast %289 : vector<1x1x32x8xbf16> to vector<32x8xbf16>
    %cst_221 = arith.constant dense<0.000000e+00> : vector<16x8xf32>
    %291 = tpu.matmul %240, %290, %cst_221 {dimension_numbers = #tpu.dot_dimension_numbers<[1], [0], [0], [1], [0, 0, 1, 1], [], []>} : vector<16x32xbf16>, vector<32x8xbf16>, vector<16x8xf32> -> vector<16x8xf32>
    %c0_222 = arith.constant 0 : index
    %c1_223 = arith.constant 1 : index
    %c0_224 = arith.constant 0 : index
    %c0_225 = arith.constant 0 : index
    %292 = vector.load %arg15[%c0_222, %c1_223, %c0_224, %c0_225] : memref<1x4x1x8xf32, #tpu.memory_space<vmem>>, vector<1x1x1x8xf32>
    %293 = vector.shape_cast %292 : vector<1x1x1x8xf32> to vector<1x8xf32>
    %294 = vector.broadcast %293 : vector<1x8xf32> to vector<16x8xf32>
    %295 = arith.addf %291, %294 : vector<16x8xf32>
    %c0_226 = arith.constant 0 : index
    %c1_227 = arith.constant 1 : index
    %c0_228 = arith.constant 0 : index
    %c0_229 = arith.constant 0 : index
    %296 = vector.load %arg16[%c0_226, %c1_227, %c0_228, %c0_229] : memref<1x4x32x8xbf16, #tpu.memory_space<vmem>>, vector<1x1x32x8xbf16>
    %297 = vector.shape_cast %296 : vector<1x1x32x8xbf16> to vector<32x8xbf16>
    %cst_230 = arith.constant dense<0.000000e+00> : vector<16x8xf32>
    %298 = tpu.matmul %7, %297, %cst_230 {dimension_numbers = #tpu.dot_dimension_numbers<[1], [0], [0], [1], [0, 0, 1, 1], [], []>} : vector<16x32xbf16>, vector<32x8xbf16>, vector<16x8xf32> -> vector<16x8xf32>
    %c0_231 = arith.constant 0 : index
    %c1_232 = arith.constant 1 : index
    %c0_233 = arith.constant 0 : index
    %c0_234 = arith.constant 0 : index
    %299 = vector.load %arg17[%c0_231, %c1_232, %c0_233, %c0_234] : memref<1x4x1x8xf32, #tpu.memory_space<vmem>>, vector<1x1x1x8xf32>
    %300 = vector.shape_cast %299 : vector<1x1x1x8xf32> to vector<1x8xf32>
    %301 = vector.broadcast %300 : vector<1x8xf32> to vector<16x8xf32>
    %302 = arith.addf %298, %301 : vector<16x8xf32>
    %c0_235 = arith.constant 0 : index
    %c1_236 = arith.constant 1 : index
    %c0_237 = arith.constant 0 : index
    %c0_238 = arith.constant 0 : index
    %303 = vector.load %arg18[%c0_235, %c1_236, %c0_237, %c0_238] : memref<1x4x32x8xbf16, #tpu.memory_space<vmem>>, vector<1x1x32x8xbf16>
    %304 = vector.shape_cast %303 : vector<1x1x32x8xbf16> to vector<32x8xbf16>
    %cst_239 = arith.constant dense<0.000000e+00> : vector<16x8xf32>
    %305 = tpu.matmul %7, %304, %cst_239 {dimension_numbers = #tpu.dot_dimension_numbers<[1], [0], [0], [1], [0, 0, 1, 1], [], []>} : vector<16x32xbf16>, vector<32x8xbf16>, vector<16x8xf32> -> vector<16x8xf32>
    %c0_240 = arith.constant 0 : index
    %c1_241 = arith.constant 1 : index
    %c0_242 = arith.constant 0 : index
    %c0_243 = arith.constant 0 : index
    %306 = vector.load %arg19[%c0_240, %c1_241, %c0_242, %c0_243] : memref<1x4x1x8xf32, #tpu.memory_space<vmem>>, vector<1x1x1x8xf32>
    %307 = vector.shape_cast %306 : vector<1x1x1x8xf32> to vector<1x8xf32>
    %308 = vector.broadcast %307 : vector<1x8xf32> to vector<16x8xf32>
    %309 = arith.addf %305, %308 : vector<16x8xf32>
    %310 = arith.truncf %295 : vector<16x8xf32> to vector<16x8xbf16>
    %311 = tpu.transpose %302, [1, 0] : vector<16x8xf32> -> vector<8x16xf32>
    %312 = arith.truncf %311 : vector<8x16xf32> to vector<8x16xbf16>
    %cst_244 = arith.constant dense<0.000000e+00> : vector<16x16xf32>
    %313 = tpu.matmul %310, %312, %cst_244 {dimension_numbers = #tpu.dot_dimension_numbers<[1], [0], [0], [1], [0, 0, 1, 1], [], []>} : vector<16x8xbf16>, vector<8x16xbf16>, vector<16x16xf32> -> vector<16x16xf32>
    %cst_245 = arith.constant 0.353553385 : f32
    %314 = vector.broadcast %cst_245 : f32 to vector<16x16xf32>
    %315 = arith.mulf %313, %314 : vector<16x16xf32>
    %cst_246 = arith.constant 0.000000e+00 : f32
    %316 = vector.broadcast %cst_246 : f32 to vector<16x16xf32>
    %317 = arith.cmpf ogt, %239, %316 : vector<16x16xf32>
    %cst_247 = arith.constant -1.000000e+09 : f32
    %318 = vector.broadcast %cst_247 : f32 to vector<16x16xf32>
    %319 = arith.select %317, %318, %315 : vector<16x16xi1>, vector<16x16xf32>
    %cst_248 = arith.constant dense<0xFF800000> : vector<16xf32>
    %320 = vector.multi_reduction <maximumf>, %319, %cst_248 [1] : vector<16x16xf32> to vector<16xf32>
    %321 = vector.shape_cast %320 : vector<16xf32> to vector<16x1xf32>
    %322 = vector.broadcast %321 : vector<16x1xf32> to vector<16x16xf32>
    %323 = arith.subf %319, %322 : vector<16x16xf32>
    %324 = math.exp %323 : vector<16x16xf32>
    %cst_249 = arith.constant dense<0.000000e+00> : vector<16xf32>
    %325 = vector.multi_reduction <add>, %324, %cst_249 [1] : vector<16x16xf32> to vector<16xf32>
    %326 = vector.shape_cast %325 : vector<16xf32> to vector<16x1xf32>
    %327 = tpu.reciprocal %326 {approx = true} : vector<16x1xf32> -> vector<16x1xf32>
    %328 = vector.broadcast %327 : vector<16x1xf32> to vector<16x16xf32>
    %329 = arith.mulf %324, %328 : vector<16x16xf32>
    %330 = arith.truncf %329 : vector<16x16xf32> to vector<16x16xbf16>
    %331 = arith.truncf %309 : vector<16x8xf32> to vector<16x8xbf16>
    %cst_250 = arith.constant dense<0.000000e+00> : vector<16x8xf32>
    %332 = tpu.matmul %330, %331, %cst_250 {dimension_numbers = #tpu.dot_dimension_numbers<[1], [0], [0], [1], [0, 0, 1, 1], [], []>} : vector<16x16xbf16>, vector<16x8xbf16>, vector<16x8xf32> -> vector<16x8xf32>
    %333 = arith.truncf %332 : vector<16x8xf32> to vector<16x8xbf16>
    %c0_251 = arith.constant 0 : index
    %c1_252 = arith.constant 1 : index
    %c0_253 = arith.constant 0 : index
    %c0_254 = arith.constant 0 : index
    %334 = vector.load %arg20[%c0_251, %c1_252, %c0_253, %c0_254] : memref<1x4x8x32xbf16, #tpu.memory_space<vmem>>, vector<1x1x8x32xbf16>
    %335 = vector.shape_cast %334 : vector<1x1x8x32xbf16> to vector<8x32xbf16>
    %cst_255 = arith.constant dense<0.000000e+00> : vector<16x32xf32>
    %336 = tpu.matmul %333, %335, %cst_255 {dimension_numbers = #tpu.dot_dimension_numbers<[1], [0], [0], [1], [0, 0, 1, 1], [], []>} : vector<16x8xbf16>, vector<8x32xbf16>, vector<16x32xf32> -> vector<16x32xf32>
    %337 = arith.addf %288, %336 : vector<16x32xf32>
    %c0_256 = arith.constant 0 : index
    %c2_257 = arith.constant 2 : index
    %c0_258 = arith.constant 0 : index
    %c0_259 = arith.constant 0 : index
    %338 = vector.load %arg14[%c0_256, %c2_257, %c0_258, %c0_259] : memref<1x4x32x8xbf16, #tpu.memory_space<vmem>>, vector<1x1x32x8xbf16>
    %339 = vector.shape_cast %338 : vector<1x1x32x8xbf16> to vector<32x8xbf16>
    %cst_260 = arith.constant dense<0.000000e+00> : vector<16x8xf32>
    %340 = tpu.matmul %240, %339, %cst_260 {dimension_numbers = #tpu.dot_dimension_numbers<[1], [0], [0], [1], [0, 0, 1, 1], [], []>} : vector<16x32xbf16>, vector<32x8xbf16>, vector<16x8xf32> -> vector<16x8xf32>
    %c0_261 = arith.constant 0 : index
    %c2_262 = arith.constant 2 : index
    %c0_263 = arith.constant 0 : index
    %c0_264 = arith.constant 0 : index
    %341 = vector.load %arg15[%c0_261, %c2_262, %c0_263, %c0_264] : memref<1x4x1x8xf32, #tpu.memory_space<vmem>>, vector<1x1x1x8xf32>
    %342 = vector.shape_cast %341 : vector<1x1x1x8xf32> to vector<1x8xf32>
    %343 = vector.broadcast %342 : vector<1x8xf32> to vector<16x8xf32>
    %344 = arith.addf %340, %343 : vector<16x8xf32>
    %c0_265 = arith.constant 0 : index
    %c2_266 = arith.constant 2 : index
    %c0_267 = arith.constant 0 : index
    %c0_268 = arith.constant 0 : index
    %345 = vector.load %arg16[%c0_265, %c2_266, %c0_267, %c0_268] : memref<1x4x32x8xbf16, #tpu.memory_space<vmem>>, vector<1x1x32x8xbf16>
    %346 = vector.shape_cast %345 : vector<1x1x32x8xbf16> to vector<32x8xbf16>
    %cst_269 = arith.constant dense<0.000000e+00> : vector<16x8xf32>
    %347 = tpu.matmul %7, %346, %cst_269 {dimension_numbers = #tpu.dot_dimension_numbers<[1], [0], [0], [1], [0, 0, 1, 1], [], []>} : vector<16x32xbf16>, vector<32x8xbf16>, vector<16x8xf32> -> vector<16x8xf32>
    %c0_270 = arith.constant 0 : index
    %c2_271 = arith.constant 2 : index
    %c0_272 = arith.constant 0 : index
    %c0_273 = arith.constant 0 : index
    %348 = vector.load %arg17[%c0_270, %c2_271, %c0_272, %c0_273] : memref<1x4x1x8xf32, #tpu.memory_space<vmem>>, vector<1x1x1x8xf32>
    %349 = vector.shape_cast %348 : vector<1x1x1x8xf32> to vector<1x8xf32>
    %350 = vector.broadcast %349 : vector<1x8xf32> to vector<16x8xf32>
    %351 = arith.addf %347, %350 : vector<16x8xf32>
    %c0_274 = arith.constant 0 : index
    %c2_275 = arith.constant 2 : index
    %c0_276 = arith.constant 0 : index
    %c0_277 = arith.constant 0 : index
    %352 = vector.load %arg18[%c0_274, %c2_275, %c0_276, %c0_277] : memref<1x4x32x8xbf16, #tpu.memory_space<vmem>>, vector<1x1x32x8xbf16>
    %353 = vector.shape_cast %352 : vector<1x1x32x8xbf16> to vector<32x8xbf16>
    %cst_278 = arith.constant dense<0.000000e+00> : vector<16x8xf32>
    %354 = tpu.matmul %7, %353, %cst_278 {dimension_numbers = #tpu.dot_dimension_numbers<[1], [0], [0], [1], [0, 0, 1, 1], [], []>} : vector<16x32xbf16>, vector<32x8xbf16>, vector<16x8xf32> -> vector<16x8xf32>
    %c0_279 = arith.constant 0 : index
    %c2_280 = arith.constant 2 : index
    %c0_281 = arith.constant 0 : index
    %c0_282 = arith.constant 0 : index
    %355 = vector.load %arg19[%c0_279, %c2_280, %c0_281, %c0_282] : memref<1x4x1x8xf32, #tpu.memory_space<vmem>>, vector<1x1x1x8xf32>
    %356 = vector.shape_cast %355 : vector<1x1x1x8xf32> to vector<1x8xf32>
    %357 = vector.broadcast %356 : vector<1x8xf32> to vector<16x8xf32>
    %358 = arith.addf %354, %357 : vector<16x8xf32>
    %359 = arith.truncf %344 : vector<16x8xf32> to vector<16x8xbf16>
    %360 = tpu.transpose %351, [1, 0] : vector<16x8xf32> -> vector<8x16xf32>
    %361 = arith.truncf %360 : vector<8x16xf32> to vector<8x16xbf16>
    %cst_283 = arith.constant dense<0.000000e+00> : vector<16x16xf32>
    %362 = tpu.matmul %359, %361, %cst_283 {dimension_numbers = #tpu.dot_dimension_numbers<[1], [0], [0], [1], [0, 0, 1, 1], [], []>} : vector<16x8xbf16>, vector<8x16xbf16>, vector<16x16xf32> -> vector<16x16xf32>
    %cst_284 = arith.constant 0.353553385 : f32
    %363 = vector.broadcast %cst_284 : f32 to vector<16x16xf32>
    %364 = arith.mulf %362, %363 : vector<16x16xf32>
    %cst_285 = arith.constant 0.000000e+00 : f32
    %365 = vector.broadcast %cst_285 : f32 to vector<16x16xf32>
    %366 = arith.cmpf ogt, %239, %365 : vector<16x16xf32>
    %cst_286 = arith.constant -1.000000e+09 : f32
    %367 = vector.broadcast %cst_286 : f32 to vector<16x16xf32>
    %368 = arith.select %366, %367, %364 : vector<16x16xi1>, vector<16x16xf32>
    %cst_287 = arith.constant dense<0xFF800000> : vector<16xf32>
    %369 = vector.multi_reduction <maximumf>, %368, %cst_287 [1] : vector<16x16xf32> to vector<16xf32>
    %370 = vector.shape_cast %369 : vector<16xf32> to vector<16x1xf32>
    %371 = vector.broadcast %370 : vector<16x1xf32> to vector<16x16xf32>
    %372 = arith.subf %368, %371 : vector<16x16xf32>
    %373 = math.exp %372 : vector<16x16xf32>
    %cst_288 = arith.constant dense<0.000000e+00> : vector<16xf32>
    %374 = vector.multi_reduction <add>, %373, %cst_288 [1] : vector<16x16xf32> to vector<16xf32>
    %375 = vector.shape_cast %374 : vector<16xf32> to vector<16x1xf32>
    %376 = tpu.reciprocal %375 {approx = true} : vector<16x1xf32> -> vector<16x1xf32>
    %377 = vector.broadcast %376 : vector<16x1xf32> to vector<16x16xf32>
    %378 = arith.mulf %373, %377 : vector<16x16xf32>
    %379 = arith.truncf %378 : vector<16x16xf32> to vector<16x16xbf16>
    %380 = arith.truncf %358 : vector<16x8xf32> to vector<16x8xbf16>
    %cst_289 = arith.constant dense<0.000000e+00> : vector<16x8xf32>
    %381 = tpu.matmul %379, %380, %cst_289 {dimension_numbers = #tpu.dot_dimension_numbers<[1], [0], [0], [1], [0, 0, 1, 1], [], []>} : vector<16x16xbf16>, vector<16x8xbf16>, vector<16x8xf32> -> vector<16x8xf32>
    %382 = arith.truncf %381 : vector<16x8xf32> to vector<16x8xbf16>
    %c0_290 = arith.constant 0 : index
    %c2_291 = arith.constant 2 : index
    %c0_292 = arith.constant 0 : index
    %c0_293 = arith.constant 0 : index
    %383 = vector.load %arg20[%c0_290, %c2_291, %c0_292, %c0_293] : memref<1x4x8x32xbf16, #tpu.memory_space<vmem>>, vector<1x1x8x32xbf16>
    %384 = vector.shape_cast %383 : vector<1x1x8x32xbf16> to vector<8x32xbf16>
    %cst_294 = arith.constant dense<0.000000e+00> : vector<16x32xf32>
    %385 = tpu.matmul %382, %384, %cst_294 {dimension_numbers = #tpu.dot_dimension_numbers<[1], [0], [0], [1], [0, 0, 1, 1], [], []>} : vector<16x8xbf16>, vector<8x32xbf16>, vector<16x32xf32> -> vector<16x32xf32>
    %386 = arith.addf %337, %385 : vector<16x32xf32>
    %c0_295 = arith.constant 0 : index
    %c3_296 = arith.constant 3 : index
    %c0_297 = arith.constant 0 : index
    %c0_298 = arith.constant 0 : index
    %387 = vector.load %arg14[%c0_295, %c3_296, %c0_297, %c0_298] : memref<1x4x32x8xbf16, #tpu.memory_space<vmem>>, vector<1x1x32x8xbf16>
    %388 = vector.shape_cast %387 : vector<1x1x32x8xbf16> to vector<32x8xbf16>
    %cst_299 = arith.constant dense<0.000000e+00> : vector<16x8xf32>
    %389 = tpu.matmul %240, %388, %cst_299 {dimension_numbers = #tpu.dot_dimension_numbers<[1], [0], [0], [1], [0, 0, 1, 1], [], []>} : vector<16x32xbf16>, vector<32x8xbf16>, vector<16x8xf32> -> vector<16x8xf32>
    %c0_300 = arith.constant 0 : index
    %c3_301 = arith.constant 3 : index
    %c0_302 = arith.constant 0 : index
    %c0_303 = arith.constant 0 : index
    %390 = vector.load %arg15[%c0_300, %c3_301, %c0_302, %c0_303] : memref<1x4x1x8xf32, #tpu.memory_space<vmem>>, vector<1x1x1x8xf32>
    %391 = vector.shape_cast %390 : vector<1x1x1x8xf32> to vector<1x8xf32>
    %392 = vector.broadcast %391 : vector<1x8xf32> to vector<16x8xf32>
    %393 = arith.addf %389, %392 : vector<16x8xf32>
    %c0_304 = arith.constant 0 : index
    %c3_305 = arith.constant 3 : index
    %c0_306 = arith.constant 0 : index
    %c0_307 = arith.constant 0 : index
    %394 = vector.load %arg16[%c0_304, %c3_305, %c0_306, %c0_307] : memref<1x4x32x8xbf16, #tpu.memory_space<vmem>>, vector<1x1x32x8xbf16>
    %395 = vector.shape_cast %394 : vector<1x1x32x8xbf16> to vector<32x8xbf16>
    %cst_308 = arith.constant dense<0.000000e+00> : vector<16x8xf32>
    %396 = tpu.matmul %7, %395, %cst_308 {dimension_numbers = #tpu.dot_dimension_numbers<[1], [0], [0], [1], [0, 0, 1, 1], [], []>} : vector<16x32xbf16>, vector<32x8xbf16>, vector<16x8xf32> -> vector<16x8xf32>
    %c0_309 = arith.constant 0 : index
    %c3_310 = arith.constant 3 : index
    %c0_311 = arith.constant 0 : index
    %c0_312 = arith.constant 0 : index
    %397 = vector.load %arg17[%c0_309, %c3_310, %c0_311, %c0_312] : memref<1x4x1x8xf32, #tpu.memory_space<vmem>>, vector<1x1x1x8xf32>
    %398 = vector.shape_cast %397 : vector<1x1x1x8xf32> to vector<1x8xf32>
    %399 = vector.broadcast %398 : vector<1x8xf32> to vector<16x8xf32>
    %400 = arith.addf %396, %399 : vector<16x8xf32>
    %c0_313 = arith.constant 0 : index
    %c3_314 = arith.constant 3 : index
    %c0_315 = arith.constant 0 : index
    %c0_316 = arith.constant 0 : index
    %401 = vector.load %arg18[%c0_313, %c3_314, %c0_315, %c0_316] : memref<1x4x32x8xbf16, #tpu.memory_space<vmem>>, vector<1x1x32x8xbf16>
    %402 = vector.shape_cast %401 : vector<1x1x32x8xbf16> to vector<32x8xbf16>
    %cst_317 = arith.constant dense<0.000000e+00> : vector<16x8xf32>
    %403 = tpu.matmul %7, %402, %cst_317 {dimension_numbers = #tpu.dot_dimension_numbers<[1], [0], [0], [1], [0, 0, 1, 1], [], []>} : vector<16x32xbf16>, vector<32x8xbf16>, vector<16x8xf32> -> vector<16x8xf32>
    %c0_318 = arith.constant 0 : index
    %c3_319 = arith.constant 3 : index
    %c0_320 = arith.constant 0 : index
    %c0_321 = arith.constant 0 : index
    %404 = vector.load %arg19[%c0_318, %c3_319, %c0_320, %c0_321] : memref<1x4x1x8xf32, #tpu.memory_space<vmem>>, vector<1x1x1x8xf32>
    %405 = vector.shape_cast %404 : vector<1x1x1x8xf32> to vector<1x8xf32>
    %406 = vector.broadcast %405 : vector<1x8xf32> to vector<16x8xf32>
    %407 = arith.addf %403, %406 : vector<16x8xf32>
    %408 = arith.truncf %393 : vector<16x8xf32> to vector<16x8xbf16>
    %409 = tpu.transpose %400, [1, 0] : vector<16x8xf32> -> vector<8x16xf32>
    %410 = arith.truncf %409 : vector<8x16xf32> to vector<8x16xbf16>
    %cst_322 = arith.constant dense<0.000000e+00> : vector<16x16xf32>
    %411 = tpu.matmul %408, %410, %cst_322 {dimension_numbers = #tpu.dot_dimension_numbers<[1], [0], [0], [1], [0, 0, 1, 1], [], []>} : vector<16x8xbf16>, vector<8x16xbf16>, vector<16x16xf32> -> vector<16x16xf32>
    %cst_323 = arith.constant 0.353553385 : f32
    %412 = vector.broadcast %cst_323 : f32 to vector<16x16xf32>
    %413 = arith.mulf %411, %412 : vector<16x16xf32>
    %cst_324 = arith.constant 0.000000e+00 : f32
    %414 = vector.broadcast %cst_324 : f32 to vector<16x16xf32>
    %415 = arith.cmpf ogt, %239, %414 : vector<16x16xf32>
    %cst_325 = arith.constant -1.000000e+09 : f32
    %416 = vector.broadcast %cst_325 : f32 to vector<16x16xf32>
    %417 = arith.select %415, %416, %413 : vector<16x16xi1>, vector<16x16xf32>
    %cst_326 = arith.constant dense<0xFF800000> : vector<16xf32>
    %418 = vector.multi_reduction <maximumf>, %417, %cst_326 [1] : vector<16x16xf32> to vector<16xf32>
    %419 = vector.shape_cast %418 : vector<16xf32> to vector<16x1xf32>
    %420 = vector.broadcast %419 : vector<16x1xf32> to vector<16x16xf32>
    %421 = arith.subf %417, %420 : vector<16x16xf32>
    %422 = math.exp %421 : vector<16x16xf32>
    %cst_327 = arith.constant dense<0.000000e+00> : vector<16xf32>
    %423 = vector.multi_reduction <add>, %422, %cst_327 [1] : vector<16x16xf32> to vector<16xf32>
    %424 = vector.shape_cast %423 : vector<16xf32> to vector<16x1xf32>
    %425 = tpu.reciprocal %424 {approx = true} : vector<16x1xf32> -> vector<16x1xf32>
    %426 = vector.broadcast %425 : vector<16x1xf32> to vector<16x16xf32>
    %427 = arith.mulf %422, %426 : vector<16x16xf32>
    %428 = arith.truncf %427 : vector<16x16xf32> to vector<16x16xbf16>
    %429 = arith.truncf %407 : vector<16x8xf32> to vector<16x8xbf16>
    %cst_328 = arith.constant dense<0.000000e+00> : vector<16x8xf32>
    %430 = tpu.matmul %428, %429, %cst_328 {dimension_numbers = #tpu.dot_dimension_numbers<[1], [0], [0], [1], [0, 0, 1, 1], [], []>} : vector<16x16xbf16>, vector<16x8xbf16>, vector<16x8xf32> -> vector<16x8xf32>
    %431 = arith.truncf %430 : vector<16x8xf32> to vector<16x8xbf16>
    %c0_329 = arith.constant 0 : index
    %c3_330 = arith.constant 3 : index
    %c0_331 = arith.constant 0 : index
    %c0_332 = arith.constant 0 : index
    %432 = vector.load %arg20[%c0_329, %c3_330, %c0_331, %c0_332] : memref<1x4x8x32xbf16, #tpu.memory_space<vmem>>, vector<1x1x8x32xbf16>
    %433 = vector.shape_cast %432 : vector<1x1x8x32xbf16> to vector<8x32xbf16>
    %cst_333 = arith.constant dense<0.000000e+00> : vector<16x32xf32>
    %434 = tpu.matmul %431, %433, %cst_333 {dimension_numbers = #tpu.dot_dimension_numbers<[1], [0], [0], [1], [0, 0, 1, 1], [], []>} : vector<16x8xbf16>, vector<8x32xbf16>, vector<16x32xf32> -> vector<16x32xf32>
    %435 = arith.addf %386, %434 : vector<16x32xf32>
    %c0_334 = arith.constant 0 : index
    %c0_335 = arith.constant 0 : index
    %c0_336 = arith.constant 0 : index
    %436 = vector.load %arg21[%c0_334, %c0_335, %c0_336] : memref<1x1x32xf32, #tpu.memory_space<vmem>>, vector<1x1x32xf32>
    %437 = vector.shape_cast %436 : vector<1x1x32xf32> to vector<1x32xf32>
    %438 = vector.broadcast %437 : vector<1x32xf32> to vector<16x32xf32>
    %439 = arith.addf %435, %438 : vector<16x32xf32>
    %440 = arith.addf %237, %439 : vector<16x32xf32>
    %cst_337 = arith.constant dense<0.000000e+00> : vector<16xf32>
    %441 = vector.multi_reduction <add>, %440, %cst_337 [1] : vector<16x32xf32> to vector<16xf32>
    %442 = vector.shape_cast %441 : vector<16xf32> to vector<16x1xf32>
    %cst_338 = arith.constant 3.200000e+01 : f32
    %443 = vector.broadcast %cst_338 : f32 to vector<16x1xf32>
    %444 = arith.divf %442, %443 : vector<16x1xf32>
    %445 = vector.broadcast %444 : vector<16x1xf32> to vector<16x32xf32>
    %446 = arith.subf %440, %445 : vector<16x32xf32>
    %447 = arith.mulf %446, %446 : vector<16x32xf32>
    %cst_339 = arith.constant dense<0.000000e+00> : vector<16xf32>
    %448 = vector.multi_reduction <add>, %447, %cst_339 [1] : vector<16x32xf32> to vector<16xf32>
    %449 = vector.shape_cast %448 : vector<16xf32> to vector<16x1xf32>
    %cst_340 = arith.constant 3.200000e+01 : f32
    %450 = vector.broadcast %cst_340 : f32 to vector<16x1xf32>
    %451 = arith.divf %449, %450 : vector<16x1xf32>
    %452 = vector.broadcast %444 : vector<16x1xf32> to vector<16x32xf32>
    %453 = arith.subf %440, %452 : vector<16x32xf32>
    %cst_341 = arith.constant 9.99999997E-7 : f32
    %454 = vector.broadcast %cst_341 : f32 to vector<16x1xf32>
    %455 = arith.addf %451, %454 : vector<16x1xf32>
    %456 = math.rsqrt %455 : vector<16x1xf32>
    %457 = vector.broadcast %456 : vector<16x1xf32> to vector<16x32xf32>
    %458 = arith.mulf %453, %457 : vector<16x32xf32>
    %c0_342 = arith.constant 0 : index
    %c0_343 = arith.constant 0 : index
    %c0_344 = arith.constant 0 : index
    %459 = vector.load %arg28[%c0_342, %c0_343, %c0_344] : memref<1x1x32xf32, #tpu.memory_space<vmem>>, vector<1x1x32xf32>
    %460 = vector.shape_cast %459 : vector<1x1x32xf32> to vector<1x32xf32>
    %461 = vector.broadcast %460 : vector<1x32xf32> to vector<16x32xf32>
    %462 = arith.mulf %458, %461 : vector<16x32xf32>
    %c0_345 = arith.constant 0 : index
    %c0_346 = arith.constant 0 : index
    %c0_347 = arith.constant 0 : index
    %463 = vector.load %arg29[%c0_345, %c0_346, %c0_347] : memref<1x1x32xf32, #tpu.memory_space<vmem>>, vector<1x1x32xf32>
    %464 = vector.shape_cast %463 : vector<1x1x32xf32> to vector<1x32xf32>
    %465 = vector.broadcast %464 : vector<1x32xf32> to vector<16x32xf32>
    %466 = arith.addf %462, %465 : vector<16x32xf32>
    %467 = arith.truncf %466 : vector<16x32xf32> to vector<16x32xbf16>
    %c0_348 = arith.constant 0 : index
    %c0_349 = arith.constant 0 : index
    %c0_350 = arith.constant 0 : index
    %468 = vector.load %arg22[%c0_348, %c0_349, %c0_350] : memref<1x32x64xbf16, #tpu.memory_space<vmem>>, vector<1x32x64xbf16>
    %469 = vector.shape_cast %468 : vector<1x32x64xbf16> to vector<32x64xbf16>
    %cst_351 = arith.constant dense<0.000000e+00> : vector<16x64xf32>
    %470 = tpu.matmul %467, %469, %cst_351 {dimension_numbers = #tpu.dot_dimension_numbers<[1], [0], [0], [1], [0, 0, 1, 1], [], []>} : vector<16x32xbf16>, vector<32x64xbf16>, vector<16x64xf32> -> vector<16x64xf32>
    %c0_352 = arith.constant 0 : index
    %c0_353 = arith.constant 0 : index
    %c0_354 = arith.constant 0 : index
    %471 = vector.load %arg23[%c0_352, %c0_353, %c0_354] : memref<1x1x64xf32, #tpu.memory_space<vmem>>, vector<1x1x64xf32>
    %472 = vector.shape_cast %471 : vector<1x1x64xf32> to vector<1x64xf32>
    %473 = vector.broadcast %472 : vector<1x64xf32> to vector<16x64xf32>
    %474 = arith.addf %470, %473 : vector<16x64xf32>
    %cst_355 = arith.constant 0.000000e+00 : f32
    %475 = vector.broadcast %cst_355 : f32 to vector<16x64xf32>
    %476 = arith.maximumf %474, %475 : vector<16x64xf32>
    %477 = arith.truncf %476 : vector<16x64xf32> to vector<16x64xbf16>
    %c0_356 = arith.constant 0 : index
    %c0_357 = arith.constant 0 : index
    %c0_358 = arith.constant 0 : index
    %478 = vector.load %arg24[%c0_356, %c0_357, %c0_358] : memref<1x64x32xbf16, #tpu.memory_space<vmem>>, vector<1x64x32xbf16>
    %479 = vector.shape_cast %478 : vector<1x64x32xbf16> to vector<64x32xbf16>
    %cst_359 = arith.constant dense<0.000000e+00> : vector<16x32xf32>
    %480 = tpu.matmul %477, %479, %cst_359 {dimension_numbers = #tpu.dot_dimension_numbers<[1], [0], [0], [1], [0, 0, 1, 1], [], []>} : vector<16x64xbf16>, vector<64x32xbf16>, vector<16x32xf32> -> vector<16x32xf32>
    %c0_360 = arith.constant 0 : index
    %c0_361 = arith.constant 0 : index
    %c0_362 = arith.constant 0 : index
    %481 = vector.load %arg25[%c0_360, %c0_361, %c0_362] : memref<1x1x32xf32, #tpu.memory_space<vmem>>, vector<1x1x32xf32>
    %482 = vector.shape_cast %481 : vector<1x1x32xf32> to vector<1x32xf32>
    %483 = vector.broadcast %482 : vector<1x32xf32> to vector<16x32xf32>
    %484 = arith.addf %480, %483 : vector<16x32xf32>
    %485 = arith.addf %466, %484 : vector<16x32xf32>
    %cst_363 = arith.constant dense<0.000000e+00> : vector<16xf32>
    %486 = vector.multi_reduction <add>, %485, %cst_363 [1] : vector<16x32xf32> to vector<16xf32>
    %487 = vector.shape_cast %486 : vector<16xf32> to vector<16x1xf32>
    %cst_364 = arith.constant 3.200000e+01 : f32
    %488 = vector.broadcast %cst_364 : f32 to vector<16x1xf32>
    %489 = arith.divf %487, %488 : vector<16x1xf32>
    %490 = vector.broadcast %489 : vector<16x1xf32> to vector<16x32xf32>
    %491 = arith.subf %485, %490 : vector<16x32xf32>
    %492 = arith.mulf %491, %491 : vector<16x32xf32>
    %cst_365 = arith.constant dense<0.000000e+00> : vector<16xf32>
    %493 = vector.multi_reduction <add>, %492, %cst_365 [1] : vector<16x32xf32> to vector<16xf32>
    %494 = vector.shape_cast %493 : vector<16xf32> to vector<16x1xf32>
    %cst_366 = arith.constant 3.200000e+01 : f32
    %495 = vector.broadcast %cst_366 : f32 to vector<16x1xf32>
    %496 = arith.divf %494, %495 : vector<16x1xf32>
    %497 = vector.broadcast %489 : vector<16x1xf32> to vector<16x32xf32>
    %498 = arith.subf %485, %497 : vector<16x32xf32>
    %cst_367 = arith.constant 9.99999997E-7 : f32
    %499 = vector.broadcast %cst_367 : f32 to vector<16x1xf32>
    %500 = arith.addf %496, %499 : vector<16x1xf32>
    %501 = math.rsqrt %500 : vector<16x1xf32>
    %502 = vector.broadcast %501 : vector<16x1xf32> to vector<16x32xf32>
    %503 = arith.mulf %498, %502 : vector<16x32xf32>
    %c0_368 = arith.constant 0 : index
    %c0_369 = arith.constant 0 : index
    %c0_370 = arith.constant 0 : index
    %504 = vector.load %arg30[%c0_368, %c0_369, %c0_370] : memref<1x1x32xf32, #tpu.memory_space<vmem>>, vector<1x1x32xf32>
    %505 = vector.shape_cast %504 : vector<1x1x32xf32> to vector<1x32xf32>
    %506 = vector.broadcast %505 : vector<1x32xf32> to vector<16x32xf32>
    %507 = arith.mulf %503, %506 : vector<16x32xf32>
    %c0_371 = arith.constant 0 : index
    %c0_372 = arith.constant 0 : index
    %c0_373 = arith.constant 0 : index
    %508 = vector.load %arg31[%c0_371, %c0_372, %c0_373] : memref<1x1x32xf32, #tpu.memory_space<vmem>>, vector<1x1x32xf32>
    %509 = vector.shape_cast %508 : vector<1x1x32xf32> to vector<1x32xf32>
    %510 = vector.broadcast %509 : vector<1x32xf32> to vector<16x32xf32>
    %511 = arith.addf %507, %510 : vector<16x32xf32>
    %c0_374 = arith.constant 0 : index
    %c0_375 = arith.constant 0 : index
    %c0_376 = arith.constant 0 : index
    %512 = vector.load %arg32[%c0_374, %c0_375, %c0_376] : memref<1x16x32xf32, #tpu.memory_space<vmem>>, vector<1x16x32xf32>
    %513 = vector.shape_cast %512 : vector<1x16x32xf32> to vector<16x32xf32>
    %514 = vector.shape_cast %511 : vector<16x32xf32> to vector<1x16x32xf32>
    tpu.vector_store %arg32[%c0_374, %c0_375, %c0_376], %514 {strides = array<i32>} : memref<1x16x32xf32, #tpu.memory_space<vmem>>, vector<1x16x32xf32>,
    return
  }
  func.func @transform_0(%arg0: i32, %arg1: i32) -> (i32, i32, i32) {
    %c0_i32 = arith.constant 0 : i32
    %c0_i32_0 = arith.constant 0 : i32
    %c0_i32_1 = arith.constant 0 : i32
    return %arg0, %c0_i32, %c0_i32_0 : i32, i32, i32
  }
  func.func @transform_1(%arg0: i32, %arg1: i32) -> (i32, i32, i32) {
    %c0_i32 = arith.constant 0 : i32
    %c0_i32_0 = arith.constant 0 : i32
    %c0_i32_1 = arith.constant 0 : i32
    return %arg0, %c0_i32, %c0_i32_0 : i32, i32, i32
  }
  func.func @transform_2(%arg0: i32, %arg1: i32) -> (i32, i32, i32) {
    %c0_i32 = arith.constant 0 : i32
    %c0_i32_0 = arith.constant 0 : i32
    %c0_i32_1 = arith.constant 0 : i32
    return %arg0, %c0_i32, %c0_i32_0 : i32, i32, i32
  }
  func.func @transform_3(%arg0: i32, %arg1: i32) -> (i32, i32, i32) {
    %c0_i32 = arith.constant 0 : i32
    %c0_i32_0 = arith.constant 0 : i32
    %c0_i32_1 = arith.constant 0 : i32
    return %arg0, %c0_i32, %c0_i32_0 : i32, i32, i32
  }
  func.func @transform_4(%arg0: i32, %arg1: i32) -> (i32, i32, i32, i32) {
    %c0_i32 = arith.constant 0 : i32
    %c0_i32_0 = arith.constant 0 : i32
    %c0_i32_1 = arith.constant 0 : i32
    %c0_i32_2 = arith.constant 0 : i32
    return %arg1, %c0_i32, %c0_i32_0, %c0_i32_1 : i32, i32, i32, i32
  }
  func.func @transform_5(%arg0: i32, %arg1: i32) -> (i32, i32, i32, i32) {
    %c0_i32 = arith.constant 0 : i32
    %c0_i32_0 = arith.constant 0 : i32
    %c0_i32_1 = arith.constant 0 : i32
    %c0_i32_2 = arith.constant 0 : i32
    return %arg1, %c0_i32, %c0_i32_0, %c0_i32_1 : i32, i32, i32, i32
  }
  func.func @transform_6(%arg0: i32, %arg1: i32) -> (i32, i32, i32, i32) {
    %c0_i32 = arith.constant 0 : i32
    %c0_i32_0 = arith.constant 0 : i32
    %c0_i32_1 = arith.constant 0 : i32
    %c0_i32_2 = arith.constant 0 : i32
    return %arg1, %c0_i32, %c0_i32_0, %c0_i32_1 : i32, i32, i32, i32
  }
  func.func @transform_7(%arg0: i32, %arg1: i32) -> (i32, i32, i32, i32) {
    %c0_i32 = arith.constant 0 : i32
    %c0_i32_0 = arith.constant 0 : i32
    %c0_i32_1 = arith.constant 0 : i32
    %c0_i32_2 = arith.constant 0 : i32
    return %arg1, %c0_i32, %c0_i32_0, %c0_i32_1 : i32, i32, i32, i32
  }
  func.func @transform_8(%arg0: i32, %arg1: i32) -> (i32, i32, i32, i32) {
    %c0_i32 = arith.constant 0 : i32
    %c0_i32_0 = arith.constant 0 : i32
    %c0_i32_1 = arith.constant 0 : i32
    %c0_i32_2 = arith.constant 0 : i32
    return %arg1, %c0_i32, %c0_i32_0, %c0_i32_1 : i32, i32, i32, i32
  }
  func.func @transform_9(%arg0: i32, %arg1: i32) -> (i32, i32, i32, i32) {
    %c0_i32 = arith.constant 0 : i32
    %c0_i32_0 = arith.constant 0 : i32
    %c0_i32_1 = arith.constant 0 : i32
    %c0_i32_2 = arith.constant 0 : i32
    return %arg1, %c0_i32, %c0_i32_0, %c0_i32_1 : i32, i32, i32, i32
  }
  func.func @transform_10(%arg0: i32, %arg1: i32) -> (i32, i32, i32, i32) {
    %c0_i32 = arith.constant 0 : i32
    %c0_i32_0 = arith.constant 0 : i32
    %c0_i32_1 = arith.constant 0 : i32
    %c0_i32_2 = arith.constant 0 : i32
    return %arg1, %c0_i32, %c0_i32_0, %c0_i32_1 : i32, i32, i32, i32
  }
  func.func @transform_11(%arg0: i32, %arg1: i32) -> (i32, i32, i32) {
    %c0_i32 = arith.constant 0 : i32
    %c0_i32_0 = arith.constant 0 : i32
    %c0_i32_1 = arith.constant 0 : i32
    return %arg1, %c0_i32, %c0_i32_0 : i32, i32, i32
  }
  func.func @transform_12(%arg0: i32, %arg1: i32) -> (i32, i32, i32, i32) {
    %c0_i32 = arith.constant 0 : i32
    %c0_i32_0 = arith.constant 0 : i32
    %c0_i32_1 = arith.constant 0 : i32
    %c0_i32_2 = arith.constant 0 : i32
    return %arg1, %c0_i32, %c0_i32_0, %c0_i32_1 : i32, i32, i32, i32
  }
  func.func @transform_13(%arg0: i32, %arg1: i32) -> (i32, i32, i32, i32) {
    %c0_i32 = arith.constant 0 : i32
    %c0_i32_0 = arith.constant 0 : i32
    %c0_i32_1 = arith.constant 0 : i32
    %c0_i32_2 = arith.constant 0 : i32
    return %arg1, %c0_i32, %c0_i32_0, %c0_i32_1 : i32, i32, i32, i32
  }
  func.func @transform_14(%arg0: i32, %arg1: i32) -> (i32, i32, i32, i32) {
    %c0_i32 = arith.constant 0 : i32
    %c0_i32_0 = arith.constant 0 : i32
    %c0_i32_1 = arith.constant 0 : i32
    %c0_i32_2 = arith.constant 0 : i32
    return %arg1, %c0_i32, %c0_i32_0, %c0_i32_1 : i32, i32, i32, i32
  }
  func.func @transform_15(%arg0: i32, %arg1: i32) -> (i32, i32, i32, i32) {
    %c0_i32 = arith.constant 0 : i32
    %c0_i32_0 = arith.constant 0 : i32
    %c0_i32_1 = arith.constant 0 : i32
    %c0_i32_2 = arith.constant 0 : i32
    return %arg1, %c0_i32, %c0_i32_0, %c0_i32_1 : i32, i32, i32, i32
  }
  func.func @transform_16(%arg0: i32, %arg1: i32) -> (i32, i32, i32, i32) {
    %c0_i32 = arith.constant 0 : i32
    %c0_i32_0 = arith.constant 0 : i32
    %c0_i32_1 = arith.constant 0 : i32
    %c0_i32_2 = arith.constant 0 : i32
    return %arg1, %c0_i32, %c0_i32_0, %c0_i32_1 : i32, i32, i32, i32
  }
  func.func @transform_17(%arg0: i32, %arg1: i32) -> (i32, i32, i32, i32) {
    %c0_i32 = arith.constant 0 : i32
    %c0_i32_0 = arith.constant 0 : i32
    %c0_i32_1 = arith.constant 0 : i32
    %c0_i32_2 = arith.constant 0 : i32
    return %arg1, %c0_i32, %c0_i32_0, %c0_i32_1 : i32, i32, i32, i32
  }
  func.func @transform_18(%arg0: i32, %arg1: i32) -> (i32, i32, i32, i32) {
    %c0_i32 = arith.constant 0 : i32
    %c0_i32_0 = arith.constant 0 : i32
    %c0_i32_1 = arith.constant 0 : i32
    %c0_i32_2 = arith.constant 0 : i32
    return %arg1, %c0_i32, %c0_i32_0, %c0_i32_1 : i32, i32, i32, i32
  }
  func.func @transform_19(%arg0: i32, %arg1: i32) -> (i32, i32, i32) {
    %c0_i32 = arith.constant 0 : i32
    %c0_i32_0 = arith.constant 0 : i32
    %c0_i32_1 = arith.constant 0 : i32
    return %arg1, %c0_i32, %c0_i32_0 : i32, i32, i32
  }
  func.func @transform_20(%arg0: i32, %arg1: i32) -> (i32, i32, i32) {
    %c0_i32 = arith.constant 0 : i32
    %c0_i32_0 = arith.constant 0 : i32
    %c0_i32_1 = arith.constant 0 : i32
    return %arg1, %c0_i32, %c0_i32_0 : i32, i32, i32
  }
  func.func @transform_21(%arg0: i32, %arg1: i32) -> (i32, i32, i32) {
    %c0_i32 = arith.constant 0 : i32
    %c0_i32_0 = arith.constant 0 : i32
    %c0_i32_1 = arith.constant 0 : i32
    return %arg1, %c0_i32, %c0_i32_0 : i32, i32, i32
  }
  func.func @transform_22(%arg0: i32, %arg1: i32) -> (i32, i32, i32) {
    %c0_i32 = arith.constant 0 : i32
    %c0_i32_0 = arith.constant 0 : i32
    %c0_i32_1 = arith.constant 0 : i32
    return %arg1, %c0_i32, %c0_i32_0 : i32, i32, i32
  }
  func.func @transform_23(%arg0: i32, %arg1: i32) -> (i32, i32, i32) {
    %c0_i32 = arith.constant 0 : i32
    %c0_i32_0 = arith.constant 0 : i32
    %c0_i32_1 = arith.constant 0 : i32
    return %arg1, %c0_i32, %c0_i32_0 : i32, i32, i32
  }
  func.func @transform_24(%arg0: i32, %arg1: i32) -> (i32, i32, i32) {
    %c0_i32 = arith.constant 0 : i32
    %c0_i32_0 = arith.constant 0 : i32
    %c0_i32_1 = arith.constant 0 : i32
    return %arg1, %c0_i32, %c0_i32_0 : i32, i32, i32
  }
  func.func @transform_25(%arg0: i32, %arg1: i32) -> (i32, i32, i32) {
    %c0_i32 = arith.constant 0 : i32
    %c0_i32_0 = arith.constant 0 : i32
    %c0_i32_1 = arith.constant 0 : i32
    return %arg1, %c0_i32, %c0_i32_0 : i32, i32, i32
  }
  func.func @transform_26(%arg0: i32, %arg1: i32) -> (i32, i32, i32) {
    %c0_i32 = arith.constant 0 : i32
    %c0_i32_0 = arith.constant 0 : i32
    %c0_i32_1 = arith.constant 0 : i32
    return %arg1, %c0_i32, %c0_i32_0 : i32, i32, i32
  }
  func.func @transform_27(%arg0: i32, %arg1: i32) -> (i32, i32, i32) {
    %c0_i32 = arith.constant 0 : i32
    %c0_i32_0 = arith.constant 0 : i32
    %c0_i32_1 = arith.constant 0 : i32
    return %arg1, %c0_i32, %c0_i32_0 : i32, i32, i32
  }
  func.func @transform_28(%arg0: i32, %arg1: i32) -> (i32, i32, i32) {
    %c0_i32 = arith.constant 0 : i32
    %c0_i32_0 = arith.constant 0 : i32
    %c0_i32_1 = arith.constant 0 : i32
    return %arg1, %c0_i32, %c0_i32_0 : i32, i32, i32
  }
  func.func @transform_29(%arg0: i32, %arg1: i32) -> (i32, i32, i32) {
    %c0_i32 = arith.constant 0 : i32
    %c0_i32_0 = arith.constant 0 : i32
    %c0_i32_1 = arith.constant 0 : i32
    return %arg1, %c0_i32, %c0_i32_0 : i32, i32, i32
  }
  func.func @transform_30(%arg0: i32, %arg1: i32) -> (i32, i32, i32) {
    %c0_i32 = arith.constant 0 : i32
    %c0_i32_0 = arith.constant 0 : i32
    %c0_i32_1 = arith.constant 0 : i32
    return %arg0, %c0_i32, %c0_i32_0 : i32, i32, i32
  }
}

</mosaic_0001>

<llo_original>
// kernel: tpu_custom_call.1
$region0: #{tpu_custom_call.1}
  #allocation0 [shape = 'u32[]', space=smem, size = 0x4, offset = 0x4, fixed_abs, tag = 'smem constant byte address 0x4 - core index']
  #allocation1 [shape = 'u32[144,128]{1,0:T(1,128)}', space=vmem, size = 0x12000, scoped, tag = 'internal scratch']
  %s0 = inlined_call_operand.smem [shape: u32[31], index: -1, kind: input, shape index: {}]
  %s1 = sld [smem:[%s0]]
  %s2 = scalar_lea.smem %s0, 1
  %s3 = sld [smem:[%s2]]
  %s4 = scalar_lea.smem %s0, 2
  %s5 = sld [smem:[%s4]]
  %s6 = scalar_lea.smem %s0, 3
  %s7 = sld [smem:[%s6]]
  %s8 = scalar_lea.smem %s0, 4
  %s9 = sld [smem:[%s8]]
  %s10 = scalar_lea.smem %s0, 5
  %s11 = sld [smem:[%s10]]
  %s12 = scalar_lea.smem %s0, 6
  %s13 = sld [smem:[%s12]]
  %s14 = scalar_lea.smem %s0, 7
  %s15 = sld [smem:[%s14]]
  %s16 = scalar_lea.smem %s0, 8
  %s17 = sld [smem:[%s16]]
  %s18 = scalar_lea.smem %s0, 9
  %s19 = sld [smem:[%s18]]
  %s20 = scalar_lea.smem %s0, 10
  %s21 = sld [smem:[%s20]]
  %s22 = scalar_lea.smem %s0, 11
  %s23 = sld [smem:[%s22]]
  %s24 = scalar_lea.smem %s0, 12
  %s25 = sld [smem:[%s24]]
  %s26 = scalar_lea.smem %s0, 13
  %s27 = sld [smem:[%s26]]
  %s28 = scalar_lea.smem %s0, 14
  %s29 = sld [smem:[%s28]]
  %s30 = scalar_lea.smem %s0, 15
  %s31 = sld [smem:[%s30]]
  %s32 = scalar_lea.smem %s0, 16
  %s33 = sld [smem:[%s32]]
  %s34 = scalar_lea.smem %s0, 17
  %s35 = sld [smem:[%s34]]
  %s36 = scalar_lea.smem %s0, 18
  %s37 = sld [smem:[%s36]]
  %s38 = scalar_lea.smem %s0, 19
  %s39 = sld [smem:[%s38]]
  %s40 = scalar_lea.smem %s0, 20
  %s41 = sld [smem:[%s40]]
  %s42 = scalar_lea.smem %s0, 21
  %s43 = sld [smem:[%s42]]
  %s44 = scalar_lea.smem %s0, 22
  %s45 = sld [smem:[%s44]]
  %s46 = scalar_lea.smem %s0, 23
  %s47 = sld [smem:[%s46]]
  %s48 = scalar_lea.smem %s0, 24
  %s49 = sld [smem:[%s48]]
  %s50 = scalar_lea.smem %s0, 25
  %s51 = sld [smem:[%s50]]
  %s52 = scalar_lea.smem %s0, 26
  %s53 = sld [smem:[%s52]]
  %s54 = scalar_lea.smem %s0, 27
  %s55 = sld [smem:[%s54]]
  %s56 = scalar_lea.smem %s0, 28
  %s57 = sld [smem:[%s56]]
  %s58 = scalar_lea.smem %s0, 29
  %s59 = sld [smem:[%s58]]
  %s60 = scalar_lea.smem %s0, 30
  %s61 = sld [smem:[%s60]]
  %s62 = sld [smem:[#allocation0]]
  $region157: #{tpu_custom_call.1} parent=0
    _
  %s64 = ssub.s32 1, %s62
  %s65 = scalar_select 0, %s64, %s62
  $region1: #{tpu_custom_call.1} parent=0
    #allocation2 [shape = 'u8[16384]{0}', space=vmem, size = 0x4000, scoped, tag = 'output window, operand 0']
    #allocation3 [shape = 's32[2]{0}', space=sflag, size = 0x8, scoped, tag = 'scoped memory for tpu_custom_call.1']
    %66 = vsyncpa [#allocation3], 0
    %s67 = scalar_lea.sflag [#allocation3], 1
    %68 = vsyncpa %s67, 0
    loop: start=0, step=1, limit=6
    $region2: #{tpu_custom_call.1} parent=1 // loop_pre_header
      _
    $region3: #{tpu_custom_call.1} parent=1 // loop_header
      %s70 = sphi 0, %s74
      %p71 = scmp.ge.s32.totalorder %s70, 6
      %s77 = sphi 0, %s89
      %s78 = sphi 0, %s85
      %s79 = sphi 0, %s77
      %s80 = sphi 0, %s78
      %s81 = sphi 0, %s79
      %s82 = sphi 0, %s80
      %s92 = sphi 0, %s94
      %s95 = sphi 0, %s92
      %s96 = sphi 0, %s95
      %s112 = sphi 0, %s96
      %s118 = sphi 0, %s120
      %s121 = sphi 0, %s118
      %s122 = sphi 0, %s121
      %s138 = sphi 0, %s122
      %s144 = sphi 0, %s146
      %s147 = sphi 0, %s144
      %s148 = sphi 0, %s147
      %s164 = sphi 0, %s148
      %s170 = sphi 0, %s172
      %s173 = sphi 0, %s170
      %s174 = sphi 0, %s173
      %s190 = sphi 0, %s174
      %s196 = sphi 0, %s198
      %s199 = sphi 0, %s196
      %s200 = sphi 0, %s199
      %s216 = sphi 0, %s200
      %s222 = sphi 0, %s224
      %s225 = sphi 0, %s222
      %s226 = sphi 0, %s225
      %s242 = sphi 0, %s226
      %s248 = sphi 0, %s250
      %s251 = sphi 0, %s248
      %s252 = sphi 0, %s251
      %s268 = sphi 0, %s252
      %s274 = sphi 0, %s276
      %s277 = sphi 0, %s274
      %s278 = sphi 0, %s277
      %s294 = sphi 0, %s278
      %s300 = sphi 0, %s302
      %s303 = sphi 0, %s300
      %s304 = sphi 0, %s303
      %s320 = sphi 0, %s304
      %s326 = sphi 0, %s328
      %s329 = sphi 0, %s326
      %s330 = sphi 0, %s329
      %s346 = sphi 0, %s330
      %s352 = sphi 0, %s354
      %s355 = sphi 0, %s352
      %s356 = sphi 0, %s355
      %s372 = sphi 0, %s356
      %s378 = sphi 0, %s380
      %s381 = sphi 0, %s378
      %s382 = sphi 0, %s381
      %s398 = sphi 0, %s382
      %s404 = sphi 0, %s406
      %s407 = sphi 0, %s404
      %s408 = sphi 0, %s407
      %s424 = sphi 0, %s408
      %s430 = sphi 0, %s432
      %s433 = sphi 0, %s430
      %s434 = sphi 0, %s433
      %s450 = sphi 0, %s434
      %s456 = sphi 0, %s458
      %s459 = sphi 0, %s456
      %s460 = sphi 0, %s459
      %s476 = sphi 0, %s460
      %s482 = sphi 0, %s484
      %s485 = sphi 0, %s482
      %s486 = sphi 0, %s485
      %s502 = sphi 0, %s486
      %s508 = sphi 0, %s510
      %s511 = sphi 0, %s508
      %s512 = sphi 0, %s511
      %s528 = sphi 0, %s512
      %s534 = sphi 0, %s536
      %s537 = sphi 0, %s534
      %s538 = sphi 0, %s537
      %s554 = sphi 0, %s538
      %s560 = sphi 0, %s562
      %s563 = sphi 0, %s560
      %s564 = sphi 0, %s563
      %s580 = sphi 0, %s564
      %s586 = sphi 0, %s588
      %s589 = sphi 0, %s586
      %s590 = sphi 0, %s589
      %s606 = sphi 0, %s590
      %s612 = sphi 0, %s614
      %s615 = sphi 0, %s612
      %s616 = sphi 0, %s615
      %s632 = sphi 0, %s616
      %s638 = sphi 0, %s640
      %s641 = sphi 0, %s638
      %s642 = sphi 0, %s641
      %s658 = sphi 0, %s642
      %s664 = sphi 0, %s666
      %s667 = sphi 0, %s664
      %s668 = sphi 0, %s667
      %s684 = sphi 0, %s668
      %s690 = sphi 0, %s692
      %s693 = sphi 0, %s690
      %s694 = sphi 0, %s693
      %s710 = sphi 0, %s694
      %s716 = sphi 0, %s718
      %s719 = sphi 0, %s716
      %s720 = sphi 0, %s719
      %s736 = sphi 0, %s720
      %s742 = sphi 0, %s744
      %s745 = sphi 0, %s742
      %s746 = sphi 0, %s745
      %s762 = sphi 0, %s746
      %s768 = sphi 0, %s770
      %s771 = sphi 0, %s768
      %s772 = sphi 0, %s771
      %s788 = sphi 0, %s772
      %s794 = sphi 0, %s796
      %s797 = sphi 0, %s794
      %s798 = sphi 0, %s797
      %s814 = sphi 0, %s798
      %s820 = sphi 0, %s822
      %s823 = sphi 0, %s820
      %s824 = sphi 0, %s823
      %s840 = sphi 0, %s824
      %s846 = sphi 0, %s848
      %s849 = sphi 0, %s846
      %s850 = sphi 0, %s849
      %s866 = sphi 0, %s850
      %s872 = sphi 0, %s874
      %s875 = sphi 0, %s872
      %s876 = sphi 0, %s875
      %s892 = sphi 0, %s876
    $region4: #{tpu_custom_call.1} parent=1 // loop_header_branch
      %73 = sbr.rel (%p71) target = $region8
    $region5: #{tpu_custom_call.1} parent=1 // loop_body
      %s75 = ssub.s32 %s70, 1
      %s76 = ssub.s32 %s70, 2
      %s83 = sadd.s32 1, %s78
      %p84 = scmp.ge.s32.totalorder %s83, 2
      %s85 = scalar_select %p84, 0, %s83
      %s86 = sadd.s32 1, %s77
      %s87 = scalar_select %p84, %s86, %s77
      %p88 = scmp.ge.s32.totalorder %s87, 2
      %s89 = scalar_select %p88, 0, %s87
      %s90 = ssub.s32 %s77, %s89
      %p91 = scmp.eq.s32.totalorder %s90, 0
      %s93 = sadd.s32 %s92, 1
      %s94 = scalar_select %p91, %s92, %s93
      %p97 = pneg %p91
      %p98 = scmp.eq.s32.totalorder %s70, 3
      %p99 = por %p97, %p98
      %p100 = scmp.ne.s32.totalorder %s92, %s95
      %p101 = scmp.eq.s32.totalorder %s70, 0
      %p102 = por %p100, %p101
      %p103 = scmp.ne.s32.totalorder %s92, %s95
      %p104 = scmp.eq.s32.totalorder %s75, 3
      %p105 = por %p103, %p104
      %p106 = scmp.ne.s32.totalorder %s95, %s96
      %p107 = scmp.eq.s32.totalorder %s75, 0
      %p108 = por %p106, %p107
      %p109 = scmp.ne.s32.totalorder %s95, %s96
      %p110 = scmp.eq.s32.totalorder %s76, 3
      %p111 = por %p109, %p110
      %p113 = scmp.ne.s32.totalorder %s96, %s112
      %p114 = scmp.eq.s32.totalorder %s76, 0
      %p115 = por %p113, %p114
      %s116 = ssub.s32 %s77, %s89
      %p117 = scmp.eq.s32.totalorder %s116, 0
      %s119 = sadd.s32 %s118, 1
      %s120 = scalar_select %p117, %s118, %s119
      %p123 = pneg %p117
      %p124 = scmp.eq.s32.totalorder %s70, 3
      %p125 = por %p123, %p124
      %p126 = scmp.ne.s32.totalorder %s118, %s121
      %p127 = scmp.eq.s32.totalorder %s70, 0
      %p128 = por %p126, %p127
      %p129 = scmp.ne.s32.totalorder %s118, %s121
      %p130 = scmp.eq.s32.totalorder %s75, 3
      %p131 = por %p129, %p130
      %p132 = scmp.ne.s32.totalorder %s121, %s122
      %p133 = scmp.eq.s32.totalorder %s75, 0
      %p134 = por %p132, %p133
      %p135 = scmp.ne.s32.totalorder %s121, %s122
      %p136 = scmp.eq.s32.totalorder %s76, 3
      %p137 = por %p135, %p136
      %p139 = scmp.ne.s32.totalorder %s122, %s138
      %p140 = scmp.eq.s32.totalorder %s76, 0
      %p141 = por %p139, %p140
      %s142 = ssub.s32 %s77, %s89
      %p143 = scmp.eq.s32.totalorder %s142, 0
      %s145 = sadd.s32 %s144, 1
      %s146 = scalar_select %p143, %s144, %s145
      %p149 = pneg %p143
      %p150 = scmp.eq.s32.totalorder %s70, 3
      %p151 = por %p149, %p150
      %p152 = scmp.ne.s32.totalorder %s144, %s147
      %p153 = scmp.eq.s32.totalorder %s70, 0
      %p154 = por %p152, %p153
      %p155 = scmp.ne.s32.totalorder %s144, %s147
      %p156 = scmp.eq.s32.totalorder %s75, 3
      %p157 = por %p155, %p156
      %p158 = scmp.ne.s32.totalorder %s147, %s148
      %p159 = scmp.eq.s32.totalorder %s75, 0
      %p160 = por %p158, %p159
      %p161 = scmp.ne.s32.totalorder %s147, %s148
      %p162 = scmp.eq.s32.totalorder %s76, 3
      %p163 = por %p161, %p162
      %p165 = scmp.ne.s32.totalorder %s148, %s164
      %p166 = scmp.eq.s32.totalorder %s76, 0
      %p167 = por %p165, %p166
      %s168 = ssub.s32 %s77, %s89
      %p169 = scmp.eq.s32.totalorder %s168, 0
      %s171 = sadd.s32 %s170, 1
      %s172 = scalar_select %p169, %s170, %s171
      %p175 = pneg %p169
      %p176 = scmp.eq.s32.totalorder %s70, 3
      %p177 = por %p175, %p176
      %p178 = scmp.ne.s32.totalorder %s170, %s173
      %p179 = scmp.eq.s32.totalorder %s70, 0
      %p180 = por %p178, %p179
      %p181 = scmp.ne.s32.totalorder %s170, %s173
      %p182 = scmp.eq.s32.totalorder %s75, 3
      %p183 = por %p181, %p182
      %p184 = scmp.ne.s32.totalorder %s173, %s174
      %p185 = scmp.eq.s32.totalorder %s75, 0
      %p186 = por %p184, %p185
      %p187 = scmp.ne.s32.totalorder %s173, %s174
      %p188 = scmp.eq.s32.totalorder %s76, 3
      %p189 = por %p187, %p188
      %p191 = scmp.ne.s32.totalorder %s174, %s190
      %p192 = scmp.eq.s32.totalorder %s76, 0
      %p193 = por %p191, %p192
      %s194 = ssub.s32 %s78, %s85
      %p195 = scmp.eq.s32.totalorder %s194, 0
      %s197 = sadd.s32 %s196, 1
      %s198 = scalar_select %p195, %s196, %s197
      %p201 = pneg %p195
      %p202 = scmp.eq.s32.totalorder %s70, 3
      %p203 = por %p201, %p202
      %p204 = scmp.ne.s32.totalorder %s196, %s199
      %p205 = scmp.eq.s32.totalorder %s70, 0
      %p206 = por %p204, %p205
      %p207 = scmp.ne.s32.totalorder %s196, %s199
      %p208 = scmp.eq.s32.totalorder %s75, 3
      %p209 = por %p207, %p208
      %p210 = scmp.ne.s32.totalorder %s199, %s200
      %p211 = scmp.eq.s32.totalorder %s75, 0
      %p212 = por %p210, %p211
      %p213 = scmp.ne.s32.totalorder %s199, %s200
      %p214 = scmp.eq.s32.totalorder %s76, 3
      %p215 = por %p213, %p214
      %p217 = scmp.ne.s32.totalorder %s200, %s216
      %p218 = scmp.eq.s32.totalorder %s76, 0
      %p219 = por %p217, %p218
      %s220 = ssub.s32 %s78, %s85
      %p221 = scmp.eq.s32.totalorder %s220, 0
      %s223 = sadd.s32 %s222, 1
      %s224 = scalar_select %p221, %s222, %s223
      %p227 = pneg %p221
      %p228 = scmp.eq.s32.totalorder %s70, 3
      %p229 = por %p227, %p228
      %p230 = scmp.ne.s32.totalorder %s222, %s225
      %p231 = scmp.eq.s32.totalorder %s70, 0
      %p232 = por %p230, %p231
      %p233 = scmp.ne.s32.totalorder %s222, %s225
      %p234 = scmp.eq.s32.totalorder %s75, 3
      %p235 = por %p233, %p234
      %p236 = scmp.ne.s32.totalorder %s225, %s226
      %p237 = scmp.eq.s32.totalorder %s75, 0
      %p238 = por %p236, %p237
      %p239 = scmp.ne.s32.totalorder %s225, %s226
      %p240 = scmp.eq.s32.totalorder %s76, 3
      %p241 = por %p239, %p240
      %p243 = scmp.ne.s32.totalorder %s226, %s242
      %p244 = scmp.eq.s32.totalorder %s76, 0
      %p245 = por %p243, %p244
      %s246 = ssub.s32 %s78, %s85
      %p247 = scmp.eq.s32.totalorder %s246, 0
      %s249 = sadd.s32 %s248, 1
      %s250 = scalar_select %p247, %s248, %s249
      %p253 = pneg %p247
      %p254 = scmp.eq.s32.totalorder %s70, 3
      %p255 = por %p253, %p254
      %p256 = scmp.ne.s32.totalorder %s248, %s251
      %p257 = scmp.eq.s32.totalorder %s70, 0
      %p258 = por %p256, %p257
      %p259 = scmp.ne.s32.totalorder %s248, %s251
      %p260 = scmp.eq.s32.totalorder %s75, 3
      %p261 = por %p259, %p260
      %p262 = scmp.ne.s32.totalorder %s251, %s252
      %p263 = scmp.eq.s32.totalorder %s75, 0
      %p264 = por %p262, %p263
      %p265 = scmp.ne.s32.totalorder %s251, %s252
      %p266 = scmp.eq.s32.totalorder %s76, 3
      %p267 = por %p265, %p266
      %p269 = scmp.ne.s32.totalorder %s252, %s268
      %p270 = scmp.eq.s32.totalorder %s76, 0
      %p271 = por %p269, %p270
      %s272 = ssub.s32 %s78, %s85
      %p273 = scmp.eq.s32.totalorder %s272, 0
      %s275 = sadd.s32 %s274, 1
      %s276 = scalar_select %p273, %s274, %s275
      %p279 = pneg %p273
      %p280 = scmp.eq.s32.totalorder %s70, 3
      %p281 = por %p279, %p280
      %p282 = scmp.ne.s32.totalorder %s274, %s277
      %p283 = scmp.eq.s32.totalorder %s70, 0
      %p284 = por %p282, %p283
      %p285 = scmp.ne.s32.totalorder %s274, %s277
      %p286 = scmp.eq.s32.totalorder %s75, 3
      %p287 = por %p285, %p286
      %p288 = scmp.ne.s32.totalorder %s277, %s278
      %p289 = scmp.eq.s32.totalorder %s75, 0
      %p290 = por %p288, %p289
      %p291 = scmp.ne.s32.totalorder %s277, %s278
      %p292 = scmp.eq.s32.totalorder %s76, 3
      %p293 = por %p291, %p292
      %p295 = scmp.ne.s32.totalorder %s278, %s294
      %p296 = scmp.eq.s32.totalorder %s76, 0
      %p297 = por %p295, %p296
      %s298 = ssub.s32 %s78, %s85
      %p299 = scmp.eq.s32.totalorder %s298, 0
      %s301 = sadd.s32 %s300, 1
      %s302 = scalar_select %p299, %s300, %s301
      %p305 = pneg %p299
      %p306 = scmp.eq.s32.totalorder %s70, 3
      %p307 = por %p305, %p306
      %p308 = scmp.ne.s32.totalorder %s300, %s303
      %p309 = scmp.eq.s32.totalorder %s70, 0
      %p310 = por %p308, %p309
      %p311 = scmp.ne.s32.totalorder %s300, %s303
      %p312 = scmp.eq.s32.totalorder %s75, 3
      %p313 = por %p311, %p312
      %p314 = scmp.ne.s32.totalorder %s303, %s304
      %p315 = scmp.eq.s32.totalorder %s75, 0
      %p316 = por %p314, %p315
      %p317 = scmp.ne.s32.totalorder %s303, %s304
      %p318 = scmp.eq.s32.totalorder %s76, 3
      %p319 = por %p317, %p318
      %p321 = scmp.ne.s32.totalorder %s304, %s320
      %p322 = scmp.eq.s32.totalorder %s76, 0
      %p323 = por %p321, %p322
      %s324 = ssub.s32 %s78, %s85
      %p325 = scmp.eq.s32.totalorder %s324, 0
      %s327 = sadd.s32 %s326, 1
      %s328 = scalar_select %p325, %s326, %s327
      %p331 = pneg %p325
      %p332 = scmp.eq.s32.totalorder %s70, 3
      %p333 = por %p331, %p332
      %p334 = scmp.ne.s32.totalorder %s326, %s329
      %p335 = scmp.eq.s32.totalorder %s70, 0
      %p336 = por %p334, %p335
      %p337 = scmp.ne.s32.totalorder %s326, %s329
      %p338 = scmp.eq.s32.totalorder %s75, 3
      %p339 = por %p337, %p338
      %p340 = scmp.ne.s32.totalorder %s329, %s330
      %p341 = scmp.eq.s32.totalorder %s75, 0
      %p342 = por %p340, %p341
      %p343 = scmp.ne.s32.totalorder %s329, %s330
      %p344 = scmp.eq.s32.totalorder %s76, 3
      %p345 = por %p343, %p344
      %p347 = scmp.ne.s32.totalorder %s330, %s346
      %p348 = scmp.eq.s32.totalorder %s76, 0
      %p349 = por %p347, %p348
      %s350 = ssub.s32 %s78, %s85
      %p351 = scmp.eq.s32.totalorder %s350, 0
      %s353 = sadd.s32 %s352, 1
      %s354 = scalar_select %p351, %s352, %s353
      %p357 = pneg %p351
      %p358 = scmp.eq.s32.totalorder %s70, 3
      %p359 = por %p357, %p358
      %p360 = scmp.ne.s32.totalorder %s352, %s355
      %p361 = scmp.eq.s32.totalorder %s70, 0
      %p362 = por %p360, %p361
      %p363 = scmp.ne.s32.totalorder %s352, %s355
      %p364 = scmp.eq.s32.totalorder %s75, 3
      %p365 = por %p363, %p364
      %p366 = scmp.ne.s32.totalorder %s355, %s356
      %p367 = scmp.eq.s32.totalorder %s75, 0
      %p368 = por %p366, %p367
      %p369 = scmp.ne.s32.totalorder %s355, %s356
      %p370 = scmp.eq.s32.totalorder %s76, 3
      %p371 = por %p369, %p370
      %p373 = scmp.ne.s32.totalorder %s356, %s372
      %p374 = scmp.eq.s32.totalorder %s76, 0
      %p375 = por %p373, %p374
      %s376 = ssub.s32 %s78, %s85
      %p377 = scmp.eq.s32.totalorder %s376, 0
      %s379 = sadd.s32 %s378, 1
      %s380 = scalar_select %p377, %s378, %s379
      %p383 = pneg %p377
      %p384 = scmp.eq.s32.totalorder %s70, 3
      %p385 = por %p383, %p384
      %p386 = scmp.ne.s32.totalorder %s378, %s381
      %p387 = scmp.eq.s32.totalorder %s70, 0
      %p388 = por %p386, %p387
      %p389 = scmp.ne.s32.totalorder %s378, %s381
      %p390 = scmp.eq.s32.totalorder %s75, 3
      %p391 = por %p389, %p390
      %p392 = scmp.ne.s32.totalorder %s381, %s382
      %p393 = scmp.eq.s32.totalorder %s75, 0
      %p394 = por %p392, %p393
      %p395 = scmp.ne.s32.totalorder %s381, %s382
      %p396 = scmp.eq.s32.totalorder %s76, 3
      %p397 = por %p395, %p396
      %p399 = scmp.ne.s32.totalorder %s382, %s398
      %p400 = scmp.eq.s32.totalorder %s76, 0
      %p401 = por %p399, %p400
      %s402 = ssub.s32 %s78, %s85
      %p403 = scmp.eq.s32.totalorder %s402, 0
      %s405 = sadd.s32 %s404, 1
      %s406 = scalar_select %p403, %s404, %s405
      %p409 = pneg %p403
      %p410 = scmp.eq.s32.totalorder %s70, 3
      %p411 = por %p409, %p410
      %p412 = scmp.ne.s32.totalorder %s404, %s407
      %p413 = scmp.eq.s32.totalorder %s70, 0
      %p414 = por %p412, %p413
      %p415 = scmp.ne.s32.totalorder %s404, %s407
      %p416 = scmp.eq.s32.totalorder %s75, 3
      %p417 = por %p415, %p416
      %p418 = scmp.ne.s32.totalorder %s407, %s408
      %p419 = scmp.eq.s32.totalorder %s75, 0
      %p420 = por %p418, %p419
      %p421 = scmp.ne.s32.totalorder %s407, %s408
      %p422 = scmp.eq.s32.totalorder %s76, 3
      %p423 = por %p421, %p422
      %p425 = scmp.ne.s32.totalorder %s408, %s424
      %p426 = scmp.eq.s32.totalorder %s76, 0
      %p427 = por %p425, %p426
      %s428 = ssub.s32 %s78, %s85
      %p429 = scmp.eq.s32.totalorder %s428, 0
      %s431 = sadd.s32 %s430, 1
      %s432 = scalar_select %p429, %s430, %s431
      %p435 = pneg %p429
      %p436 = scmp.eq.s32.totalorder %s70, 3
      %p437 = por %p435, %p436
      %p438 = scmp.ne.s32.totalorder %s430, %s433
      %p439 = scmp.eq.s32.totalorder %s70, 0
      %p440 = por %p438, %p439
      %p441 = scmp.ne.s32.totalorder %s430, %s433
      %p442 = scmp.eq.s32.totalorder %s75, 3
      %p443 = por %p441, %p442
      %p444 = scmp.ne.s32.totalorder %s433, %s434
      %p445 = scmp.eq.s32.totalorder %s75, 0
      %p446 = por %p444, %p445
      %p447 = scmp.ne.s32.totalorder %s433, %s434
      %p448 = scmp.eq.s32.totalorder %s76, 3
      %p449 = por %p447, %p448
      %p451 = scmp.ne.s32.totalorder %s434, %s450
      %p452 = scmp.eq.s32.totalorder %s76, 0
      %p453 = por %p451, %p452
      %s454 = ssub.s32 %s78, %s85
      %p455 = scmp.eq.s32.totalorder %s454, 0
      %s457 = sadd.s32 %s456, 1
      %s458 = scalar_select %p455, %s456, %s457
      %p461 = pneg %p455
      %p462 = scmp.eq.s32.totalorder %s70, 3
      %p463 = por %p461, %p462
      %p464 = scmp.ne.s32.totalorder %s456, %s459
      %p465 = scmp.eq.s32.totalorder %s70, 0
      %p466 = por %p464, %p465
      %p467 = scmp.ne.s32.totalorder %s456, %s459
      %p468 = scmp.eq.s32.totalorder %s75, 3
      %p469 = por %p467, %p468
      %p470 = scmp.ne.s32.totalorder %s459, %s460
      %p471 = scmp.eq.s32.totalorder %s75, 0
      %p472 = por %p470, %p471
      %p473 = scmp.ne.s32.totalorder %s459, %s460
      %p474 = scmp.eq.s32.totalorder %s76, 3
      %p475 = por %p473, %p474
      %p477 = scmp.ne.s32.totalorder %s460, %s476
      %p478 = scmp.eq.s32.totalorder %s76, 0
      %p479 = por %p477, %p478
      %s480 = ssub.s32 %s78, %s85
      %p481 = scmp.eq.s32.totalorder %s480, 0
      %s483 = sadd.s32 %s482, 1
      %s484 = scalar_select %p481, %s482, %s483
      %p487 = pneg %p481
      %p488 = scmp.eq.s32.totalorder %s70, 3
      %p489 = por %p487, %p488
      %p490 = scmp.ne.s32.totalorder %s482, %s485
      %p491 = scmp.eq.s32.totalorder %s70, 0
      %p492 = por %p490, %p491
      %p493 = scmp.ne.s32.totalorder %s482, %s485
      %p494 = scmp.eq.s32.totalorder %s75, 3
      %p495 = por %p493, %p494
      %p496 = scmp.ne.s32.totalorder %s485, %s486
      %p497 = scmp.eq.s32.totalorder %s75, 0
      %p498 = por %p496, %p497
      %p499 = scmp.ne.s32.totalorder %s485, %s486
      %p500 = scmp.eq.s32.totalorder %s76, 3
      %p501 = por %p499, %p500
      %p503 = scmp.ne.s32.totalorder %s486, %s502
      %p504 = scmp.eq.s32.totalorder %s76, 0
      %p505 = por %p503, %p504
      %s506 = ssub.s32 %s78, %s85
      %p507 = scmp.eq.s32.totalorder %s506, 0
      %s509 = sadd.s32 %s508, 1
      %s510 = scalar_select %p507, %s508, %s509
      %p513 = pneg %p507
      %p514 = scmp.eq.s32.totalorder %s70, 3
      %p515 = por %p513, %p514
      %p516 = scmp.ne.s32.totalorder %s508, %s511
      %p517 = scmp.eq.s32.totalorder %s70, 0
      %p518 = por %p516, %p517
      %p519 = scmp.ne.s32.totalorder %s508, %s511
      %p520 = scmp.eq.s32.totalorder %s75, 3
      %p521 = por %p519, %p520
      %p522 = scmp.ne.s32.totalorder %s511, %s512
      %p523 = scmp.eq.s32.totalorder %s75, 0
      %p524 = por %p522, %p523
      %p525 = scmp.ne.s32.totalorder %s511, %s512
      %p526 = scmp.eq.s32.totalorder %s76, 3
      %p527 = por %p525, %p526
      %p529 = scmp.ne.s32.totalorder %s512, %s528
      %p530 = scmp.eq.s32.totalorder %s76, 0
      %p531 = por %p529, %p530
      %s532 = ssub.s32 %s78, %s85
      %p533 = scmp.eq.s32.totalorder %s532, 0
      %s535 = sadd.s32 %s534, 1
      %s536 = scalar_select %p533, %s534, %s535
      %p539 = pneg %p533
      %p540 = scmp.eq.s32.totalorder %s70, 3
      %p541 = por %p539, %p540
      %p542 = scmp.ne.s32.totalorder %s534, %s537
      %p543 = scmp.eq.s32.totalorder %s70, 0
      %p544 = por %p542, %p543
      %p545 = scmp.ne.s32.totalorder %s534, %s537
      %p546 = scmp.eq.s32.totalorder %s75, 3
      %p547 = por %p545, %p546
      %p548 = scmp.ne.s32.totalorder %s537, %s538
      %p549 = scmp.eq.s32.totalorder %s75, 0
      %p550 = por %p548, %p549
      %p551 = scmp.ne.s32.totalorder %s537, %s538
      %p552 = scmp.eq.s32.totalorder %s76, 3
      %p553 = por %p551, %p552
      %p555 = scmp.ne.s32.totalorder %s538, %s554
      %p556 = scmp.eq.s32.totalorder %s76, 0
      %p557 = por %p555, %p556
      %s558 = ssub.s32 %s78, %s85
      %p559 = scmp.eq.s32.totalorder %s558, 0
      %s561 = sadd.s32 %s560, 1
      %s562 = scalar_select %p559, %s560, %s561
      %p565 = pneg %p559
      %p566 = scmp.eq.s32.totalorder %s70, 3
      %p567 = por %p565, %p566
      %p568 = scmp.ne.s32.totalorder %s560, %s563
      %p569 = scmp.eq.s32.totalorder %s70, 0
      %p570 = por %p568, %p569
      %p571 = scmp.ne.s32.totalorder %s560, %s563
      %p572 = scmp.eq.s32.totalorder %s75, 3
      %p573 = por %p571, %p572
      %p574 = scmp.ne.s32.totalorder %s563, %s564
      %p575 = scmp.eq.s32.totalorder %s75, 0
      %p576 = por %p574, %p575
      %p577 = scmp.ne.s32.totalorder %s563, %s564
      %p578 = scmp.eq.s32.totalorder %s76, 3
      %p579 = por %p577, %p578
      %p581 = scmp.ne.s32.totalorder %s564, %s580
      %p582 = scmp.eq.s32.totalorder %s76, 0
      %p583 = por %p581, %p582
      %s584 = ssub.s32 %s78, %s85
      %p585 = scmp.eq.s32.totalorder %s584, 0
      %s587 = sadd.s32 %s586, 1
      %s588 = scalar_select %p585, %s586, %s587
      %p591 = pneg %p585
      %p592 = scmp.eq.s32.totalorder %s70, 3
      %p593 = por %p591, %p592
      %p594 = scmp.ne.s32.totalorder %s586, %s589
      %p595 = scmp.eq.s32.totalorder %s70, 0
      %p596 = por %p594, %p595
      %p597 = scmp.ne.s32.totalorder %s586, %s589
      %p598 = scmp.eq.s32.totalorder %s75, 3
      %p599 = por %p597, %p598
      %p600 = scmp.ne.s32.totalorder %s589, %s590
      %p601 = scmp.eq.s32.totalorder %s75, 0
      %p602 = por %p600, %p601
      %p603 = scmp.ne.s32.totalorder %s589, %s590
      %p604 = scmp.eq.s32.totalorder %s76, 3
      %p605 = por %p603, %p604
      %p607 = scmp.ne.s32.totalorder %s590, %s606
      %p608 = scmp.eq.s32.totalorder %s76, 0
      %p609 = por %p607, %p608
      %s610 = ssub.s32 %s78, %s85
      %p611 = scmp.eq.s32.totalorder %s610, 0
      %s613 = sadd.s32 %s612, 1
      %s614 = scalar_select %p611, %s612, %s613
      %p617 = pneg %p611
      %p618 = scmp.eq.s32.totalorder %s70, 3
      %p619 = por %p617, %p618
      %p620 = scmp.ne.s32.totalorder %s612, %s615
      %p621 = scmp.eq.s32.totalorder %s70, 0
      %p622 = por %p620, %p621
      %p623 = scmp.ne.s32.totalorder %s612, %s615
      %p624 = scmp.eq.s32.totalorder %s75, 3
      %p625 = por %p623, %p624
      %p626 = scmp.ne.s32.totalorder %s615, %s616
      %p627 = scmp.eq.s32.totalorder %s75, 0
      %p628 = por %p626, %p627
      %p629 = scmp.ne.s32.totalorder %s615, %s616
      %p630 = scmp.eq.s32.totalorder %s76, 3
      %p631 = por %p629, %p630
      %p633 = scmp.ne.s32.totalorder %s616, %s632
      %p634 = scmp.eq.s32.totalorder %s76, 0
      %p635 = por %p633, %p634
      %s636 = ssub.s32 %s78, %s85
      %p637 = scmp.eq.s32.totalorder %s636, 0
      %s639 = sadd.s32 %s638, 1
      %s640 = scalar_select %p637, %s638, %s639
      %p643 = pneg %p637
      %p644 = scmp.eq.s32.totalorder %s70, 3
      %p645 = por %p643, %p644
      %p646 = scmp.ne.s32.totalorder %s638, %s641
      %p647 = scmp.eq.s32.totalorder %s70, 0
      %p648 = por %p646, %p647
      %p649 = scmp.ne.s32.totalorder %s638, %s641
      %p650 = scmp.eq.s32.totalorder %s75, 3
      %p651 = por %p649, %p650
      %p652 = scmp.ne.s32.totalorder %s641, %s642
      %p653 = scmp.eq.s32.totalorder %s75, 0
      %p654 = por %p652, %p653
      %p655 = scmp.ne.s32.totalorder %s641, %s642
      %p656 = scmp.eq.s32.totalorder %s76, 3
      %p657 = por %p655, %p656
      %p659 = scmp.ne.s32.totalorder %s642, %s658
      %p660 = scmp.eq.s32.totalorder %s76, 0
      %p661 = por %p659, %p660
      %s662 = ssub.s32 %s78, %s85
      %p663 = scmp.eq.s32.totalorder %s662, 0
      %s665 = sadd.s32 %s664, 1
      %s666 = scalar_select %p663, %s664, %s665
      %p669 = pneg %p663
      %p670 = scmp.eq.s32.totalorder %s70, 3
      %p671 = por %p669, %p670
      %p672 = scmp.ne.s32.totalorder %s664, %s667
      %p673 = scmp.eq.s32.totalorder %s70, 0
      %p674 = por %p672, %p673
      %p675 = scmp.ne.s32.totalorder %s664, %s667
      %p676 = scmp.eq.s32.totalorder %s75, 3
      %p677 = por %p675, %p676
      %p678 = scmp.ne.s32.totalorder %s667, %s668
      %p679 = scmp.eq.s32.totalorder %s75, 0
      %p680 = por %p678, %p679
      %p681 = scmp.ne.s32.totalorder %s667, %s668
      %p682 = scmp.eq.s32.totalorder %s76, 3
      %p683 = por %p681, %p682
      %p685 = scmp.ne.s32.totalorder %s668, %s684
      %p686 = scmp.eq.s32.totalorder %s76, 0
      %p687 = por %p685, %p686
      %s688 = ssub.s32 %s78, %s85
      %p689 = scmp.eq.s32.totalorder %s688, 0
      %s691 = sadd.s32 %s690, 1
      %s692 = scalar_select %p689, %s690, %s691
      %p695 = pneg %p689
      %p696 = scmp.eq.s32.totalorder %s70, 3
      %p697 = por %p695, %p696
      %p698 = scmp.ne.s32.totalorder %s690, %s693
      %p699 = scmp.eq.s32.totalorder %s70, 0
      %p700 = por %p698, %p699
      %p701 = scmp.ne.s32.totalorder %s690, %s693
      %p702 = scmp.eq.s32.totalorder %s75, 3
      %p703 = por %p701, %p702
      %p704 = scmp.ne.s32.totalorder %s693, %s694
      %p705 = scmp.eq.s32.totalorder %s75, 0
      %p706 = por %p704, %p705
      %p707 = scmp.ne.s32.totalorder %s693, %s694
      %p708 = scmp.eq.s32.totalorder %s76, 3
      %p709 = por %p707, %p708
      %p711 = scmp.ne.s32.totalorder %s694, %s710
      %p712 = scmp.eq.s32.totalorder %s76, 0
      %p713 = por %p711, %p712
      %s714 = ssub.s32 %s78, %s85
      %p715 = scmp.eq.s32.totalorder %s714, 0
      %s717 = sadd.s32 %s716, 1
      %s718 = scalar_select %p715, %s716, %s717
      %p721 = pneg %p715
      %p722 = scmp.eq.s32.totalorder %s70, 3
      %p723 = por %p721, %p722
      %p724 = scmp.ne.s32.totalorder %s716, %s719
      %p725 = scmp.eq.s32.totalorder %s70, 0
      %p726 = por %p724, %p725
      %p727 = scmp.ne.s32.totalorder %s716, %s719
      %p728 = scmp.eq.s32.totalorder %s75, 3
      %p729 = por %p727, %p728
      %p730 = scmp.ne.s32.totalorder %s719, %s720
      %p731 = scmp.eq.s32.totalorder %s75, 0
      %p732 = por %p730, %p731
      %p733 = scmp.ne.s32.totalorder %s719, %s720
      %p734 = scmp.eq.s32.totalorder %s76, 3
      %p735 = por %p733, %p734
      %p737 = scmp.ne.s32.totalorder %s720, %s736
      %p738 = scmp.eq.s32.totalorder %s76, 0
      %p739 = por %p737, %p738
      %s740 = ssub.s32 %s78, %s85
      %p741 = scmp.eq.s32.totalorder %s740, 0
      %s743 = sadd.s32 %s742, 1
      %s744 = scalar_select %p741, %s742, %s743
      %p747 = pneg %p741
      %p748 = scmp.eq.s32.totalorder %s70, 3
      %p749 = por %p747, %p748
      %p750 = scmp.ne.s32.totalorder %s742, %s745
      %p751 = scmp.eq.s32.totalorder %s70, 0
      %p752 = por %p750, %p751
      %p753 = scmp.ne.s32.totalorder %s742, %s745
      %p754 = scmp.eq.s32.totalorder %s75, 3
      %p755 = por %p753, %p754
      %p756 = scmp.ne.s32.totalorder %s745, %s746
      %p757 = scmp.eq.s32.totalorder %s75, 0
      %p758 = por %p756, %p757
      %p759 = scmp.ne.s32.totalorder %s745, %s746
      %p760 = scmp.eq.s32.totalorder %s76, 3
      %p761 = por %p759, %p760
      %p763 = scmp.ne.s32.totalorder %s746, %s762
      %p764 = scmp.eq.s32.totalorder %s76, 0
      %p765 = por %p763, %p764
      %s766 = ssub.s32 %s78, %s85
      %p767 = scmp.eq.s32.totalorder %s766, 0
      %s769 = sadd.s32 %s768, 1
      %s770 = scalar_select %p767, %s768, %s769
      %p773 = pneg %p767
      %p774 = scmp.eq.s32.totalorder %s70, 3
      %p775 = por %p773, %p774
      %p776 = scmp.ne.s32.totalorder %s768, %s771
      %p777 = scmp.eq.s32.totalorder %s70, 0
      %p778 = por %p776, %p777
      %p779 = scmp.ne.s32.totalorder %s768, %s771
      %p780 = scmp.eq.s32.totalorder %s75, 3
      %p781 = por %p779, %p780
      %p782 = scmp.ne.s32.totalorder %s771, %s772
      %p783 = scmp.eq.s32.totalorder %s75, 0
      %p784 = por %p782, %p783
      %p785 = scmp.ne.s32.totalorder %s771, %s772
      %p786 = scmp.eq.s32.totalorder %s76, 3
      %p787 = por %p785, %p786
      %p789 = scmp.ne.s32.totalorder %s772, %s788
      %p790 = scmp.eq.s32.totalorder %s76, 0
      %p791 = por %p789, %p790
      %s792 = ssub.s32 %s78, %s85
      %p793 = scmp.eq.s32.totalorder %s792, 0
      %s795 = sadd.s32 %s794, 1
      %s796 = scalar_select %p793, %s794, %s795
      %p799 = pneg %p793
      %p800 = scmp.eq.s32.totalorder %s70, 3
      %p801 = por %p799, %p800
      %p802 = scmp.ne.s32.totalorder %s794, %s797
      %p803 = scmp.eq.s32.totalorder %s70, 0
      %p804 = por %p802, %p803
      %p805 = scmp.ne.s32.totalorder %s794, %s797
      %p806 = scmp.eq.s32.totalorder %s75, 3
      %p807 = por %p805, %p806
      %p808 = scmp.ne.s32.totalorder %s797, %s798
      %p809 = scmp.eq.s32.totalorder %s75, 0
      %p810 = por %p808, %p809
      %p811 = scmp.ne.s32.totalorder %s797, %s798
      %p812 = scmp.eq.s32.totalorder %s76, 3
      %p813 = por %p811, %p812
      %p815 = scmp.ne.s32.totalorder %s798, %s814
      %p816 = scmp.eq.s32.totalorder %s76, 0
      %p817 = por %p815, %p816
      %s818 = ssub.s32 %s78, %s85
      %p819 = scmp.eq.s32.totalorder %s818, 0
      %s821 = sadd.s32 %s820, 1
      %s822 = scalar_select %p819, %s820, %s821
      %p825 = pneg %p819
      %p826 = scmp.eq.s32.totalorder %s70, 3
      %p827 = por %p825, %p826
      %p828 = scmp.ne.s32.totalorder %s820, %s823
      %p829 = scmp.eq.s32.totalorder %s70, 0
      %p830 = por %p828, %p829
      %p831 = scmp.ne.s32.totalorder %s820, %s823
      %p832 = scmp.eq.s32.totalorder %s75, 3
      %p833 = por %p831, %p832
      %p834 = scmp.ne.s32.totalorder %s823, %s824
      %p835 = scmp.eq.s32.totalorder %s75, 0
      %p836 = por %p834, %p835
      %p837 = scmp.ne.s32.totalorder %s823, %s824
      %p838 = scmp.eq.s32.totalorder %s76, 3
      %p839 = por %p837, %p838
      %p841 = scmp.ne.s32.totalorder %s824, %s840
      %p842 = scmp.eq.s32.totalorder %s76, 0
      %p843 = por %p841, %p842
      %s844 = ssub.s32 %s78, %s85
      %p845 = scmp.eq.s32.totalorder %s844, 0
      %s847 = sadd.s32 %s846, 1
      %s848 = scalar_select %p845, %s846, %s847
      %p851 = pneg %p845
      %p852 = scmp.eq.s32.totalorder %s70, 3
      %p853 = por %p851, %p852
      %p854 = scmp.ne.s32.totalorder %s846, %s849
      %p855 = scmp.eq.s32.totalorder %s70, 0
      %p856 = por %p854, %p855
      %p857 = scmp.ne.s32.totalorder %s846, %s849
      %p858 = scmp.eq.s32.totalorder %s75, 3
      %p859 = por %p857, %p858
      %p860 = scmp.ne.s32.totalorder %s849, %s850
      %p861 = scmp.eq.s32.totalorder %s75, 0
      %p862 = por %p860, %p861
      %p863 = scmp.ne.s32.totalorder %s849, %s850
      %p864 = scmp.eq.s32.totalorder %s76, 3
      %p865 = por %p863, %p864
      %p867 = scmp.ne.s32.totalorder %s850, %s866
      %p868 = scmp.eq.s32.totalorder %s76, 0
      %p869 = por %p867, %p868
      %s870 = ssub.s32 %s77, %s89
      %p871 = scmp.eq.s32.totalorder %s870, 0
      %s873 = sadd.s32 %s872, 1
      %s874 = scalar_select %p871, %s872, %s873
      %p877 = pneg %p871
      %p878 = scmp.eq.s32.totalorder %s70, 3
      %p879 = por %p877, %p878
      %p880 = scmp.ne.s32.totalorder %s872, %s875
      %p881 = scmp.eq.s32.totalorder %s70, 0
      %p882 = por %p880, %p881
      %p883 = scmp.ne.s32.totalorder %s872, %s875
      %p884 = scmp.eq.s32.totalorder %s75, 3
      %p885 = por %p883, %p884
      %p886 = scmp.ne.s32.totalorder %s875, %s876
      %p887 = scmp.eq.s32.totalorder %s75, 0
      %p888 = por %p886, %p887
      %p889 = scmp.ne.s32.totalorder %s875, %s876
      %p890 = scmp.eq.s32.totalorder %s76, 3
      %p891 = por %p889, %p890
      %p893 = scmp.ne.s32.totalorder %s876, %s892
      %p894 = scmp.eq.s32.totalorder %s76, 0
      %p895 = por %p893, %p894
      %p896 = scmp.le.s32.totalorder 1, %s70
      %p897 = scmp.lt.s32.totalorder %s70, 5
      %p898 = pnand %p896, %p897
      %p899 = pneg %p898
      // Predicated region
      $region9: #{tpu_custom_call.1} parent=5 // pred_check
        _
      $region10: #{tpu_custom_call.1} parent=5 // pred_check_branch
        %901 = sbr.rel (%p898) target = $region12
      $region11: #{tpu_custom_call.1} parent=5 // pred_region
        %s902 = ssub.s32 %s70, 1
      $region12: #{tpu_custom_call.1} parent=5 // pred_fallthru
        _
      %p903 = scmp.lt.s32.totalorder %s70, 4
      // Predicated region
      $region13: #{tpu_custom_call.1} parent=5 // pred_check
        %p904 = pneg %p903
      $region14: #{tpu_custom_call.1} parent=5 // pred_check_branch
        %906 = sbr.rel (%p904) target = $region16
      $region15: #{tpu_custom_call.1} parent=5 // pred_region
        // Predicated region
        $region17: #{tpu_custom_call.1} parent=15 // pred_check
          %p907 = pneg %p102
        $region18: #{tpu_custom_call.1} parent=15 // pred_check_branch
          %909 = sbr.rel (%p907) target = $region20
        $region19: #{tpu_custom_call.1} parent=15 // pred_region
          %p910 = scmp.lt.s32.totalorder %s77, 1
          %s911 = scalar_select %p910, %s77, 1
          %s912 = smul.addr %s911, 2
          %s913 = smul.addr %s912, 8
          %s914 = scalar_lea.vmem %s1, %s913
        $region20: #{tpu_custom_call.1} parent=15 // pred_fallthru
          _
        // Predicated region
        $region21: #{tpu_custom_call.1} parent=15 // pred_check
          %p915 = pneg %p128
        $region22: #{tpu_custom_call.1} parent=15 // pred_check_branch
          %917 = sbr.rel (%p915) target = $region24
        $region23: #{tpu_custom_call.1} parent=15 // pred_region
          %p918 = scmp.lt.s32.totalorder %s77, 1
          %s919 = scalar_select %p918, %s77, 1
          %s920 = smul.addr %s919, 2
          %s921 = smul.addr %s920, 8
          %s922 = scalar_lea.vmem %s3, %s921
        $region24: #{tpu_custom_call.1} parent=15 // pred_fallthru
          _
        // Predicated region
        $region25: #{tpu_custom_call.1} parent=15 // pred_check
          %p923 = pneg %p154
        $region26: #{tpu_custom_call.1} parent=15 // pred_check_branch
          %925 = sbr.rel (%p923) target = $region28
        $region27: #{tpu_custom_call.1} parent=15 // pred_region
          %p926 = scmp.lt.s32.totalorder %s77, 1
          %s927 = scalar_select %p926, %s77, 1
          %s928 = smul.addr %s927, 2
          %s929 = smul.addr %s928, 8
          %s930 = scalar_lea.vmem %s5, %s929
        $region28: #{tpu_custom_call.1} parent=15 // pred_fallthru
          _
        // Predicated region
        $region29: #{tpu_custom_call.1} parent=15 // pred_check
          %p931 = pneg %p180
        $region30: #{tpu_custom_call.1} parent=15 // pred_check_branch
          %933 = sbr.rel (%p931) target = $region32
        $region31: #{tpu_custom_call.1} parent=15 // pred_region
          %p934 = scmp.lt.s32.totalorder %s77, 1
          %s935 = scalar_select %p934, %s77, 1
          %s936 = smul.addr %s935, 2
          %s937 = smul.addr %s936, 8
          %s938 = scalar_lea.vmem %s7, %s937
        $region32: #{tpu_custom_call.1} parent=15 // pred_fallthru
          _
        // Predicated region
        $region33: #{tpu_custom_call.1} parent=15 // pred_check
          %p939 = pneg %p206
        $region34: #{tpu_custom_call.1} parent=15 // pred_check_branch
          %941 = sbr.rel (%p939) target = $region36
        $region35: #{tpu_custom_call.1} parent=15 // pred_region
          %p942 = scmp.lt.s32.totalorder %s78, 1
          %s943 = scalar_select %p942, %s78, 1
          %s944 = smul.addr %s943, 16
          %s945 = smul.addr %s944, 4
          %s946 = scalar_lea.vmem %s9, %s945
        $region36: #{tpu_custom_call.1} parent=15 // pred_fallthru
          _
        // Predicated region
        $region37: #{tpu_custom_call.1} parent=15 // pred_check
          %p947 = pneg %p232
        $region38: #{tpu_custom_call.1} parent=15 // pred_check_branch
          %949 = sbr.rel (%p947) target = $region40
        $region39: #{tpu_custom_call.1} parent=15 // pred_region
          %p950 = scmp.lt.s32.totalorder %s78, 1
          %s951 = scalar_select %p950, %s78, 1
          %s952 = smul.addr %s951, 4
          %s953 = scalar_lea.vmem %s11, %s952
        $region40: #{tpu_custom_call.1} parent=15 // pred_fallthru
          _
        // Predicated region
        $region41: #{tpu_custom_call.1} parent=15 // pred_check
          %p954 = pneg %p258
        $region42: #{tpu_custom_call.1} parent=15 // pred_check_branch
          %956 = sbr.rel (%p954) target = $region44
        $region43: #{tpu_custom_call.1} parent=15 // pred_region
          %p957 = scmp.lt.s32.totalorder %s78, 1
          %s958 = scalar_select %p957, %s78, 1
          %s959 = smul.addr %s958, 16
          %s960 = smul.addr %s959, 4
          %s961 = scalar_lea.vmem %s13, %s960
        $region44: #{tpu_custom_call.1} parent=15 // pred_fallthru
          _
        // Predicated region
        $region45: #{tpu_custom_call.1} parent=15 // pred_check
          %p962 = pneg %p284
        $region46: #{tpu_custom_call.1} parent=15 // pred_check_branch
          %964 = sbr.rel (%p962) target = $region48
        $region47: #{tpu_custom_call.1} parent=15 // pred_region
          %p965 = scmp.lt.s32.totalorder %s78, 1
          %s966 = scalar_select %p965, %s78, 1
          %s967 = smul.addr %s966, 4
          %s968 = scalar_lea.vmem %s15, %s967
        $region48: #{tpu_custom_call.1} parent=15 // pred_fallthru
          _
        // Predicated region
        $region49: #{tpu_custom_call.1} parent=15 // pred_check
          %p969 = pneg %p310
        $region50: #{tpu_custom_call.1} parent=15 // pred_check_branch
          %971 = sbr.rel (%p969) target = $region52
        $region51: #{tpu_custom_call.1} parent=15 // pred_region
          %p972 = scmp.lt.s32.totalorder %s78, 1
          %s973 = scalar_select %p972, %s78, 1
          %s974 = smul.addr %s973, 16
          %s975 = smul.addr %s974, 4
          %s976 = scalar_lea.vmem %s17, %s975
        $region52: #{tpu_custom_call.1} parent=15 // pred_fallthru
          _
        // Predicated region
        $region53: #{tpu_custom_call.1} parent=15 // pred_check
          %p977 = pneg %p336
        $region54: #{tpu_custom_call.1} parent=15 // pred_check_branch
          %979 = sbr.rel (%p977) target = $region56
        $region55: #{tpu_custom_call.1} parent=15 // pred_region
          %p980 = scmp.lt.s32.totalorder %s78, 1
          %s981 = scalar_select %p980, %s78, 1
          %s982 = smul.addr %s981, 4
          %s983 = scalar_lea.vmem %s19, %s982
        $region56: #{tpu_custom_call.1} parent=15 // pred_fallthru
          _
        // Predicated region
        $region57: #{tpu_custom_call.1} parent=15 // pred_check
          %p984 = pneg %p362
        $region58: #{tpu_custom_call.1} parent=15 // pred_check_branch
          %986 = sbr.rel (%p984) target = $region60
        $region59: #{tpu_custom_call.1} parent=15 // pred_region
          %p987 = scmp.lt.s32.totalorder %s78, 1
          %s988 = scalar_select %p987, %s78, 1
          %s989 = smul.addr %s988, 4
          %s990 = smul.addr %s989, 4
          %s991 = scalar_lea.vmem %s21, %s990
        $region60: #{tpu_custom_call.1} parent=15 // pred_fallthru
          _
        // Predicated region
        $region61: #{tpu_custom_call.1} parent=15 // pred_check
          %p992 = pneg %p388
        $region62: #{tpu_custom_call.1} parent=15 // pred_check_branch
          %994 = sbr.rel (%p992) target = $region64
        $region63: #{tpu_custom_call.1} parent=15 // pred_region
          %p995 = scmp.lt.s32.totalorder %s78, 1
          %s996 = scalar_select %p995, %s78, 1
          %s997 = scalar_lea.vmem %s23, %s996
        $region64: #{tpu_custom_call.1} parent=15 // pred_fallthru
          _
        // Predicated region
        $region65: #{tpu_custom_call.1} parent=15 // pred_check
          %p998 = pneg %p414
        $region66: #{tpu_custom_call.1} parent=15 // pred_check_branch
          %1000 = sbr.rel (%p998) target = $region68
        $region67: #{tpu_custom_call.1} parent=15 // pred_region
          %p1001 = scmp.lt.s32.totalorder %s78, 1
          %s1002 = scalar_select %p1001, %s78, 1
          %s1003 = smul.addr %s1002, 16
          %s1004 = smul.addr %s1003, 4
          %s1005 = scalar_lea.vmem %s25, %s1004
        $region68: #{tpu_custom_call.1} parent=15 // pred_fallthru
          _
        // Predicated region
        $region69: #{tpu_custom_call.1} parent=15 // pred_check
          %p1006 = pneg %p440
        $region70: #{tpu_custom_call.1} parent=15 // pred_check_branch
          %1008 = sbr.rel (%p1006) target = $region72
        $region71: #{tpu_custom_call.1} parent=15 // pred_region
          %p1009 = scmp.lt.s32.totalorder %s78, 1
          %s1010 = scalar_select %p1009, %s78, 1
          %s1011 = smul.addr %s1010, 4
          %s1012 = scalar_lea.vmem %s27, %s1011
        $region72: #{tpu_custom_call.1} parent=15 // pred_fallthru
          _
        // Predicated region
        $region73: #{tpu_custom_call.1} parent=15 // pred_check
          %p1013 = pneg %p466
        $region74: #{tpu_custom_call.1} parent=15 // pred_check_branch
          %1015 = sbr.rel (%p1013) target = $region76
        $region75: #{tpu_custom_call.1} parent=15 // pred_region
          %p1016 = scmp.lt.s32.totalorder %s78, 1
          %s1017 = scalar_select %p1016, %s78, 1
          %s1018 = smul.addr %s1017, 16
          %s1019 = smul.addr %s1018, 4
          %s1020 = scalar_lea.vmem %s29, %s1019
        $region76: #{tpu_custom_call.1} parent=15 // pred_fallthru
          _
        // Predicated region
        $region77: #{tpu_custom_call.1} parent=15 // pred_check
          %p1021 = pneg %p492
        $region78: #{tpu_custom_call.1} parent=15 // pred_check_branch
          %1023 = sbr.rel (%p1021) target = $region80
        $region79: #{tpu_custom_call.1} parent=15 // pred_region
          %p1024 = scmp.lt.s32.totalorder %s78, 1
          %s1025 = scalar_select %p1024, %s78, 1
          %s1026 = smul.addr %s1025, 4
          %s1027 = scalar_lea.vmem %s31, %s1026
        $region80: #{tpu_custom_call.1} parent=15 // pred_fallthru
          _
        // Predicated region
        $region81: #{tpu_custom_call.1} parent=15 // pred_check
          %p1028 = pneg %p518
        $region82: #{tpu_custom_call.1} parent=15 // pred_check_branch
          %1030 = sbr.rel (%p1028) target = $region84
        $region83: #{tpu_custom_call.1} parent=15 // pred_region
          %p1031 = scmp.lt.s32.totalorder %s78, 1
          %s1032 = scalar_select %p1031, %s78, 1
          %s1033 = smul.addr %s1032, 16
          %s1034 = smul.addr %s1033, 4
          %s1035 = scalar_lea.vmem %s33, %s1034
        $region84: #{tpu_custom_call.1} parent=15 // pred_fallthru
          _
        // Predicated region
        $region85: #{tpu_custom_call.1} parent=15 // pred_check
          %p1036 = pneg %p544
        $region86: #{tpu_custom_call.1} parent=15 // pred_check_branch
          %1038 = sbr.rel (%p1036) target = $region88
        $region87: #{tpu_custom_call.1} parent=15 // pred_region
          %p1039 = scmp.lt.s32.totalorder %s78, 1
          %s1040 = scalar_select %p1039, %s78, 1
          %s1041 = smul.addr %s1040, 4
          %s1042 = scalar_lea.vmem %s35, %s1041
        $region88: #{tpu_custom_call.1} parent=15 // pred_fallthru
          _
        // Predicated region
        $region89: #{tpu_custom_call.1} parent=15 // pred_check
          %p1043 = pneg %p570
        $region90: #{tpu_custom_call.1} parent=15 // pred_check_branch
          %1045 = sbr.rel (%p1043) target = $region92
        $region91: #{tpu_custom_call.1} parent=15 // pred_region
          %p1046 = scmp.lt.s32.totalorder %s78, 1
          %s1047 = scalar_select %p1046, %s78, 1
          %s1048 = smul.addr %s1047, 4
          %s1049 = smul.addr %s1048, 4
          %s1050 = scalar_lea.vmem %s37, %s1049
        $region92: #{tpu_custom_call.1} parent=15 // pred_fallthru
          _
        // Predicated region
        $region93: #{tpu_custom_call.1} parent=15 // pred_check
          %p1051 = pneg %p596
        $region94: #{tpu_custom_call.1} parent=15 // pred_check_branch
          %1053 = sbr.rel (%p1051) target = $region96
        $region95: #{tpu_custom_call.1} parent=15 // pred_region
          %p1054 = scmp.lt.s32.totalorder %s78, 1
          %s1055 = scalar_select %p1054, %s78, 1
          %s1056 = scalar_lea.vmem %s39, %s1055
        $region96: #{tpu_custom_call.1} parent=15 // pred_fallthru
          _
        // Predicated region
        $region97: #{tpu_custom_call.1} parent=15 // pred_check
          %p1057 = pneg %p622
        $region98: #{tpu_custom_call.1} parent=15 // pred_check_branch
          %1059 = sbr.rel (%p1057) target = $region100
        $region99: #{tpu_custom_call.1} parent=15 // pred_region
          %p1060 = scmp.lt.s32.totalorder %s78, 1
          %s1061 = scalar_select %p1060, %s78, 1
          %s1062 = smul.addr %s1061, 4
          %s1063 = smul.addr %s1062, 4
          %s1064 = scalar_lea.vmem %s41, %s1063
        $region100: #{tpu_custom_call.1} parent=15 // pred_fallthru
          _
        // Predicated region
        $region101: #{tpu_custom_call.1} parent=15 // pred_check
          %p1065 = pneg %p648
        $region102: #{tpu_custom_call.1} parent=15 // pred_check_branch
          %1067 = sbr.rel (%p1065) target = $region104
        $region103: #{tpu_custom_call.1} parent=15 // pred_region
          %p1068 = scmp.lt.s32.totalorder %s78, 1
          %s1069 = scalar_select %p1068, %s78, 1
          %s1070 = scalar_lea.vmem %s43, %s1069
        $region104: #{tpu_custom_call.1} parent=15 // pred_fallthru
          _
        // Predicated region
        $region105: #{tpu_custom_call.1} parent=15 // pred_check
          %p1071 = pneg %p674
        $region106: #{tpu_custom_call.1} parent=15 // pred_check_branch
          %1073 = sbr.rel (%p1071) target = $region108
        $region107: #{tpu_custom_call.1} parent=15 // pred_region
          %p1074 = scmp.lt.s32.totalorder %s78, 1
          %s1075 = scalar_select %p1074, %s78, 1
          %s1076 = smul.addr %s1075, 8
          %s1077 = smul.addr %s1076, 4
          %s1078 = scalar_lea.vmem %s45, %s1077
        $region108: #{tpu_custom_call.1} parent=15 // pred_fallthru
          _
        // Predicated region
        $region109: #{tpu_custom_call.1} parent=15 // pred_check
          %p1079 = pneg %p700
        $region110: #{tpu_custom_call.1} parent=15 // pred_check_branch
          %1081 = sbr.rel (%p1079) target = $region112
        $region111: #{tpu_custom_call.1} parent=15 // pred_region
          %p1082 = scmp.lt.s32.totalorder %s78, 1
          %s1083 = scalar_select %p1082, %s78, 1
          %s1084 = scalar_lea.vmem %s47, %s1083
        $region112: #{tpu_custom_call.1} parent=15 // pred_fallthru
          _
        // Predicated region
        $region113: #{tpu_custom_call.1} parent=15 // pred_check
          %p1085 = pneg %p726
        $region114: #{tpu_custom_call.1} parent=15 // pred_check_branch
          %1087 = sbr.rel (%p1085) target = $region116
        $region115: #{tpu_custom_call.1} parent=15 // pred_region
          %p1088 = scmp.lt.s32.totalorder %s78, 1
          %s1089 = scalar_select %p1088, %s78, 1
          %s1090 = scalar_lea.vmem %s49, %s1089
        $region116: #{tpu_custom_call.1} parent=15 // pred_fallthru
          _
        // Predicated region
        $region117: #{tpu_custom_call.1} parent=15 // pred_check
          %p1091 = pneg %p752
        $region118: #{tpu_custom_call.1} parent=15 // pred_check_branch
          %1093 = sbr.rel (%p1091) target = $region120
        $region119: #{tpu_custom_call.1} parent=15 // pred_region
          %p1094 = scmp.lt.s32.totalorder %s78, 1
          %s1095 = scalar_select %p1094, %s78, 1
          %s1096 = scalar_lea.vmem %s51, %s1095
        $region120: #{tpu_custom_call.1} parent=15 // pred_fallthru
          _
        // Predicated region
        $region121: #{tpu_custom_call.1} parent=15 // pred_check
          %p1097 = pneg %p778
        $region122: #{tpu_custom_call.1} parent=15 // pred_check_branch
          %1099 = sbr.rel (%p1097) target = $region124
        $region123: #{tpu_custom_call.1} parent=15 // pred_region
          %p1100 = scmp.lt.s32.totalorder %s78, 1
          %s1101 = scalar_select %p1100, %s78, 1
          %s1102 = scalar_lea.vmem %s53, %s1101
        $region124: #{tpu_custom_call.1} parent=15 // pred_fallthru
          _
        // Predicated region
        $region125: #{tpu_custom_call.1} parent=15 // pred_check
          %p1103 = pneg %p804
        $region126: #{tpu_custom_call.1} parent=15 // pred_check_branch
          %1105 = sbr.rel (%p1103) target = $region128
        $region127: #{tpu_custom_call.1} parent=15 // pred_region
          %p1106 = scmp.lt.s32.totalorder %s78, 1
          %s1107 = scalar_select %p1106, %s78, 1
          %s1108 = scalar_lea.vmem %s55, %s1107
        $region128: #{tpu_custom_call.1} parent=15 // pred_fallthru
          _
        // Predicated region
        $region129: #{tpu_custom_call.1} parent=15 // pred_check
          %p1109 = pneg %p830
        $region130: #{tpu_custom_call.1} parent=15 // pred_check_branch
          %1111 = sbr.rel (%p1109) target = $region132
        $region131: #{tpu_custom_call.1} parent=15 // pred_region
          %p1112 = scmp.lt.s32.totalorder %s78, 1
          %s1113 = scalar_select %p1112, %s78, 1
          %s1114 = scalar_lea.vmem %s57, %s1113
        $region132: #{tpu_custom_call.1} parent=15 // pred_fallthru
          _
        // Predicated region
        $region133: #{tpu_custom_call.1} parent=15 // pred_check
          %p1115 = pneg %p856
        $region134: #{tpu_custom_call.1} parent=15 // pred_check_branch
          %1117 = sbr.rel (%p1115) target = $region136
        $region135: #{tpu_custom_call.1} parent=15 // pred_region
          %p1118 = scmp.lt.s32.totalorder %s78, 1
          %s1119 = scalar_select %p1118, %s78, 1
          %s1120 = scalar_lea.vmem %s59, %s1119
        $region136: #{tpu_custom_call.1} parent=15 // pred_fallthru
          _
      $region16: #{tpu_custom_call.1} parent=5 // pred_fallthru
        _
      %p1121 = scmp.le.s32.totalorder 1, %s70
      %p1122 = scmp.lt.s32.totalorder %s70, 5
      %p1123 = pnand %p1121, %p1122
      %p1124 = pneg %p1123
      // Predicated region
      $region137: #{tpu_custom_call.1} parent=5 // pred_check
        _
      $region138: #{tpu_custom_call.1} parent=5 // pred_check_branch
        %1126 = sbr.rel (%p1123) target = $region140
      $region139: #{tpu_custom_call.1} parent=5 // pred_region
        %s1127 = ssub.s32 %s70, 1
        %p1128 = scmp.lt.s32.totalorder %s79, 1
        %s1129 = scalar_select %p1128, %s79, 1
        %s1130 = smul.addr %s1129, 2
        %s1131 = smul.addr %s1130, 8
        %s1132 = scalar_lea.vmem %s1, %s1131
        %p1133 = pneg %p108
        %p1134 = pneg %p105
        %p1135 = scmp.lt.s32.totalorder %s79, 1
        %s1136 = scalar_select %p1135, %s79, 1
        %s1137 = smul.addr %s1136, 2
        %s1138 = smul.addr %s1137, 8
        %s1139 = scalar_lea.vmem %s3, %s1138
        %p1140 = pneg %p134
        %p1141 = pneg %p131
        %p1142 = scmp.lt.s32.totalorder %s79, 1
        %s1143 = scalar_select %p1142, %s79, 1
        %s1144 = smul.addr %s1143, 2
        %s1145 = smul.addr %s1144, 8
        %s1146 = scalar_lea.vmem %s5, %s1145
        %p1147 = pneg %p160
        %p1148 = pneg %p157
        %p1149 = scmp.lt.s32.totalorder %s79, 1
        %s1150 = scalar_select %p1149, %s79, 1
        %s1151 = smul.addr %s1150, 2
        %s1152 = smul.addr %s1151, 8
        %s1153 = scalar_lea.vmem %s7, %s1152
        %p1154 = pneg %p186
        %p1155 = pneg %p183
        %p1156 = scmp.lt.s32.totalorder %s80, 1
        %s1157 = scalar_select %p1156, %s80, 1
        %s1158 = smul.addr %s1157, 16
        %s1159 = smul.addr %s1158, 4
        %s1160 = scalar_lea.vmem %s9, %s1159
        %p1161 = pneg %p212
        %p1162 = pneg %p209
        %p1163 = scmp.lt.s32.totalorder %s80, 1
        %s1164 = scalar_select %p1163, %s80, 1
        %s1165 = smul.addr %s1164, 4
        %s1166 = scalar_lea.vmem %s11, %s1165
        %p1167 = pneg %p238
        %p1168 = pneg %p235
        %p1169 = scmp.lt.s32.totalorder %s80, 1
        %s1170 = scalar_select %p1169, %s80, 1
        %s1171 = smul.addr %s1170, 16
        %s1172 = smul.addr %s1171, 4
        %s1173 = scalar_lea.vmem %s13, %s1172
        %p1174 = pneg %p264
        %p1175 = pneg %p261
        %p1176 = scmp.lt.s32.totalorder %s80, 1
        %s1177 = scalar_select %p1176, %s80, 1
        %s1178 = smul.addr %s1177, 4
        %s1179 = scalar_lea.vmem %s15, %s1178
        %p1180 = pneg %p290
        %p1181 = pneg %p287
        %p1182 = scmp.lt.s32.totalorder %s80, 1
        %s1183 = scalar_select %p1182, %s80, 1
        %s1184 = smul.addr %s1183, 16
        %s1185 = smul.addr %s1184, 4
        %s1186 = scalar_lea.vmem %s17, %s1185
        %p1187 = pneg %p316
        %p1188 = pneg %p313
        %p1189 = scmp.lt.s32.totalorder %s80, 1
        %s1190 = scalar_select %p1189, %s80, 1
        %s1191 = smul.addr %s1190, 4
        %s1192 = scalar_lea.vmem %s19, %s1191
        %p1193 = pneg %p342
        %p1194 = pneg %p339
        %p1195 = scmp.lt.s32.totalorder %s80, 1
        %s1196 = scalar_select %p1195, %s80, 1
        %s1197 = smul.addr %s1196, 4
        %s1198 = smul.addr %s1197, 4
        %s1199 = scalar_lea.vmem %s21, %s1198
        %p1200 = pneg %p368
        %p1201 = pneg %p365
        %p1202 = scmp.lt.s32.totalorder %s80, 1
        %s1203 = scalar_select %p1202, %s80, 1
        %s1204 = scalar_lea.vmem %s23, %s1203
        %p1205 = pneg %p394
        %p1206 = pneg %p391
        %p1207 = scmp.lt.s32.totalorder %s80, 1
        %s1208 = scalar_select %p1207, %s80, 1
        %s1209 = smul.addr %s1208, 16
        %s1210 = smul.addr %s1209, 4
        %s1211 = scalar_lea.vmem %s25, %s1210
        %p1212 = pneg %p420
        %p1213 = pneg %p417
        %p1214 = scmp.lt.s32.totalorder %s80, 1
        %s1215 = scalar_select %p1214, %s80, 1
        %s1216 = smul.addr %s1215, 4
        %s1217 = scalar_lea.vmem %s27, %s1216
        %p1218 = pneg %p446
        %p1219 = pneg %p443
        %p1220 = scmp.lt.s32.totalorder %s80, 1
        %s1221 = scalar_select %p1220, %s80, 1
        %s1222 = smul.addr %s1221, 16
        %s1223 = smul.addr %s1222, 4
        %s1224 = scalar_lea.vmem %s29, %s1223
        %p1225 = pneg %p472
        %p1226 = pneg %p469
        %p1227 = scmp.lt.s32.totalorder %s80, 1
        %s1228 = scalar_select %p1227, %s80, 1
        %s1229 = smul.addr %s1228, 4
        %s1230 = scalar_lea.vmem %s31, %s1229
        %p1231 = pneg %p498
        %p1232 = pneg %p495
        %p1233 = scmp.lt.s32.totalorder %s80, 1
        %s1234 = scalar_select %p1233, %s80, 1
        %s1235 = smul.addr %s1234, 16
        %s1236 = smul.addr %s1235, 4
        %s1237 = scalar_lea.vmem %s33, %s1236
        %p1238 = pneg %p524
        %p1239 = pneg %p521
        %p1240 = scmp.lt.s32.totalorder %s80, 1
        %s1241 = scalar_select %p1240, %s80, 1
        %s1242 = smul.addr %s1241, 4
        %s1243 = scalar_lea.vmem %s35, %s1242
        %p1244 = pneg %p550
        %p1245 = pneg %p547
        %p1246 = scmp.lt.s32.totalorder %s80, 1
        %s1247 = scalar_select %p1246, %s80, 1
        %s1248 = smul.addr %s1247, 4
        %s1249 = smul.addr %s1248, 4
        %s1250 = scalar_lea.vmem %s37, %s1249
        %p1251 = pneg %p576
        %p1252 = pneg %p573
        %p1253 = scmp.lt.s32.totalorder %s80, 1
        %s1254 = scalar_select %p1253, %s80, 1
        %s1255 = scalar_lea.vmem %s39, %s1254
        %p1256 = pneg %p602
        %p1257 = pneg %p599
        %p1258 = scmp.lt.s32.totalorder %s80, 1
        %s1259 = scalar_select %p1258, %s80, 1
        %s1260 = smul.addr %s1259, 4
        %s1261 = smul.addr %s1260, 4
        %s1262 = scalar_lea.vmem %s41, %s1261
        %p1263 = pneg %p628
        %p1264 = pneg %p625
        %p1265 = scmp.lt.s32.totalorder %s80, 1
        %s1266 = scalar_select %p1265, %s80, 1
        %s1267 = scalar_lea.vmem %s43, %s1266
        %p1268 = pneg %p654
        %p1269 = pneg %p651
        %p1270 = scmp.lt.s32.totalorder %s80, 1
        %s1271 = scalar_select %p1270, %s80, 1
        %s1272 = smul.addr %s1271, 8
        %s1273 = smul.addr %s1272, 4
        %s1274 = scalar_lea.vmem %s45, %s1273
        %p1275 = pneg %p680
        %p1276 = pneg %p677
        %p1277 = scmp.lt.s32.totalorder %s80, 1
        %s1278 = scalar_select %p1277, %s80, 1
        %s1279 = scalar_lea.vmem %s47, %s1278
        %p1280 = pneg %p706
        %p1281 = pneg %p703
        %p1282 = scmp.lt.s32.totalorder %s80, 1
        %s1283 = scalar_select %p1282, %s80, 1
        %s1284 = scalar_lea.vmem %s49, %s1283
        %p1285 = pneg %p732
        %p1286 = pneg %p729
        %p1287 = scmp.lt.s32.totalorder %s80, 1
        %s1288 = scalar_select %p1287, %s80, 1
        %s1289 = scalar_lea.vmem %s51, %s1288
        %p1290 = pneg %p758
        %p1291 = pneg %p755
        %p1292 = scmp.lt.s32.totalorder %s80, 1
        %s1293 = scalar_select %p1292, %s80, 1
        %s1294 = scalar_lea.vmem %s53, %s1293
        %p1295 = pneg %p784
        %p1296 = pneg %p781
        %p1297 = scmp.lt.s32.totalorder %s80, 1
        %s1298 = scalar_select %p1297, %s80, 1
        %s1299 = scalar_lea.vmem %s55, %s1298
        %p1300 = pneg %p810
        %p1301 = pneg %p807
        %p1302 = scmp.lt.s32.totalorder %s80, 1
        %s1303 = scalar_select %p1302, %s80, 1
        %s1304 = scalar_lea.vmem %s57, %s1303
        %p1305 = pneg %p836
        %p1306 = pneg %p833
        %p1307 = scmp.lt.s32.totalorder %s80, 1
        %s1308 = scalar_select %p1307, %s80, 1
        %s1309 = scalar_lea.vmem %s59, %s1308
        %p1310 = pneg %p862
        %p1311 = pneg %p859
        %p1312 = pneg %p888
        %p1313 = pneg %p885
        %s1314 = sand.u32 %s875, 1
        %s1315 = scalar_lea.sflag [#allocation3], %s1314
        %s1316 = sand.u32 %s875, 1
        %s1317 = smul.addr %s1316, 16
        %s1318 = scalar_lea.vmem [#allocation2], %s1317
        %p1319 = scmp.lt.s32.totalorder %s79, 1
        %s1320 = scalar_select %p1319, %s79, 1
        %s1321 = smul.addr %s1320, 2
        %s1322 = smul.addr %s1321, 8
        %s1323 = scalar_lea.vmem %s1, %s1322
        %p1324 = scmp.lt.s32.totalorder %s79, 1
        %s1325 = scalar_select %p1324, %s79, 1
        %s1326 = smul.addr %s1325, 2
        %s1327 = smul.addr %s1326, 8
        %s1328 = scalar_lea.vmem %s3, %s1327
        %p1329 = scmp.lt.s32.totalorder %s79, 1
        %s1330 = scalar_select %p1329, %s79, 1
        %s1331 = smul.addr %s1330, 2
        %s1332 = smul.addr %s1331, 8
        %s1333 = scalar_lea.vmem %s5, %s1332
        %p1334 = scmp.lt.s32.totalorder %s79, 1
        %s1335 = scalar_select %p1334, %s79, 1
        %s1336 = smul.addr %s1335, 2
        %s1337 = smul.addr %s1336, 8
        %s1338 = scalar_lea.vmem %s7, %s1337
        %p1339 = scmp.lt.s32.totalorder %s80, 1
        %s1340 = scalar_select %p1339, %s80, 1
        %s1341 = smul.addr %s1340, 16
        %s1342 = smul.addr %s1341, 4
        %s1343 = scalar_lea.vmem %s9, %s1342
        %p1344 = scmp.lt.s32.totalorder %s80, 1
        %s1345 = scalar_select %p1344, %s80, 1
        %s1346 = smul.addr %s1345, 4
        %s1347 = scalar_lea.vmem %s11, %s1346
        %p1348 = scmp.lt.s32.totalorder %s80, 1
        %s1349 = scalar_select %p1348, %s80, 1
        %s1350 = smul.addr %s1349, 16
        %s1351 = smul.addr %s1350, 4
        %s1352 = scalar_lea.vmem %s13, %s1351
        %p1353 = scmp.lt.s32.totalorder %s80, 1
        %s1354 = scalar_select %p1353, %s80, 1
        %s1355 = smul.addr %s1354, 4
        %s1356 = scalar_lea.vmem %s15, %s1355
        %p1357 = scmp.lt.s32.totalorder %s80, 1
        %s1358 = scalar_select %p1357, %s80, 1
        %s1359 = smul.addr %s1358, 16
        %s1360 = smul.addr %s1359, 4
        %s1361 = scalar_lea.vmem %s17, %s1360
        %p1362 = scmp.lt.s32.totalorder %s80, 1
        %s1363 = scalar_select %p1362, %s80, 1
        %s1364 = smul.addr %s1363, 4
        %s1365 = scalar_lea.vmem %s19, %s1364
        %p1366 = scmp.lt.s32.totalorder %s80, 1
        %s1367 = scalar_select %p1366, %s80, 1
        %s1368 = smul.addr %s1367, 4
        %s1369 = smul.addr %s1368, 4
        %s1370 = scalar_lea.vmem %s21, %s1369
        %p1371 = scmp.lt.s32.totalorder %s80, 1
        %s1372 = scalar_select %p1371, %s80, 1
        %s1373 = scalar_lea.vmem %s23, %s1372
        %p1374 = scmp.lt.s32.totalorder %s80, 1
        %s1375 = scalar_select %p1374, %s80, 1
        %s1376 = smul.addr %s1375, 16
        %s1377 = smul.addr %s1376, 4
        %s1378 = scalar_lea.vmem %s25, %s1377
        %p1379 = scmp.lt.s32.totalorder %s80, 1
        %s1380 = scalar_select %p1379, %s80, 1
        %s1381 = smul.addr %s1380, 4
        %s1382 = scalar_lea.vmem %s27, %s1381
        %p1383 = scmp.lt.s32.totalorder %s80, 1
        %s1384 = scalar_select %p1383, %s80, 1
        %s1385 = smul.addr %s1384, 16
        %s1386 = smul.addr %s1385, 4
        %s1387 = scalar_lea.vmem %s29, %s1386
        %p1388 = scmp.lt.s32.totalorder %s80, 1
        %s1389 = scalar_select %p1388, %s80, 1
        %s1390 = smul.addr %s1389, 4
        %s1391 = scalar_lea.vmem %s31, %s1390
        %p1392 = scmp.lt.s32.totalorder %s80, 1
        %s1393 = scalar_select %p1392, %s80, 1
        %s1394 = smul.addr %s1393, 16
        %s1395 = smul.addr %s1394, 4
        %s1396 = scalar_lea.vmem %s33, %s1395
        %p1397 = scmp.lt.s32.totalorder %s80, 1
        %s1398 = scalar_select %p1397, %s80, 1
        %s1399 = smul.addr %s1398, 4
        %s1400 = scalar_lea.vmem %s35, %s1399
        %p1401 = scmp.lt.s32.totalorder %s80, 1
        %s1402 = scalar_select %p1401, %s80, 1
        %s1403 = smul.addr %s1402, 4
        %s1404 = smul.addr %s1403, 4
        %s1405 = scalar_lea.vmem %s37, %s1404
        %p1406 = scmp.lt.s32.totalorder %s80, 1
        %s1407 = scalar_select %p1406, %s80, 1
        %s1408 = scalar_lea.vmem %s39, %s1407
        %p1409 = scmp.lt.s32.totalorder %s80, 1
        %s1410 = scalar_select %p1409, %s80, 1
        %s1411 = smul.addr %s1410, 4
        %s1412 = smul.addr %s1411, 4
        %s1413 = scalar_lea.vmem %s41, %s1412
        %p1414 = scmp.lt.s32.totalorder %s80, 1
        %s1415 = scalar_select %p1414, %s80, 1
        %s1416 = scalar_lea.vmem %s43, %s1415
        %p1417 = scmp.lt.s32.totalorder %s80, 1
        %s1418 = scalar_select %p1417, %s80, 1
        %s1419 = smul.addr %s1418, 8
        %s1420 = smul.addr %s1419, 4
        %s1421 = scalar_lea.vmem %s45, %s1420
        %p1422 = scmp.lt.s32.totalorder %s80, 1
        %s1423 = scalar_select %p1422, %s80, 1
        %s1424 = scalar_lea.vmem %s47, %s1423
        %p1425 = scmp.lt.s32.totalorder %s80, 1
        %s1426 = scalar_select %p1425, %s80, 1
        %s1427 = scalar_lea.vmem %s49, %s1426
        %p1428 = scmp.lt.s32.totalorder %s80, 1
        %s1429 = scalar_select %p1428, %s80, 1
        %s1430 = scalar_lea.vmem %s51, %s1429
        %p1431 = scmp.lt.s32.totalorder %s80, 1
        %s1432 = scalar_select %p1431, %s80, 1
        %s1433 = scalar_lea.vmem %s53, %s1432
        %p1434 = scmp.lt.s32.totalorder %s80, 1
        %s1435 = scalar_select %p1434, %s80, 1
        %s1436 = scalar_lea.vmem %s55, %s1435
        %p1437 = scmp.lt.s32.totalorder %s80, 1
        %s1438 = scalar_select %p1437, %s80, 1
        %s1439 = scalar_lea.vmem %s57, %s1438
        %p1440 = scmp.lt.s32.totalorder %s80, 1
        %s1441 = scalar_select %p1440, %s80, 1
        %s1442 = scalar_lea.vmem %s59, %s1441
        %p1444 = scmp.eq.s32.totalorder %s80, 0
        // Predicated region
        $region141: #{tpu_custom_call.1} parent=139 // pred_check
          %p1445 = pneg %p1444
        $region142: #{tpu_custom_call.1} parent=139 // pred_check_branch
          %1447 = sbr.rel (%p1445) target = $region144
        $region143: #{tpu_custom_call.1} parent=139 // pred_region
          %v1448 = vld [vmem:[%s1323] sm:$0xff]
          %v1449 = vld [vmem:[%s1323 + $0x8] sm:$0xff]
          %vm1450 = vcmask 261120
          %1451 = vst.msk [vmem:[%s1318] sm:$0xff] %vm1450, %v1448
          %1452 = vst.msk [vmem:[%s1318 + $0x8] sm:$0xff] %vm1450, %v1449
        $region144: #{tpu_custom_call.1} parent=139 // pred_fallthru
          _
        %v1453 = vld [vmem:[%s1318] sm:$0xff]
        %v1454 = vld [vmem:[%s1318 + $0x8] sm:$0xff]
        %v1455 = vld [vmem:[%s1328] sm:$0xff]
        %v1456 = vld [vmem:[%s1328 + $0x8] sm:$0xff]
        %v1457 = vpack.c.bf16 %v1456, %v1455
        %v1458 = vpack.c.bf16 %v1454, %v1453
        %v1459 = vld [vmem:[%s1333] sm:$0xff]
        %v1460 = vld [vmem:[%s1333 + $0x8] sm:$0xff]
        %v1461 = vld [vmem:[%s1343] sm:$0xf]
        %v1462 = vld [vmem:[%s1343 + $0x4] sm:$0xf]
        %v1463 = vld [vmem:[%s1343 + $0x8] sm:$0xf]
        %v1464 = vld [vmem:[%s1343 + $0xc] sm:$0xf]
        %v1465 = vld [vmem:[%s1347] sm:$0x1]
        %v1467 = vlaneseq
        %v1468 = vshrl.u32 %v1467, 7
        %v1469 = vsub.s32 0, %v1468
        %v1470 = vrot.slane %v1465, %v1469
        %v1476 = vunpack.c.l.b16 %v1461
        %v1477 = vunpack.c.l.b16 %v1462
        %v1478 = vunpack.c.l.b16 %v1463
        %v1479 = vunpack.c.l.b16 %v1464
        %v1480 = vpack.c.b16 %v1477, %v1476
        %v1481 = vpack.c.b16 %v1479, %v1478
        %vm1484 = vcmask 261120
        %v1486 = vsel %vm1484, %v1458, 0
        %1488 = vmatprep.subr.bf16.mxu0 0
        %1489 = vmatpush1.bf16.msra.mxu0 0
        %1490 = vmatprep.subr.bf16.mxu0 0
        %1491 = vmatpush1.bf16.msra.mxu0 0
        %1492 = vmatprep.subr.bf16.mxu0 0
        %1493 = vmatpush1.bf16.msra.mxu0 0
        %1494 = vmatprep.subr.bf16.mxu0 0
        %1495 = vmatpush1.bf16.msra.mxu0 0
        %1496 = vmatprep.subr.bf16.mxu0 0
        %1497 = vmatpush1.bf16.msra.mxu0 0
        %1498 = vmatprep.subr.bf16.mxu0 0
        %1499 = vmatpush1.bf16.msra.mxu0 0
        %1500 = vmatprep.subr.bf16.mxu0 0
        %1501 = vmatpush1.bf16.msra.mxu0 %v1481
        %1502 = vmatprep.subr.bf16.mxu0 0
        %1503 = vmatpush1.bf16.msra.mxu0 %v1480
        %1504 = vmatprep.subr.bf16.mxu0 0
        %1505 = vmatpush2.bf16.msra.mxu0 0
        %1506 = vmatprep.subr.bf16.mxu0 0
        %1507 = vmatpush2.bf16.msra.mxu0 0
        %1508 = vmatprep.subr.bf16.mxu0 0
        %1509 = vmatpush2.bf16.msra.mxu0 0
        %1510 = vmatprep.subr.bf16.mxu0 0
        %1511 = vmatpush2.bf16.msra.mxu0 0
        %1512 = vmatprep.subr.bf16.mxu0 0
        %1513 = vmatpush2.bf16.msra.mxu0 0
        %1514 = vmatprep.subr.bf16.mxu0 0
        %1515 = vmatpush2.bf16.msra.mxu0 0
        %1516 = vmatprep.subr.bf16.mxu0 0
        %1517 = vmatpush2.bf16.msra.mxu0 0
        %1518 = vmatprep.subr.bf16.mxu0 0
        %1519 = vmatpush2.bf16.msra.mxu0 0
        %1520 = vmatprep.mubr.bf16.mxu0 0
        %1521 = vmatmul.mubr.bf16.gmra.mxu0 %v1486
        %v1522 = vpop.f32.mrf.mxu0
        %v1523 = vadd.f32 %v1470, %v1522
        %v1524 = vpop.f32.mrf.mxu0
        %v1525 = vpop.f32.mrf.mxu0
        %v1526 = vadd.f32 %v1470, %v1525
        %v1527 = vpop.f32.mrf.mxu0
        %1528 = vdwg.mxu0
        %v1529 = vld [vmem:[%s1352] sm:$0xf]
        %v1530 = vld [vmem:[%s1352 + $0x4] sm:$0xf]
        %v1531 = vld [vmem:[%s1352 + $0x8] sm:$0xf]
        %v1532 = vld [vmem:[%s1352 + $0xc] sm:$0xf]
        %v1533 = vld [vmem:[%s1356] sm:$0x1]
        %v1535 = vlaneseq
        %v1536 = vshrl.u32 %v1535, 7
        %v1537 = vsub.s32 0, %v1536
        %v1538 = vrot.slane %v1533, %v1537
        %v1544 = vunpack.c.l.b16 %v1529
        %v1545 = vunpack.c.l.b16 %v1530
        %v1546 = vunpack.c.l.b16 %v1531
        %v1547 = vunpack.c.l.b16 %v1532
        %v1548 = vpack.c.b16 %v1545, %v1544
        %v1549 = vpack.c.b16 %v1547, %v1546
        %1552 = vmatprep.subr.bf16.mxu0 0
        %1553 = vmatpush1.bf16.msra.mxu0 0
        %1554 = vmatprep.subr.bf16.mxu0 0
        %1555 = vmatpush1.bf16.msra.mxu0 0
        %1556 = vmatprep.subr.bf16.mxu0 0
        %1557 = vmatpush1.bf16.msra.mxu0 0
        %1558 = vmatprep.subr.bf16.mxu0 0
        %1559 = vmatpush1.bf16.msra.mxu0 0
        %1560 = vmatprep.subr.bf16.mxu0 0
        %1561 = vmatpush1.bf16.msra.mxu0 0
        %1562 = vmatprep.subr.bf16.mxu0 0
        %1563 = vmatpush1.bf16.msra.mxu0 0
        %1564 = vmatprep.subr.bf16.mxu0 0
        %1565 = vmatpush1.bf16.msra.mxu0 %v1549
        %1566 = vmatprep.subr.bf16.mxu0 0
        %1567 = vmatpush1.bf16.msra.mxu0 %v1548
        %1568 = vmatprep.subr.bf16.mxu0 0
        %1569 = vmatpush2.bf16.msra.mxu0 0
        %1570 = vmatprep.subr.bf16.mxu0 0
        %1571 = vmatpush2.bf16.msra.mxu0 0
        %1572 = vmatprep.subr.bf16.mxu0 0
        %1573 = vmatpush2.bf16.msra.mxu0 0
        %1574 = vmatprep.subr.bf16.mxu0 0
        %1575 = vmatpush2.bf16.msra.mxu0 0
        %1576 = vmatprep.subr.bf16.mxu0 0
        %1577 = vmatpush2.bf16.msra.mxu0 0
        %1578 = vmatprep.subr.bf16.mxu0 0
        %1579 = vmatpush2.bf16.msra.mxu0 0
        %1580 = vmatprep.subr.bf16.mxu0 0
        %1581 = vmatpush2.bf16.msra.mxu0 0
        %1582 = vmatprep.subr.bf16.mxu0 0
        %1583 = vmatpush2.bf16.msra.mxu0 0
        %1584 = vmatprep.mubr.bf16.mxu0 0
        %1585 = vmatmul.mubr.bf16.gmra.mxu0 %v1486
        %v1586 = vpop.f32.mrf.mxu0
        %v1587 = vadd.f32 %v1538, %v1586
        %v1588 = vpop.f32.mrf.mxu0
        %v1589 = vpop.f32.mrf.mxu0
        %v1590 = vadd.f32 %v1538, %v1589
        %v1591 = vpop.f32.mrf.mxu0
        %1592 = vdwg.mxu0
        %v1593 = vld [vmem:[%s1361] sm:$0xf]
        %v1594 = vld [vmem:[%s1361 + $0x4] sm:$0xf]
        %v1595 = vld [vmem:[%s1361 + $0x8] sm:$0xf]
        %v1596 = vld [vmem:[%s1361 + $0xc] sm:$0xf]
        %v1597 = vld [vmem:[%s1365] sm:$0x1]
        %v1599 = vlaneseq
        %v1600 = vshrl.u32 %v1599, 7
        %v1601 = vsub.s32 0, %v1600
        %v1602 = vrot.slane %v1597, %v1601
        %v1608 = vunpack.c.l.b16 %v1593
        %v1609 = vunpack.c.l.b16 %v1594
        %v1610 = vunpack.c.l.b16 %v1595
        %v1611 = vunpack.c.l.b16 %v1596
        %v1612 = vpack.c.b16 %v1609, %v1608
        %v1613 = vpack.c.b16 %v1611, %v1610
        %1616 = vmatprep.subr.bf16.mxu0 0
        %1617 = vmatpush1.bf16.msra.mxu0 0
        %1618 = vmatprep.subr.bf16.mxu0 0
        %1619 = vmatpush1.bf16.msra.mxu0 0
        %1620 = vmatprep.subr.bf16.mxu0 0
        %1621 = vmatpush1.bf16.msra.mxu0 0
        %1622 = vmatprep.subr.bf16.mxu0 0
        %1623 = vmatpush1.bf16.msra.mxu0 0
        %1624 = vmatprep.subr.bf16.mxu0 0
        %1625 = vmatpush1.bf16.msra.mxu0 0
        %1626 = vmatprep.subr.bf16.mxu0 0
        %1627 = vmatpush1.bf16.msra.mxu0 0
        %1628 = vmatprep.subr.bf16.mxu0 0
        %1629 = vmatpush1.bf16.msra.mxu0 %v1613
        %1630 = vmatprep.subr.bf16.mxu0 0
        %1631 = vmatpush1.bf16.msra.mxu0 %v1612
        %1632 = vmatprep.subr.bf16.mxu0 0
        %1633 = vmatpush2.bf16.msra.mxu0 0
        %1634 = vmatprep.subr.bf16.mxu0 0
        %1635 = vmatpush2.bf16.msra.mxu0 0
        %1636 = vmatprep.subr.bf16.mxu0 0
        %1637 = vmatpush2.bf16.msra.mxu0 0
        %1638 = vmatprep.subr.bf16.mxu0 0
        %1639 = vmatpush2.bf16.msra.mxu0 0
        %1640 = vmatprep.subr.bf16.mxu0 0
        %1641 = vmatpush2.bf16.msra.mxu0 0
        %1642 = vmatprep.subr.bf16.mxu0 0
        %1643 = vmatpush2.bf16.msra.mxu0 0
        %1644 = vmatprep.subr.bf16.mxu0 0
        %1645 = vmatpush2.bf16.msra.mxu0 0
        %1646 = vmatprep.subr.bf16.mxu0 0
        %1647 = vmatpush2.bf16.msra.mxu0 0
        %1648 = vmatprep.mubr.bf16.mxu0 0
        %1649 = vmatmul.mubr.bf16.gmra.mxu0 %v1486
        %v1650 = vpop.f32.mrf.mxu0
        %v1651 = vadd.f32 %v1602, %v1650
        %v1652 = vpop.f32.mrf.mxu0
        %v1653 = vpop.f32.mrf.mxu0
        %v1654 = vadd.f32 %v1602, %v1653
        %v1655 = vpop.f32.mrf.mxu0
        %1656 = vdwg.mxu0
        %v1657 = vpack.c.bf16 %v1526, %v1523
        %1658 = vxpose.xlu0.b32.start [1/16] %v1587, 128
        %1659 = vxpose.xlu0.b32.cont [2/16] %v1590, 128
        %1660 = vxpose.xlu0.b32.cont [3/16] 0.0, 128
        %1661 = vxpose.xlu0.b32.cont [4/16] 0.0, 128
        %1662 = vxpose.xlu0.b32.cont [5/16] 0.0, 128
        %1663 = vxpose.xlu0.b32.cont [6/16] 0.0, 128
        %1664 = vxpose.xlu0.b32.cont [7/16] 0.0, 128
        %1665 = vxpose.xlu0.b32.cont [8/16] 0.0, 128
        %1666 = vxpose.xlu0.b32.cont [9/16] 0.0, 128
        %1667 = vxpose.xlu0.b32.cont [10/16] 0.0, 128
        %1668 = vxpose.xlu0.b32.cont [11/16] 0.0, 128
        %1669 = vxpose.xlu0.b32.cont [12/16] 0.0, 128
        %1670 = vxpose.xlu0.b32.cont [13/16] 0.0, 128
        %1671 = vxpose.xlu0.b32.cont [14/16] 0.0, 128
        %1672 = vxpose.xlu0.b32.cont [15/16] 0.0, 128
        %1673 = vxpose.xlu0.b32.end [16/16] 0.0, 128
        %v1674 = vpop.trf.xlu0
        %v1675 = vpop.trf.xlu0
        %v1676 = vpop.trf.xlu0
        %v1677 = vpop.trf.xlu0
        %v1678 = vpop.trf.xlu0
        %v1679 = vpop.trf.xlu0
        %v1680 = vpop.trf.xlu0
        %v1681 = vpop.trf.xlu0
        %v1682 = vpop.trf.xlu0
        %v1683 = vpop.trf.xlu0
        %v1684 = vpop.trf.xlu0
        %v1685 = vpop.trf.xlu0
        %v1686 = vpop.trf.xlu0
        %v1687 = vpop.trf.xlu0
        %v1688 = vpop.trf.xlu0
        %v1689 = vpop.trf.xlu0
        %v1690 = vpack.c.bf16 %v1674, %v1674
        %vm1691 = vcmask 64512
        %v1693 = vsel %vm1691, %v1657, 0
        %vm1695 = vcmask 1043456
        %v1697 = vsel %vm1695, %v1690, 0
        %1699 = vmatprep.subr.bf16.mxu0 0
        %1700 = vmatpush1.bf16.msra.mxu0 0
        %1701 = vmatprep.subr.bf16.mxu0 0
        %1702 = vmatpush1.bf16.msra.mxu0 0
        %1703 = vmatprep.subr.bf16.mxu0 0
        %1704 = vmatpush1.bf16.msra.mxu0 0
        %1705 = vmatprep.subr.bf16.mxu0 0
        %1706 = vmatpush1.bf16.msra.mxu0 0
        %1707 = vmatprep.subr.bf16.mxu0 0
        %1708 = vmatpush1.bf16.msra.mxu0 0
        %1709 = vmatprep.subr.bf16.mxu0 0
        %1710 = vmatpush1.bf16.msra.mxu0 0
        %1711 = vmatprep.subr.bf16.mxu0 0
        %1712 = vmatpush1.bf16.msra.mxu0 0
        %1713 = vmatprep.subr.bf16.mxu0 0
        %1714 = vmatpush1.bf16.msra.mxu0 %v1697
        %1715 = vmatprep.subr.bf16.mxu0 0
        %1716 = vmatpush2.bf16.msra.mxu0 0
        %1717 = vmatprep.subr.bf16.mxu0 0
        %1718 = vmatpush2.bf16.msra.mxu0 0
        %1719 = vmatprep.subr.bf16.mxu0 0
        %1720 = vmatpush2.bf16.msra.mxu0 0
        %1721 = vmatprep.subr.bf16.mxu0 0
        %1722 = vmatpush2.bf16.msra.mxu0 0
        %1723 = vmatprep.subr.bf16.mxu0 0
        %1724 = vmatpush2.bf16.msra.mxu0 0
        %1725 = vmatprep.subr.bf16.mxu0 0
        %1726 = vmatpush2.bf16.msra.mxu0 0
        %1727 = vmatprep.subr.bf16.mxu0 0
        %1728 = vmatpush2.bf16.msra.mxu0 0
        %1729 = vmatprep.subr.bf16.mxu0 0
        %1730 = vmatpush2.bf16.msra.mxu0 0
        %1731 = vmatprep.mubr.bf16.mxu0 0
        %1732 = vmatmul.mubr.bf16.gmra.mxu0 %v1693
        %v1733 = vpop.f32.mrf.mxu0
        %v1734 = vadd.f32 0.0, %v1733
        %v1735 = vpop.f32.mrf.mxu0
        %v1736 = vpop.f32.mrf.mxu0
        %v1737 = vadd.f32 0.0, %v1736
        %v1738 = vpop.f32.mrf.mxu0
        %1739 = vdwg.mxu0
        %v1740 = vmul.f32 %v1734, 0.35355338
        %v1741 = vmul.f32 %v1737, 0.35355338
        %vm1742 = vcmp.gt.f32.partialorder %v1459, 0.0
        %vm1743 = vcmp.gt.f32.partialorder %v1460, 0.0
        %v1744 = vsel %vm1742, -1e+09, %v1740
        %v1745 = vsel %vm1743, -1e+09, %v1741
        %vm1746 = vcmask 130048
        %v1747 = vsel %vm1746, %v1744, -inf
        %1748 = vmax.xlane.f32.xlu0 %v1747
        %v1749 = vpop.xlane.xlu0 %1748
        %v1750 = vsel %vm1746, %v1745, -inf
        %1751 = vmax.xlane.f32.xlu0 %v1750
        %v1752 = vpop.xlane.xlu0 %1751
        %v1753 = vsub.f32 %v1744, %v1749
        %v1754 = vsub.f32 %v1745, %v1752
        %v1755 = vmul.f32 %v1753, 1.442695
        %v1756 = vpow.pop %v1755
        %v1757 = vmul.f32 %v1754, 1.442695
        %v1758 = vpow.pop %v1757
        %v1759 = vsel %vm1746, %v1756, 0.0
        %1760 = vadd.xlane.f32.xlu0 %v1759
        %v1761 = vpop.xlane.xlu0 %1760
        %v1762 = vsel %vm1746, %v1758, 0.0
        %1763 = vadd.xlane.f32.xlu0 %v1762
        %v1764 = vpop.xlane.xlu0 %1763
        %v1765 = vrcp.pop %v1761
        %v1766 = vrcp.pop %v1764
        %v1767 = vmul.f32 %v1756, %v1765
        %v1768 = vmul.f32 %v1758, %v1766
        %v1769 = vpack.c.bf16 %v1768, %v1767
        %v1770 = vpack.c.bf16 %v1654, %v1651
        %v1772 = vsel %vm1746, %v1769, 0
        %1774 = vmatprep.subr.bf16.mxu0 0
        %1775 = vmatpush1.bf16.msra.mxu0 0
        %1776 = vmatprep.subr.bf16.mxu0 0
        %1777 = vmatpush1.bf16.msra.mxu0 0
        %1778 = vmatprep.subr.bf16.mxu0 0
        %1779 = vmatpush1.bf16.msra.mxu0 0
        %1780 = vmatprep.subr.bf16.mxu0 0
        %1781 = vmatpush1.bf16.msra.mxu0 0
        %1782 = vmatprep.subr.bf16.mxu0 0
        %1783 = vmatpush1.bf16.msra.mxu0 0
        %1784 = vmatprep.subr.bf16.mxu0 0
        %1785 = vmatpush1.bf16.msra.mxu0 0
        %1786 = vmatprep.subr.bf16.mxu0 0
        %1787 = vmatpush1.bf16.msra.mxu0 0
        %1788 = vmatprep.subr.bf16.mxu0 0
        %1789 = vmatpush1.bf16.msra.mxu0 %v1770
        %1790 = vmatprep.subr.bf16.mxu0 0
        %1791 = vmatpush2.bf16.msra.mxu0 0
        %1792 = vmatprep.subr.bf16.mxu0 0
        %1793 = vmatpush2.bf16.msra.mxu0 0
        %1794 = vmatprep.subr.bf16.mxu0 0
        %1795 = vmatpush2.bf16.msra.mxu0 0
        %1796 = vmatprep.subr.bf16.mxu0 0
        %1797 = vmatpush2.bf16.msra.mxu0 0
        %1798 = vmatprep.subr.bf16.mxu0 0
        %1799 = vmatpush2.bf16.msra.mxu0 0
        %1800 = vmatprep.subr.bf16.mxu0 0
        %1801 = vmatpush2.bf16.msra.mxu0 0
        %1802 = vmatprep.subr.bf16.mxu0 0
        %1803 = vmatpush2.bf16.msra.mxu0 0
        %1804 = vmatprep.subr.bf16.mxu0 0
        %1805 = vmatpush2.bf16.msra.mxu0 0
        %1806 = vmatprep.mubr.bf16.mxu0 0
        %1807 = vmatmul.mubr.bf16.gmra.mxu0 %v1772
        %v1808 = vpop.f32.mrf.mxu0
        %v1809 = vadd.f32 0.0, %v1808
        %v1810 = vpop.f32.mrf.mxu0
        %v1811 = vpop.f32.mrf.mxu0
        %v1812 = vadd.f32 0.0, %v1811
        %v1813 = vpop.f32.mrf.mxu0
        %1814 = vdwg.mxu0
        %v1815 = vpack.c.bf16 %v1812, %v1809
        %v1816 = vld [vmem:[%s1370] sm:$0xf]
        %s1817 = scalar_lea.vmem %s1343, 16
        %v1818 = vld [vmem:[%s1817] sm:$0xf]
        %v1819 = vld [vmem:[%s1817 + $0x4] sm:$0xf]
        %v1820 = vld [vmem:[%s1817 + $0x8] sm:$0xf]
        %v1821 = vld [vmem:[%s1817 + $0xc] sm:$0xf]
        %s1822 = scalar_lea.vmem %s1347, 1
        %v1823 = vld [vmem:[%s1822] sm:$0x1]
        %v1825 = vlaneseq
        %v1826 = vshrl.u32 %v1825, 7
        %v1827 = vsub.s32 0, %v1826
        %v1828 = vrot.slane %v1823, %v1827
        %v1834 = vunpack.c.l.b16 %v1818
        %v1835 = vunpack.c.l.b16 %v1819
        %v1836 = vunpack.c.l.b16 %v1820
        %v1837 = vunpack.c.l.b16 %v1821
        %v1838 = vpack.c.b16 %v1835, %v1834
        %v1839 = vpack.c.b16 %v1837, %v1836
        %1842 = vmatprep.subr.bf16.mxu0 0
        %1843 = vmatpush1.bf16.msra.mxu0 0
        %1844 = vmatprep.subr.bf16.mxu0 0
        %1845 = vmatpush1.bf16.msra.mxu0 0
        %1846 = vmatprep.subr.bf16.mxu0 0
        %1847 = vmatpush1.bf16.msra.mxu0 0
        %1848 = vmatprep.subr.bf16.mxu0 0
        %1849 = vmatpush1.bf16.msra.mxu0 0
        %1850 = vmatprep.subr.bf16.mxu0 0
        %1851 = vmatpush1.bf16.msra.mxu0 0
        %1852 = vmatprep.subr.bf16.mxu0 0
        %1853 = vmatpush1.bf16.msra.mxu0 0
        %1854 = vmatprep.subr.bf16.mxu0 0
        %1855 = vmatpush1.bf16.msra.mxu0 %v1839
        %1856 = vmatprep.subr.bf16.mxu0 0
        %1857 = vmatpush1.bf16.msra.mxu0 %v1838
        %1858 = vmatprep.subr.bf16.mxu0 0
        %1859 = vmatpush2.bf16.msra.mxu0 0
        %1860 = vmatprep.subr.bf16.mxu0 0
        %1861 = vmatpush2.bf16.msra.mxu0 0
        %1862 = vmatprep.subr.bf16.mxu0 0
        %1863 = vmatpush2.bf16.msra.mxu0 0
        %1864 = vmatprep.subr.bf16.mxu0 0
        %1865 = vmatpush2.bf16.msra.mxu0 0
        %1866 = vmatprep.subr.bf16.mxu0 0
        %1867 = vmatpush2.bf16.msra.mxu0 0
        %1868 = vmatprep.subr.bf16.mxu0 0
        %1869 = vmatpush2.bf16.msra.mxu0 0
        %1870 = vmatprep.subr.bf16.mxu0 0
        %1871 = vmatpush2.bf16.msra.mxu0 0
        %1872 = vmatprep.subr.bf16.mxu0 0
        %1873 = vmatpush2.bf16.msra.mxu0 0
        %1874 = vmatprep.mubr.bf16.mxu0 0
        %1875 = vmatmul.mubr.bf16.gmra.mxu0 %v1486
        %v1876 = vpop.f32.mrf.mxu0
        %v1877 = vadd.f32 %v1828, %v1876
        %v1878 = vpop.f32.mrf.mxu0
        %v1879 = vpop.f32.mrf.mxu0
        %v1880 = vadd.f32 %v1828, %v1879
        %v1881 = vpop.f32.mrf.mxu0
        %1882 = vdwg.mxu0
        %s1883 = scalar_lea.vmem %s1352, 16
        %v1884 = vld [vmem:[%s1883] sm:$0xf]
        %v1885 = vld [vmem:[%s1883 + $0x4] sm:$0xf]
        %v1886 = vld [vmem:[%s1883 + $0x8] sm:$0xf]
        %v1887 = vld [vmem:[%s1883 + $0xc] sm:$0xf]
        %s1888 = scalar_lea.vmem %s1356, 1
        %v1889 = vld [vmem:[%s1888] sm:$0x1]
        %v1891 = vlaneseq
        %v1892 = vshrl.u32 %v1891, 7
        %v1893 = vsub.s32 0, %v1892
        %v1894 = vrot.slane %v1889, %v1893
        %v1900 = vunpack.c.l.b16 %v1884
        %v1901 = vunpack.c.l.b16 %v1885
        %v1902 = vunpack.c.l.b16 %v1886
        %v1903 = vunpack.c.l.b16 %v1887
        %v1904 = vpack.c.b16 %v1901, %v1900
        %v1905 = vpack.c.b16 %v1903, %v1902
        %1908 = vmatprep.subr.bf16.mxu0 0
        %1909 = vmatpush1.bf16.msra.mxu0 0
        %1910 = vmatprep.subr.bf16.mxu0 0
        %1911 = vmatpush1.bf16.msra.mxu0 0
        %1912 = vmatprep.subr.bf16.mxu0 0
        %1913 = vmatpush1.bf16.msra.mxu0 0
        %1914 = vmatprep.subr.bf16.mxu0 0
        %1915 = vmatpush1.bf16.msra.mxu0 0
        %1916 = vmatprep.subr.bf16.mxu0 0
        %1917 = vmatpush1.bf16.msra.mxu0 0
        %1918 = vmatprep.subr.bf16.mxu0 0
        %1919 = vmatpush1.bf16.msra.mxu0 0
        %1920 = vmatprep.subr.bf16.mxu0 0
        %1921 = vmatpush1.bf16.msra.mxu0 %v1905
        %1922 = vmatprep.subr.bf16.mxu0 0
        %1923 = vmatpush1.bf16.msra.mxu0 %v1904
        %1924 = vmatprep.subr.bf16.mxu0 0
        %1925 = vmatpush2.bf16.msra.mxu0 0
        %1926 = vmatprep.subr.bf16.mxu0 0
        %1927 = vmatpush2.bf16.msra.mxu0 0
        %1928 = vmatprep.subr.bf16.mxu0 0
        %1929 = vmatpush2.bf16.msra.mxu0 0
        %1930 = vmatprep.subr.bf16.mxu0 0
        %1931 = vmatpush2.bf16.msra.mxu0 0
        %1932 = vmatprep.subr.bf16.mxu0 0
        %1933 = vmatpush2.bf16.msra.mxu0 0
        %1934 = vmatprep.subr.bf16.mxu0 0
        %1935 = vmatpush2.bf16.msra.mxu0 0
        %1936 = vmatprep.subr.bf16.mxu0 0
        %1937 = vmatpush2.bf16.msra.mxu0 0
        %1938 = vmatprep.subr.bf16.mxu0 0
        %1939 = vmatpush2.bf16.msra.mxu0 0
        %1940 = vmatprep.mubr.bf16.mxu0 0
        %1941 = vmatmul.mubr.bf16.gmra.mxu0 %v1486
        %v1942 = vpop.f32.mrf.mxu0
        %v1943 = vadd.f32 %v1894, %v1942
        %v1944 = vpop.f32.mrf.mxu0
        %v1945 = vpop.f32.mrf.mxu0
        %v1946 = vadd.f32 %v1894, %v1945
        %v1947 = vpop.f32.mrf.mxu0
        %1948 = vdwg.mxu0
        %s1949 = scalar_lea.vmem %s1361, 16
        %v1950 = vld [vmem:[%s1949] sm:$0xf]
        %v1951 = vld [vmem:[%s1949 + $0x4] sm:$0xf]
        %v1952 = vld [vmem:[%s1949 + $0x8] sm:$0xf]
        %v1953 = vld [vmem:[%s1949 + $0xc] sm:$0xf]
        %s1954 = scalar_lea.vmem %s1365, 1
        %v1955 = vld [vmem:[%s1954] sm:$0x1]
        %v1957 = vlaneseq
        %v1958 = vshrl.u32 %v1957, 7
        %v1959 = vsub.s32 0, %v1958
        %v1960 = vrot.slane %v1955, %v1959
        %v1966 = vunpack.c.l.b16 %v1950
        %v1967 = vunpack.c.l.b16 %v1951
        %v1968 = vunpack.c.l.b16 %v1952
        %v1969 = vunpack.c.l.b16 %v1953
        %v1970 = vpack.c.b16 %v1967, %v1966
        %v1971 = vpack.c.b16 %v1969, %v1968
        %1974 = vmatprep.subr.bf16.mxu0 0
        %1975 = vmatpush1.bf16.msra.mxu0 0
        %1976 = vmatprep.subr.bf16.mxu0 0
        %1977 = vmatpush1.bf16.msra.mxu0 0
        %1978 = vmatprep.subr.bf16.mxu0 0
        %1979 = vmatpush1.bf16.msra.mxu0 0
        %1980 = vmatprep.subr.bf16.mxu0 0
        %1981 = vmatpush1.bf16.msra.mxu0 0
        %1982 = vmatprep.subr.bf16.mxu0 0
        %1983 = vmatpush1.bf16.msra.mxu0 0
        %1984 = vmatprep.subr.bf16.mxu0 0
        %1985 = vmatpush1.bf16.msra.mxu0 0
        %1986 = vmatprep.subr.bf16.mxu0 0
        %1987 = vmatpush1.bf16.msra.mxu0 %v1971
        %1988 = vmatprep.subr.bf16.mxu0 0
        %1989 = vmatpush1.bf16.msra.mxu0 %v1970
        %1990 = vmatprep.subr.bf16.mxu0 0
        %1991 = vmatpush2.bf16.msra.mxu0 0
        %1992 = vmatprep.subr.bf16.mxu0 0
        %1993 = vmatpush2.bf16.msra.mxu0 0
        %1994 = vmatprep.subr.bf16.mxu0 0
        %1995 = vmatpush2.bf16.msra.mxu0 0
        %1996 = vmatprep.subr.bf16.mxu0 0
        %1997 = vmatpush2.bf16.msra.mxu0 0
        %1998 = vmatprep.subr.bf16.mxu0 0
        %1999 = vmatpush2.bf16.msra.mxu0 0
        %2000 = vmatprep.subr.bf16.mxu0 0
        %2001 = vmatpush2.bf16.msra.mxu0 0
        %2002 = vmatprep.subr.bf16.mxu0 0
        %2003 = vmatpush2.bf16.msra.mxu0 0
        %2004 = vmatprep.subr.bf16.mxu0 0
        %2005 = vmatpush2.bf16.msra.mxu0 0
        %2006 = vmatprep.mubr.bf16.mxu0 0
        %2007 = vmatmul.mubr.bf16.gmra.mxu0 %v1486
        %v2008 = vpop.f32.mrf.mxu0
        %v2009 = vadd.f32 %v1960, %v2008
        %v2010 = vpop.f32.mrf.mxu0
        %v2011 = vpop.f32.mrf.mxu0
        %v2012 = vadd.f32 %v1960, %v2011
        %v2013 = vpop.f32.mrf.mxu0
        %2014 = vdwg.mxu0
        %v2015 = vpack.c.bf16 %v1880, %v1877
        %2016 = vxpose.xlu0.b32.start [1/16] %v1943, 128
        %2017 = vxpose.xlu0.b32.cont [2/16] %v1946, 128
        %2018 = vxpose.xlu0.b32.cont [3/16] 0.0, 128
        %2019 = vxpose.xlu0.b32.cont [4/16] 0.0, 128
        %2020 = vxpose.xlu0.b32.cont [5/16] 0.0, 128
        %2021 = vxpose.xlu0.b32.cont [6/16] 0.0, 128
        %2022 = vxpose.xlu0.b32.cont [7/16] 0.0, 128
        %2023 = vxpose.xlu0.b32.cont [8/16] 0.0, 128
        %2024 = vxpose.xlu0.b32.cont [9/16] 0.0, 128
        %2025 = vxpose.xlu0.b32.cont [10/16] 0.0, 128
        %2026 = vxpose.xlu0.b32.cont [11/16] 0.0, 128
        %2027 = vxpose.xlu0.b32.cont [12/16] 0.0, 128
        %2028 = vxpose.xlu0.b32.cont [13/16] 0.0, 128
        %2029 = vxpose.xlu0.b32.cont [14/16] 0.0, 128
        %2030 = vxpose.xlu0.b32.cont [15/16] 0.0, 128
        %2031 = vxpose.xlu0.b32.end [16/16] 0.0, 128
        %v2032 = vpop.trf.xlu0
        %v2033 = vpop.trf.xlu0
        %v2034 = vpop.trf.xlu0
        %v2035 = vpop.trf.xlu0
        %v2036 = vpop.trf.xlu0
        %v2037 = vpop.trf.xlu0
        %v2038 = vpop.trf.xlu0
        %v2039 = vpop.trf.xlu0
        %v2040 = vpop.trf.xlu0
        %v2041 = vpop.trf.xlu0
        %v2042 = vpop.trf.xlu0
        %v2043 = vpop.trf.xlu0
        %v2044 = vpop.trf.xlu0
        %v2045 = vpop.trf.xlu0
        %v2046 = vpop.trf.xlu0
        %v2047 = vpop.trf.xlu0
        %v2048 = vpack.c.bf16 %v2032, %v2032
        %v2050 = vsel %vm1691, %v2015, 0
        %v2053 = vsel %vm1695, %v2048, 0
        %2055 = vmatprep.subr.bf16.mxu0 0
        %2056 = vmatpush1.bf16.msra.mxu0 0
        %2057 = vmatprep.subr.bf16.mxu0 0
        %2058 = vmatpush1.bf16.msra.mxu0 0
        %2059 = vmatprep.subr.bf16.mxu0 0
        %2060 = vmatpush1.bf16.msra.mxu0 0
        %2061 = vmatprep.subr.bf16.mxu0 0
        %2062 = vmatpush1.bf16.msra.mxu0 0
        %2063 = vmatprep.subr.bf16.mxu0 0
        %2064 = vmatpush1.bf16.msra.mxu0 0
        %2065 = vmatprep.subr.bf16.mxu0 0
        %2066 = vmatpush1.bf16.msra.mxu0 0
        %2067 = vmatprep.subr.bf16.mxu0 0
        %2068 = vmatpush1.bf16.msra.mxu0 0
        %2069 = vmatprep.subr.bf16.mxu0 0
        %2070 = vmatpush1.bf16.msra.mxu0 %v2053
        %2071 = vmatprep.subr.bf16.mxu0 0
        %2072 = vmatpush2.bf16.msra.mxu0 0
        %2073 = vmatprep.subr.bf16.mxu0 0
        %2074 = vmatpush2.bf16.msra.mxu0 0
        %2075 = vmatprep.subr.bf16.mxu0 0
        %2076 = vmatpush2.bf16.msra.mxu0 0
        %2077 = vmatprep.subr.bf16.mxu0 0
        %2078 = vmatpush2.bf16.msra.mxu0 0
        %2079 = vmatprep.subr.bf16.mxu0 0
        %2080 = vmatpush2.bf16.msra.mxu0 0
        %2081 = vmatprep.subr.bf16.mxu0 0
        %2082 = vmatpush2.bf16.msra.mxu0 0
        %2083 = vmatprep.subr.bf16.mxu0 0
        %2084 = vmatpush2.bf16.msra.mxu0 0
        %2085 = vmatprep.subr.bf16.mxu0 0
        %2086 = vmatpush2.bf16.msra.mxu0 0
        %2087 = vmatprep.mubr.bf16.mxu0 0
        %2088 = vmatmul.mubr.bf16.gmra.mxu0 %v2050
        %v2089 = vpop.f32.mrf.mxu0
        %v2090 = vadd.f32 0.0, %v2089
        %v2091 = vpop.f32.mrf.mxu0
        %v2092 = vpop.f32.mrf.mxu0
        %v2093 = vadd.f32 0.0, %v2092
        %v2094 = vpop.f32.mrf.mxu0
        %2095 = vdwg.mxu0
        %v2096 = vmul.f32 %v2090, 0.35355338
        %v2097 = vmul.f32 %v2093, 0.35355338
        %v2098 = vsel %vm1742, -1e+09, %v2096
        %v2099 = vsel %vm1743, -1e+09, %v2097
        %v2100 = vsel %vm1746, %v2098, -inf
        %2101 = vmax.xlane.f32.xlu0 %v2100
        %v2102 = vpop.xlane.xlu0 %2101
        %v2103 = vsel %vm1746, %v2099, -inf
        %2104 = vmax.xlane.f32.xlu0 %v2103
        %v2105 = vpop.xlane.xlu0 %2104
        %v2106 = vsub.f32 %v2098, %v2102
        %v2107 = vsub.f32 %v2099, %v2105
        %v2108 = vmul.f32 %v2106, 1.442695
        %v2109 = vpow.pop %v2108
        %v2110 = vmul.f32 %v2107, 1.442695
        %v2111 = vpow.pop %v2110
        %v2112 = vsel %vm1746, %v2109, 0.0
        %2113 = vadd.xlane.f32.xlu0 %v2112
        %v2114 = vpop.xlane.xlu0 %2113
        %v2115 = vsel %vm1746, %v2111, 0.0
        %2116 = vadd.xlane.f32.xlu0 %v2115
        %v2117 = vpop.xlane.xlu0 %2116
        %v2118 = vrcp.pop %v2114
        %v2119 = vrcp.pop %v2117
        %v2120 = vmul.f32 %v2109, %v2118
        %v2121 = vmul.f32 %v2111, %v2119
        %v2122 = vpack.c.bf16 %v2121, %v2120
        %v2123 = vpack.c.bf16 %v2012, %v2009
        %v2125 = vsel %vm1746, %v2122, 0
        %2127 = vmatprep.subr.bf16.mxu0 0
        %2128 = vmatpush1.bf16.msra.mxu0 0
        %2129 = vmatprep.subr.bf16.mxu0 0
        %2130 = vmatpush1.bf16.msra.mxu0 0
        %2131 = vmatprep.subr.bf16.mxu0 0
        %2132 = vmatpush1.bf16.msra.mxu0 0
        %2133 = vmatprep.subr.bf16.mxu0 0
        %2134 = vmatpush1.bf16.msra.mxu0 0
        %2135 = vmatprep.subr.bf16.mxu0 0
        %2136 = vmatpush1.bf16.msra.mxu0 0
        %2137 = vmatprep.subr.bf16.mxu0 0
        %2138 = vmatpush1.bf16.msra.mxu0 0
        %2139 = vmatprep.subr.bf16.mxu0 0
        %2140 = vmatpush1.bf16.msra.mxu0 0
        %2141 = vmatprep.subr.bf16.mxu0 0
        %2142 = vmatpush1.bf16.msra.mxu0 %v2123
        %2143 = vmatprep.subr.bf16.mxu0 0
        %2144 = vmatpush2.bf16.msra.mxu0 0
        %2145 = vmatprep.subr.bf16.mxu0 0
        %2146 = vmatpush2.bf16.msra.mxu0 0
        %2147 = vmatprep.subr.bf16.mxu0 0
        %2148 = vmatpush2.bf16.msra.mxu0 0
        %2149 = vmatprep.subr.bf16.mxu0 0
        %2150 = vmatpush2.bf16.msra.mxu0 0
        %2151 = vmatprep.subr.bf16.mxu0 0
        %2152 = vmatpush2.bf16.msra.mxu0 0
        %2153 = vmatprep.subr.bf16.mxu0 0
        %2154 = vmatpush2.bf16.msra.mxu0 0
        %2155 = vmatprep.subr.bf16.mxu0 0
        %2156 = vmatpush2.bf16.msra.mxu0 0
        %2157 = vmatprep.subr.bf16.mxu0 0
        %2158 = vmatpush2.bf16.msra.mxu0 0
        %2159 = vmatprep.mubr.bf16.mxu0 0
        %2160 = vmatmul.mubr.bf16.gmra.mxu0 %v2125
        %v2161 = vpop.f32.mrf.mxu0
        %v2162 = vadd.f32 0.0, %v2161
        %v2163 = vpop.f32.mrf.mxu0
        %v2164 = vpop.f32.mrf.mxu0
        %v2165 = vadd.f32 0.0, %v2164
        %v2166 = vpop.f32.mrf.mxu0
        %2167 = vdwg.mxu0
        %v2168 = vpack.c.bf16 %v2165, %v2162
        %s2169 = scalar_lea.vmem %s1370, 4
        %v2170 = vld [vmem:[%s2169] sm:$0xf]
        %v2172 = vsel %vm1691, %v2168, 0
        %v2175 = vsel %vm1695, %v2170, 0
        %2177 = vmatprep.subr.bf16.mxu0 0
        %2178 = vmatpush1.bf16.msra.mxu0 0
        %2179 = vmatprep.subr.bf16.mxu0 0
        %2180 = vmatpush1.bf16.msra.mxu0 0
        %2181 = vmatprep.subr.bf16.mxu0 0
        %2182 = vmatpush1.bf16.msra.mxu0 0
        %2183 = vmatprep.subr.bf16.mxu0 0
        %2184 = vmatpush1.bf16.msra.mxu0 0
        %2185 = vmatprep.subr.bf16.mxu0 0
        %2186 = vmatpush1.bf16.msra.mxu0 0
        %2187 = vmatprep.subr.bf16.mxu0 0
        %2188 = vmatpush1.bf16.msra.mxu0 0
        %2189 = vmatprep.subr.bf16.mxu0 0
        %2190 = vmatpush1.bf16.msra.mxu0 0
        %2191 = vmatprep.subr.bf16.mxu0 0
        %2192 = vmatpush1.bf16.msra.mxu0 %v2175
        %2193 = vmatprep.subr.bf16.mxu0 0
        %2194 = vmatpush2.bf16.msra.mxu0 0
        %2195 = vmatprep.subr.bf16.mxu0 0
        %2196 = vmatpush2.bf16.msra.mxu0 0
        %2197 = vmatprep.subr.bf16.mxu0 0
        %2198 = vmatpush2.bf16.msra.mxu0 0
        %2199 = vmatprep.subr.bf16.mxu0 0
        %2200 = vmatpush2.bf16.msra.mxu0 0
        %2201 = vmatprep.subr.bf16.mxu0 0
        %2202 = vmatpush2.bf16.msra.mxu0 0
        %2203 = vmatprep.subr.bf16.mxu0 0
        %2204 = vmatpush2.bf16.msra.mxu0 0
        %2205 = vmatprep.subr.bf16.mxu0 0
        %2206 = vmatpush2.bf16.msra.mxu0 0
        %2207 = vmatprep.subr.bf16.mxu0 0
        %2208 = vmatpush2.bf16.msra.mxu0 0
        %2209 = vmatprep.mubr.bf16.mxu0 0
        %2210 = vmatmul.mubr.bf16.gmra.mxu0 %v2172
        %v2211 = vpop.f32.mrf.mxu0
        %v2212 = vadd.f32 0.0, %v2211
        %v2213 = vpop.f32.mrf.mxu0
        %v2214 = vpop.f32.mrf.mxu0
        %v2215 = vadd.f32 0.0, %v2214
        %v2216 = vpop.f32.mrf.mxu0
        %2217 = vdwg.mxu0
        %v2219 = vsel %vm1691, %v1815, 0
        %v2222 = vsel %vm1695, %v1816, 0
        %2224 = vmatprep.subr.bf16.mxu0 0
        %2225 = vmatpush1.bf16.msra.mxu0 0
        %2226 = vmatprep.subr.bf16.mxu0 0
        %2227 = vmatpush1.bf16.msra.mxu0 0
        %2228 = vmatprep.subr.bf16.mxu0 0
        %2229 = vmatpush1.bf16.msra.mxu0 0
        %2230 = vmatprep.subr.bf16.mxu0 0
        %2231 = vmatpush1.bf16.msra.mxu0 0
        %2232 = vmatprep.subr.bf16.mxu0 0
        %2233 = vmatpush1.bf16.msra.mxu0 0
        %2234 = vmatprep.subr.bf16.mxu0 0
        %2235 = vmatpush1.bf16.msra.mxu0 0
        %2236 = vmatprep.subr.bf16.mxu0 0
        %2237 = vmatpush1.bf16.msra.mxu0 0
        %2238 = vmatprep.subr.bf16.mxu0 0
        %2239 = vmatpush1.bf16.msra.mxu0 %v2222
        %2240 = vmatprep.subr.bf16.mxu0 0
        %2241 = vmatpush2.bf16.msra.mxu0 0
        %2242 = vmatprep.subr.bf16.mxu0 0
        %2243 = vmatpush2.bf16.msra.mxu0 0
        %2244 = vmatprep.subr.bf16.mxu0 0
        %2245 = vmatpush2.bf16.msra.mxu0 0
        %2246 = vmatprep.subr.bf16.mxu0 0
        %2247 = vmatpush2.bf16.msra.mxu0 0
        %2248 = vmatprep.subr.bf16.mxu0 0
        %2249 = vmatpush2.bf16.msra.mxu0 0
        %2250 = vmatprep.subr.bf16.mxu0 0
        %2251 = vmatpush2.bf16.msra.mxu0 0
        %2252 = vmatprep.subr.bf16.mxu0 0
        %2253 = vmatpush2.bf16.msra.mxu0 0
        %2254 = vmatprep.subr.bf16.mxu0 0
        %2255 = vmatpush2.bf16.msra.mxu0 0
        %2256 = vmatprep.mubr.bf16.mxu0 0
        %2257 = vmatmul.mubr.bf16.gmra.mxu0 %v2219
        %v2258 = vpop.f32.mrf.mxu0
        %v2259 = vadd.f32 %v2212, %v2258
        %v2260 = vpop.f32.mrf.mxu0
        %v2261 = vpop.f32.mrf.mxu0
        %v2262 = vadd.f32 %v2215, %v2261
        %v2263 = vpop.f32.mrf.mxu0
        %2264 = vdwg.mxu0
        %s2265 = scalar_lea.vmem %s1343, 32
        %v2266 = vld [vmem:[%s2265] sm:$0xf]
        %v2267 = vld [vmem:[%s2265 + $0x4] sm:$0xf]
        %v2268 = vld [vmem:[%s2265 + $0x8] sm:$0xf]
        %v2269 = vld [vmem:[%s2265 + $0xc] sm:$0xf]
        %s2270 = scalar_lea.vmem %s1347, 2
        %v2271 = vld [vmem:[%s2270] sm:$0x1]
        %v2273 = vlaneseq
        %v2274 = vshrl.u32 %v2273, 7
        %v2275 = vsub.s32 0, %v2274
        %v2276 = vrot.slane %v2271, %v2275
        %v2282 = vunpack.c.l.b16 %v2266
        %v2283 = vunpack.c.l.b16 %v2267
        %v2284 = vunpack.c.l.b16 %v2268
        %v2285 = vunpack.c.l.b16 %v2269
        %v2286 = vpack.c.b16 %v2283, %v2282
        %v2287 = vpack.c.b16 %v2285, %v2284
        %2290 = vmatprep.subr.bf16.mxu0 0
        %2291 = vmatpush1.bf16.msra.mxu0 0
        %2292 = vmatprep.subr.bf16.mxu0 0
        %2293 = vmatpush1.bf16.msra.mxu0 0
        %2294 = vmatprep.subr.bf16.mxu0 0
        %2295 = vmatpush1.bf16.msra.mxu0 0
        %2296 = vmatprep.subr.bf16.mxu0 0
        %2297 = vmatpush1.bf16.msra.mxu0 0
        %2298 = vmatprep.subr.bf16.mxu0 0
        %2299 = vmatpush1.bf16.msra.mxu0 0
        %2300 = vmatprep.subr.bf16.mxu0 0
        %2301 = vmatpush1.bf16.msra.mxu0 0
        %2302 = vmatprep.subr.bf16.mxu0 0
        %2303 = vmatpush1.bf16.msra.mxu0 %v2287
        %2304 = vmatprep.subr.bf16.mxu0 0
        %2305 = vmatpush1.bf16.msra.mxu0 %v2286
        %2306 = vmatprep.subr.bf16.mxu0 0
        %2307 = vmatpush2.bf16.msra.mxu0 0
        %2308 = vmatprep.subr.bf16.mxu0 0
        %2309 = vmatpush2.bf16.msra.mxu0 0
        %2310 = vmatprep.subr.bf16.mxu0 0
        %2311 = vmatpush2.bf16.msra.mxu0 0
        %2312 = vmatprep.subr.bf16.mxu0 0
        %2313 = vmatpush2.bf16.msra.mxu0 0
        %2314 = vmatprep.subr.bf16.mxu0 0
        %2315 = vmatpush2.bf16.msra.mxu0 0
        %2316 = vmatprep.subr.bf16.mxu0 0
        %2317 = vmatpush2.bf16.msra.mxu0 0
        %2318 = vmatprep.subr.bf16.mxu0 0
        %2319 = vmatpush2.bf16.msra.mxu0 0
        %2320 = vmatprep.subr.bf16.mxu0 0
        %2321 = vmatpush2.bf16.msra.mxu0 0
        %2322 = vmatprep.mubr.bf16.mxu0 0
        %2323 = vmatmul.mubr.bf16.gmra.mxu0 %v1486
        %v2324 = vpop.f32.mrf.mxu0
        %v2325 = vadd.f32 %v2276, %v2324
        %v2326 = vpop.f32.mrf.mxu0
        %v2327 = vpop.f32.mrf.mxu0
        %v2328 = vadd.f32 %v2276, %v2327
        %v2329 = vpop.f32.mrf.mxu0
        %2330 = vdwg.mxu0
        %s2331 = scalar_lea.vmem %s1352, 32
        %v2332 = vld [vmem:[%s2331] sm:$0xf]
        %v2333 = vld [vmem:[%s2331 + $0x4] sm:$0xf]
        %v2334 = vld [vmem:[%s2331 + $0x8] sm:$0xf]
        %v2335 = vld [vmem:[%s2331 + $0xc] sm:$0xf]
        %s2336 = scalar_lea.vmem %s1356, 2
        %v2337 = vld [vmem:[%s2336] sm:$0x1]
        %v2339 = vlaneseq
        %v2340 = vshrl.u32 %v2339, 7
        %v2341 = vsub.s32 0, %v2340
        %v2342 = vrot.slane %v2337, %v2341
        %v2348 = vunpack.c.l.b16 %v2332
        %v2349 = vunpack.c.l.b16 %v2333
        %v2350 = vunpack.c.l.b16 %v2334
        %v2351 = vunpack.c.l.b16 %v2335
        %v2352 = vpack.c.b16 %v2349, %v2348
        %v2353 = vpack.c.b16 %v2351, %v2350
        %2356 = vmatprep.subr.bf16.mxu0 0
        %2357 = vmatpush1.bf16.msra.mxu0 0
        %2358 = vmatprep.subr.bf16.mxu0 0
        %2359 = vmatpush1.bf16.msra.mxu0 0
        %2360 = vmatprep.subr.bf16.mxu0 0
        %2361 = vmatpush1.bf16.msra.mxu0 0
        %2362 = vmatprep.subr.bf16.mxu0 0
        %2363 = vmatpush1.bf16.msra.mxu0 0
        %2364 = vmatprep.subr.bf16.mxu0 0
        %2365 = vmatpush1.bf16.msra.mxu0 0
        %2366 = vmatprep.subr.bf16.mxu0 0
        %2367 = vmatpush1.bf16.msra.mxu0 0
        %2368 = vmatprep.subr.bf16.mxu0 0
        %2369 = vmatpush1.bf16.msra.mxu0 %v2353
        %2370 = vmatprep.subr.bf16.mxu0 0
        %2371 = vmatpush1.bf16.msra.mxu0 %v2352
        %2372 = vmatprep.subr.bf16.mxu0 0
        %2373 = vmatpush2.bf16.msra.mxu0 0
        %2374 = vmatprep.subr.bf16.mxu0 0
        %2375 = vmatpush2.bf16.msra.mxu0 0
        %2376 = vmatprep.subr.bf16.mxu0 0
        %2377 = vmatpush2.bf16.msra.mxu0 0
        %2378 = vmatprep.subr.bf16.mxu0 0
        %2379 = vmatpush2.bf16.msra.mxu0 0
        %2380 = vmatprep.subr.bf16.mxu0 0
        %2381 = vmatpush2.bf16.msra.mxu0 0
        %2382 = vmatprep.subr.bf16.mxu0 0
        %2383 = vmatpush2.bf16.msra.mxu0 0
        %2384 = vmatprep.subr.bf16.mxu0 0
        %2385 = vmatpush2.bf16.msra.mxu0 0
        %2386 = vmatprep.subr.bf16.mxu0 0
        %2387 = vmatpush2.bf16.msra.mxu0 0
        %2388 = vmatprep.mubr.bf16.mxu0 0
        %2389 = vmatmul.mubr.bf16.gmra.mxu0 %v1486
        %v2390 = vpop.f32.mrf.mxu0
        %v2391 = vadd.f32 %v2342, %v2390
        %v2392 = vpop.f32.mrf.mxu0
        %v2393 = vpop.f32.mrf.mxu0
        %v2394 = vadd.f32 %v2342, %v2393
        %v2395 = vpop.f32.mrf.mxu0
        %2396 = vdwg.mxu0
        %s2397 = scalar_lea.vmem %s1361, 32
        %v2398 = vld [vmem:[%s2397] sm:$0xf]
        %v2399 = vld [vmem:[%s2397 + $0x4] sm:$0xf]
        %v2400 = vld [vmem:[%s2397 + $0x8] sm:$0xf]
        %v2401 = vld [vmem:[%s2397 + $0xc] sm:$0xf]
        %s2402 = scalar_lea.vmem %s1365, 2
        %v2403 = vld [vmem:[%s2402] sm:$0x1]
        %v2405 = vlaneseq
        %v2406 = vshrl.u32 %v2405, 7
        %v2407 = vsub.s32 0, %v2406
        %v2408 = vrot.slane %v2403, %v2407
        %v2414 = vunpack.c.l.b16 %v2398
        %v2415 = vunpack.c.l.b16 %v2399
        %v2416 = vunpack.c.l.b16 %v2400
        %v2417 = vunpack.c.l.b16 %v2401
        %v2418 = vpack.c.b16 %v2415, %v2414
        %v2419 = vpack.c.b16 %v2417, %v2416
        %2422 = vmatprep.subr.bf16.mxu0 0
        %2423 = vmatpush1.bf16.msra.mxu0 0
        %2424 = vmatprep.subr.bf16.mxu0 0
        %2425 = vmatpush1.bf16.msra.mxu0 0
        %2426 = vmatprep.subr.bf16.mxu0 0
        %2427 = vmatpush1.bf16.msra.mxu0 0
        %2428 = vmatprep.subr.bf16.mxu0 0
        %2429 = vmatpush1.bf16.msra.mxu0 0
        %2430 = vmatprep.subr.bf16.mxu0 0
        %2431 = vmatpush1.bf16.msra.mxu0 0
        %2432 = vmatprep.subr.bf16.mxu0 0
        %2433 = vmatpush1.bf16.msra.mxu0 0
        %2434 = vmatprep.subr.bf16.mxu0 0
        %2435 = vmatpush1.bf16.msra.mxu0 %v2419
        %2436 = vmatprep.subr.bf16.mxu0 0
        %2437 = vmatpush1.bf16.msra.mxu0 %v2418
        %2438 = vmatprep.subr.bf16.mxu0 0
        %2439 = vmatpush2.bf16.msra.mxu0 0
        %2440 = vmatprep.subr.bf16.mxu0 0
        %2441 = vmatpush2.bf16.msra.mxu0 0
        %2442 = vmatprep.subr.bf16.mxu0 0
        %2443 = vmatpush2.bf16.msra.mxu0 0
        %2444 = vmatprep.subr.bf16.mxu0 0
        %2445 = vmatpush2.bf16.msra.mxu0 0
        %2446 = vmatprep.subr.bf16.mxu0 0
        %2447 = vmatpush2.bf16.msra.mxu0 0
        %2448 = vmatprep.subr.bf16.mxu0 0
        %2449 = vmatpush2.bf16.msra.mxu0 0
        %2450 = vmatprep.subr.bf16.mxu0 0
        %2451 = vmatpush2.bf16.msra.mxu0 0
        %2452 = vmatprep.subr.bf16.mxu0 0
        %2453 = vmatpush2.bf16.msra.mxu0 0
        %2454 = vmatprep.mubr.bf16.mxu0 0
        %2455 = vmatmul.mubr.bf16.gmra.mxu0 %v1486
        %v2456 = vpop.f32.mrf.mxu0
        %v2457 = vadd.f32 %v2408, %v2456
        %v2458 = vpop.f32.mrf.mxu0
        %v2459 = vpop.f32.mrf.mxu0
        %v2460 = vadd.f32 %v2408, %v2459
        %v2461 = vpop.f32.mrf.mxu0
        %2462 = vdwg.mxu0
        %v2463 = vpack.c.bf16 %v2328, %v2325
        %2464 = vxpose.xlu0.b32.start [1/16] %v2391, 128
        %2465 = vxpose.xlu0.b32.cont [2/16] %v2394, 128
        %2466 = vxpose.xlu0.b32.cont [3/16] 0.0, 128
        %2467 = vxpose.xlu0.b32.cont [4/16] 0.0, 128
        %2468 = vxpose.xlu0.b32.cont [5/16] 0.0, 128
        %2469 = vxpose.xlu0.b32.cont [6/16] 0.0, 128
        %2470 = vxpose.xlu0.b32.cont [7/16] 0.0, 128
        %2471 = vxpose.xlu0.b32.cont [8/16] 0.0, 128
        %2472 = vxpose.xlu0.b32.cont [9/16] 0.0, 128
        %2473 = vxpose.xlu0.b32.cont [10/16] 0.0, 128
        %2474 = vxpose.xlu0.b32.cont [11/16] 0.0, 128
        %2475 = vxpose.xlu0.b32.cont [12/16] 0.0, 128
        %2476 = vxpose.xlu0.b32.cont [13/16] 0.0, 128
        %2477 = vxpose.xlu0.b32.cont [14/16] 0.0, 128
        %2478 = vxpose.xlu0.b32.cont [15/16] 0.0, 128
        %2479 = vxpose.xlu0.b32.end [16/16] 0.0, 128
        %v2480 = vpop.trf.xlu0
        %v2481 = vpop.trf.xlu0
        %v2482 = vpop.trf.xlu0
        %v2483 = vpop.trf.xlu0
        %v2484 = vpop.trf.xlu0
        %v2485 = vpop.trf.xlu0
        %v2486 = vpop.trf.xlu0
        %v2487 = vpop.trf.xlu0
        %v2488 = vpop.trf.xlu0
        %v2489 = vpop.trf.xlu0
        %v2490 = vpop.trf.xlu0
        %v2491 = vpop.trf.xlu0
        %v2492 = vpop.trf.xlu0
        %v2493 = vpop.trf.xlu0
        %v2494 = vpop.trf.xlu0
        %v2495 = vpop.trf.xlu0
        %v2496 = vpack.c.bf16 %v2480, %v2480
        %v2498 = vsel %vm1691, %v2463, 0
        %v2501 = vsel %vm1695, %v2496, 0
        %2503 = vmatprep.subr.bf16.mxu0 0
        %2504 = vmatpush1.bf16.msra.mxu0 0
        %2505 = vmatprep.subr.bf16.mxu0 0
        %2506 = vmatpush1.bf16.msra.mxu0 0
        %2507 = vmatprep.subr.bf16.mxu0 0
        %2508 = vmatpush1.bf16.msra.mxu0 0
        %2509 = vmatprep.subr.bf16.mxu0 0
        %2510 = vmatpush1.bf16.msra.mxu0 0
        %2511 = vmatprep.subr.bf16.mxu0 0
        %2512 = vmatpush1.bf16.msra.mxu0 0
        %2513 = vmatprep.subr.bf16.mxu0 0
        %2514 = vmatpush1.bf16.msra.mxu0 0
        %2515 = vmatprep.subr.bf16.mxu0 0
        %2516 = vmatpush1.bf16.msra.mxu0 0
        %2517 = vmatprep.subr.bf16.mxu0 0
        %2518 = vmatpush1.bf16.msra.mxu0 %v2501
        %2519 = vmatprep.subr.bf16.mxu0 0
        %2520 = vmatpush2.bf16.msra.mxu0 0
        %2521 = vmatprep.subr.bf16.mxu0 0
        %2522 = vmatpush2.bf16.msra.mxu0 0
        %2523 = vmatprep.subr.bf16.mxu0 0
        %2524 = vmatpush2.bf16.msra.mxu0 0
        %2525 = vmatprep.subr.bf16.mxu0 0
        %2526 = vmatpush2.bf16.msra.mxu0 0
        %2527 = vmatprep.subr.bf16.mxu0 0
        %2528 = vmatpush2.bf16.msra.mxu0 0
        %2529 = vmatprep.subr.bf16.mxu0 0
        %2530 = vmatpush2.bf16.msra.mxu0 0
        %2531 = vmatprep.subr.bf16.mxu0 0
        %2532 = vmatpush2.bf16.msra.mxu0 0
        %2533 = vmatprep.subr.bf16.mxu0 0
        %2534 = vmatpush2.bf16.msra.mxu0 0
        %2535 = vmatprep.mubr.bf16.mxu0 0
        %2536 = vmatmul.mubr.bf16.gmra.mxu0 %v2498
        %v2537 = vpop.f32.mrf.mxu0
        %v2538 = vadd.f32 0.0, %v2537
        %v2539 = vpop.f32.mrf.mxu0
        %v2540 = vpop.f32.mrf.mxu0
        %v2541 = vadd.f32 0.0, %v2540
        %v2542 = vpop.f32.mrf.mxu0
        %2543 = vdwg.mxu0
        %v2544 = vmul.f32 %v2538, 0.35355338
        %v2545 = vmul.f32 %v2541, 0.35355338
        %v2546 = vsel %vm1742, -1e+09, %v2544
        %v2547 = vsel %vm1743, -1e+09, %v2545
        %v2548 = vsel %vm1746, %v2546, -inf
        %2549 = vmax.xlane.f32.xlu0 %v2548
        %v2550 = vpop.xlane.xlu0 %2549
        %v2551 = vsel %vm1746, %v2547, -inf
        %2552 = vmax.xlane.f32.xlu0 %v2551
        %v2553 = vpop.xlane.xlu0 %2552
        %v2554 = vsub.f32 %v2546, %v2550
        %v2555 = vsub.f32 %v2547, %v2553
        %v2556 = vmul.f32 %v2554, 1.442695
        %v2557 = vpow.pop %v2556
        %v2558 = vmul.f32 %v2555, 1.442695
        %v2559 = vpow.pop %v2558
        %v2560 = vsel %vm1746, %v2557, 0.0
        %2561 = vadd.xlane.f32.xlu0 %v2560
        %v2562 = vpop.xlane.xlu0 %2561
        %v2563 = vsel %vm1746, %v2559, 0.0
        %2564 = vadd.xlane.f32.xlu0 %v2563
        %v2565 = vpop.xlane.xlu0 %2564
        %v2566 = vrcp.pop %v2562
        %v2567 = vrcp.pop %v2565
        %v2568 = vmul.f32 %v2557, %v2566
        %v2569 = vmul.f32 %v2559, %v2567
        %v2570 = vpack.c.bf16 %v2569, %v2568
        %v2571 = vpack.c.bf16 %v2460, %v2457
        %v2573 = vsel %vm1746, %v2570, 0
        %2575 = vmatprep.subr.bf16.mxu0 0
        %2576 = vmatpush1.bf16.msra.mxu0 0
        %2577 = vmatprep.subr.bf16.mxu0 0
        %2578 = vmatpush1.bf16.msra.mxu0 0
        %2579 = vmatprep.subr.bf16.mxu0 0
        %2580 = vmatpush1.bf16.msra.mxu0 0
        %2581 = vmatprep.subr.bf16.mxu0 0
        %2582 = vmatpush1.bf16.msra.mxu0 0
        %2583 = vmatprep.subr.bf16.mxu0 0
        %2584 = vmatpush1.bf16.msra.mxu0 0
        %2585 = vmatprep.subr.bf16.mxu0 0
        %2586 = vmatpush1.bf16.msra.mxu0 0
        %2587 = vmatprep.subr.bf16.mxu0 0
        %2588 = vmatpush1.bf16.msra.mxu0 0
        %2589 = vmatprep.subr.bf16.mxu0 0
        %2590 = vmatpush1.bf16.msra.mxu0 %v2571
        %2591 = vmatprep.subr.bf16.mxu0 0
        %2592 = vmatpush2.bf16.msra.mxu0 0
        %2593 = vmatprep.subr.bf16.mxu0 0
        %2594 = vmatpush2.bf16.msra.mxu0 0
        %2595 = vmatprep.subr.bf16.mxu0 0
        %2596 = vmatpush2.bf16.msra.mxu0 0
        %2597 = vmatprep.subr.bf16.mxu0 0
        %2598 = vmatpush2.bf16.msra.mxu0 0
        %2599 = vmatprep.subr.bf16.mxu0 0
        %2600 = vmatpush2.bf16.msra.mxu0 0
        %2601 = vmatprep.subr.bf16.mxu0 0
        %2602 = vmatpush2.bf16.msra.mxu0 0
        %2603 = vmatprep.subr.bf16.mxu0 0
        %2604 = vmatpush2.bf16.msra.mxu0 0
        %2605 = vmatprep.subr.bf16.mxu0 0
        %2606 = vmatpush2.bf16.msra.mxu0 0
        %2607 = vmatprep.mubr.bf16.mxu0 0
        %2608 = vmatmul.mubr.bf16.gmra.mxu0 %v2573
        %v2609 = vpop.f32.mrf.mxu0
        %v2610 = vadd.f32 0.0, %v2609
        %v2611 = vpop.f32.mrf.mxu0
        %v2612 = vpop.f32.mrf.mxu0
        %v2613 = vadd.f32 0.0, %v2612
        %v2614 = vpop.f32.mrf.mxu0
        %2615 = vdwg.mxu0
        %v2616 = vpack.c.bf16 %v2613, %v2610
        %s2617 = scalar_lea.vmem %s1370, 8
        %v2618 = vld [vmem:[%s2617] sm:$0xf]
        %v2620 = vsel %vm1691, %v2616, 0
        %v2623 = vsel %vm1695, %v2618, 0
        %2625 = vmatprep.subr.bf16.mxu0 0
        %2626 = vmatpush1.bf16.msra.mxu0 0
        %2627 = vmatprep.subr.bf16.mxu0 0
        %2628 = vmatpush1.bf16.msra.mxu0 0
        %2629 = vmatprep.subr.bf16.mxu0 0
        %2630 = vmatpush1.bf16.msra.mxu0 0
        %2631 = vmatprep.subr.bf16.mxu0 0
        %2632 = vmatpush1.bf16.msra.mxu0 0
        %2633 = vmatprep.subr.bf16.mxu0 0
        %2634 = vmatpush1.bf16.msra.mxu0 0
        %2635 = vmatprep.subr.bf16.mxu0 0
        %2636 = vmatpush1.bf16.msra.mxu0 0
        %2637 = vmatprep.subr.bf16.mxu0 0
        %2638 = vmatpush1.bf16.msra.mxu0 0
        %2639 = vmatprep.subr.bf16.mxu0 0
        %2640 = vmatpush1.bf16.msra.mxu0 %v2623
        %2641 = vmatprep.subr.bf16.mxu0 0
        %2642 = vmatpush2.bf16.msra.mxu0 0
        %2643 = vmatprep.subr.bf16.mxu0 0
        %2644 = vmatpush2.bf16.msra.mxu0 0
        %2645 = vmatprep.subr.bf16.mxu0 0
        %2646 = vmatpush2.bf16.msra.mxu0 0
        %2647 = vmatprep.subr.bf16.mxu0 0
        %2648 = vmatpush2.bf16.msra.mxu0 0
        %2649 = vmatprep.subr.bf16.mxu0 0
        %2650 = vmatpush2.bf16.msra.mxu0 0
        %2651 = vmatprep.subr.bf16.mxu0 0
        %2652 = vmatpush2.bf16.msra.mxu0 0
        %2653 = vmatprep.subr.bf16.mxu0 0
        %2654 = vmatpush2.bf16.msra.mxu0 0
        %2655 = vmatprep.subr.bf16.mxu0 0
        %2656 = vmatpush2.bf16.msra.mxu0 0
        %2657 = vmatprep.mubr.bf16.mxu0 0
        %2658 = vmatmul.mubr.bf16.gmra.mxu0 %v2620
        %v2659 = vpop.f32.mrf.mxu0
        %v2660 = vadd.f32 0.0, %v2659
        %v2661 = vpop.f32.mrf.mxu0
        %v2662 = vpop.f32.mrf.mxu0
        %v2663 = vadd.f32 0.0, %v2662
        %v2664 = vpop.f32.mrf.mxu0
        %2665 = vdwg.mxu0
        %v2666 = vadd.f32 %v2259, %v2660
        %v2667 = vadd.f32 %v2262, %v2663
        %s2668 = scalar_lea.vmem %s1343, 48
        %v2669 = vld [vmem:[%s2668] sm:$0xf]
        %v2670 = vld [vmem:[%s2668 + $0x4] sm:$0xf]
        %v2671 = vld [vmem:[%s2668 + $0x8] sm:$0xf]
        %v2672 = vld [vmem:[%s2668 + $0xc] sm:$0xf]
        %s2673 = scalar_lea.vmem %s1347, 3
        %v2674 = vld [vmem:[%s2673] sm:$0x1]
        %v2676 = vlaneseq
        %v2677 = vshrl.u32 %v2676, 7
        %v2678 = vsub.s32 0, %v2677
        %v2679 = vrot.slane %v2674, %v2678
        %v2685 = vunpack.c.l.b16 %v2669
        %v2686 = vunpack.c.l.b16 %v2670
        %v2687 = vunpack.c.l.b16 %v2671
        %v2688 = vunpack.c.l.b16 %v2672
        %v2689 = vpack.c.b16 %v2686, %v2685
        %v2690 = vpack.c.b16 %v2688, %v2687
        %2693 = vmatprep.subr.bf16.mxu0 0
        %2694 = vmatpush1.bf16.msra.mxu0 0
        %2695 = vmatprep.subr.bf16.mxu0 0
        %2696 = vmatpush1.bf16.msra.mxu0 0
        %2697 = vmatprep.subr.bf16.mxu0 0
        %2698 = vmatpush1.bf16.msra.mxu0 0
        %2699 = vmatprep.subr.bf16.mxu0 0
        %2700 = vmatpush1.bf16.msra.mxu0 0
        %2701 = vmatprep.subr.bf16.mxu0 0
        %2702 = vmatpush1.bf16.msra.mxu0 0
        %2703 = vmatprep.subr.bf16.mxu0 0
        %2704 = vmatpush1.bf16.msra.mxu0 0
        %2705 = vmatprep.subr.bf16.mxu0 0
        %2706 = vmatpush1.bf16.msra.mxu0 %v2690
        %2707 = vmatprep.subr.bf16.mxu0 0
        %2708 = vmatpush1.bf16.msra.mxu0 %v2689
        %2709 = vmatprep.subr.bf16.mxu0 0
        %2710 = vmatpush2.bf16.msra.mxu0 0
        %2711 = vmatprep.subr.bf16.mxu0 0
        %2712 = vmatpush2.bf16.msra.mxu0 0
        %2713 = vmatprep.subr.bf16.mxu0 0
        %2714 = vmatpush2.bf16.msra.mxu0 0
        %2715 = vmatprep.subr.bf16.mxu0 0
        %2716 = vmatpush2.bf16.msra.mxu0 0
        %2717 = vmatprep.subr.bf16.mxu0 0
        %2718 = vmatpush2.bf16.msra.mxu0 0
        %2719 = vmatprep.subr.bf16.mxu0 0
        %2720 = vmatpush2.bf16.msra.mxu0 0
        %2721 = vmatprep.subr.bf16.mxu0 0
        %2722 = vmatpush2.bf16.msra.mxu0 0
        %2723 = vmatprep.subr.bf16.mxu0 0
        %2724 = vmatpush2.bf16.msra.mxu0 0
        %2725 = vmatprep.mubr.bf16.mxu0 0
        %2726 = vmatmul.mubr.bf16.gmra.mxu0 %v1486
        %v2727 = vpop.f32.mrf.mxu0
        %v2728 = vadd.f32 %v2679, %v2727
        %v2729 = vpop.f32.mrf.mxu0
        %v2730 = vpop.f32.mrf.mxu0
        %v2731 = vadd.f32 %v2679, %v2730
        %v2732 = vpop.f32.mrf.mxu0
        %2733 = vdwg.mxu0
        %s2734 = scalar_lea.vmem %s1352, 48
        %v2735 = vld [vmem:[%s2734] sm:$0xf]
        %v2736 = vld [vmem:[%s2734 + $0x4] sm:$0xf]
        %v2737 = vld [vmem:[%s2734 + $0x8] sm:$0xf]
        %v2738 = vld [vmem:[%s2734 + $0xc] sm:$0xf]
        %s2739 = scalar_lea.vmem %s1356, 3
        %v2740 = vld [vmem:[%s2739] sm:$0x1]
        %v2742 = vlaneseq
        %v2743 = vshrl.u32 %v2742, 7
        %v2744 = vsub.s32 0, %v2743
        %v2745 = vrot.slane %v2740, %v2744
        %v2751 = vunpack.c.l.b16 %v2735
        %v2752 = vunpack.c.l.b16 %v2736
        %v2753 = vunpack.c.l.b16 %v2737
        %v2754 = vunpack.c.l.b16 %v2738
        %v2755 = vpack.c.b16 %v2752, %v2751
        %v2756 = vpack.c.b16 %v2754, %v2753
        %2759 = vmatprep.subr.bf16.mxu0 0
        %2760 = vmatpush1.bf16.msra.mxu0 0
        %2761 = vmatprep.subr.bf16.mxu0 0
        %2762 = vmatpush1.bf16.msra.mxu0 0
        %2763 = vmatprep.subr.bf16.mxu0 0
        %2764 = vmatpush1.bf16.msra.mxu0 0
        %2765 = vmatprep.subr.bf16.mxu0 0
        %2766 = vmatpush1.bf16.msra.mxu0 0
        %2767 = vmatprep.subr.bf16.mxu0 0
        %2768 = vmatpush1.bf16.msra.mxu0 0
        %2769 = vmatprep.subr.bf16.mxu0 0
        %2770 = vmatpush1.bf16.msra.mxu0 0
        %2771 = vmatprep.subr.bf16.mxu0 0
        %2772 = vmatpush1.bf16.msra.mxu0 %v2756
        %2773 = vmatprep.subr.bf16.mxu0 0
        %2774 = vmatpush1.bf16.msra.mxu0 %v2755
        %2775 = vmatprep.subr.bf16.mxu0 0
        %2776 = vmatpush2.bf16.msra.mxu0 0
        %2777 = vmatprep.subr.bf16.mxu0 0
        %2778 = vmatpush2.bf16.msra.mxu0 0
        %2779 = vmatprep.subr.bf16.mxu0 0
        %2780 = vmatpush2.bf16.msra.mxu0 0
        %2781 = vmatprep.subr.bf16.mxu0 0
        %2782 = vmatpush2.bf16.msra.mxu0 0
        %2783 = vmatprep.subr.bf16.mxu0 0
        %2784 = vmatpush2.bf16.msra.mxu0 0
        %2785 = vmatprep.subr.bf16.mxu0 0
        %2786 = vmatpush2.bf16.msra.mxu0 0
        %2787 = vmatprep.subr.bf16.mxu0 0
        %2788 = vmatpush2.bf16.msra.mxu0 0
        %2789 = vmatprep.subr.bf16.mxu0 0
        %2790 = vmatpush2.bf16.msra.mxu0 0
        %2791 = vmatprep.mubr.bf16.mxu0 0
        %2792 = vmatmul.mubr.bf16.gmra.mxu0 %v1486
        %v2793 = vpop.f32.mrf.mxu0
        %v2794 = vadd.f32 %v2745, %v2793
        %v2795 = vpop.f32.mrf.mxu0
        %v2796 = vpop.f32.mrf.mxu0
        %v2797 = vadd.f32 %v2745, %v2796
        %v2798 = vpop.f32.mrf.mxu0
        %2799 = vdwg.mxu0
        %s2800 = scalar_lea.vmem %s1361, 48
        %v2801 = vld [vmem:[%s2800] sm:$0xf]
        %v2802 = vld [vmem:[%s2800 + $0x4] sm:$0xf]
        %v2803 = vld [vmem:[%s2800 + $0x8] sm:$0xf]
        %v2804 = vld [vmem:[%s2800 + $0xc] sm:$0xf]
        %s2805 = scalar_lea.vmem %s1365, 3
        %v2806 = vld [vmem:[%s2805] sm:$0x1]
        %v2808 = vlaneseq
        %v2809 = vshrl.u32 %v2808, 7
        %v2810 = vsub.s32 0, %v2809
        %v2811 = vrot.slane %v2806, %v2810
        %v2817 = vunpack.c.l.b16 %v2801
        %v2818 = vunpack.c.l.b16 %v2802
        %v2819 = vunpack.c.l.b16 %v2803
        %v2820 = vunpack.c.l.b16 %v2804
        %v2821 = vpack.c.b16 %v2818, %v2817
        %v2822 = vpack.c.b16 %v2820, %v2819
        %2825 = vmatprep.subr.bf16.mxu0 0
        %2826 = vmatpush1.bf16.msra.mxu0 0
        %2827 = vmatprep.subr.bf16.mxu0 0
        %2828 = vmatpush1.bf16.msra.mxu0 0
        %2829 = vmatprep.subr.bf16.mxu0 0
        %2830 = vmatpush1.bf16.msra.mxu0 0
        %2831 = vmatprep.subr.bf16.mxu0 0
        %2832 = vmatpush1.bf16.msra.mxu0 0
        %2833 = vmatprep.subr.bf16.mxu0 0
        %2834 = vmatpush1.bf16.msra.mxu0 0
        %2835 = vmatprep.subr.bf16.mxu0 0
        %2836 = vmatpush1.bf16.msra.mxu0 0
        %2837 = vmatprep.subr.bf16.mxu0 0
        %2838 = vmatpush1.bf16.msra.mxu0 %v2822
        %2839 = vmatprep.subr.bf16.mxu0 0
        %2840 = vmatpush1.bf16.msra.mxu0 %v2821
        %2841 = vmatprep.subr.bf16.mxu0 0
        %2842 = vmatpush2.bf16.msra.mxu0 0
        %2843 = vmatprep.subr.bf16.mxu0 0
        %2844 = vmatpush2.bf16.msra.mxu0 0
        %2845 = vmatprep.subr.bf16.mxu0 0
        %2846 = vmatpush2.bf16.msra.mxu0 0
        %2847 = vmatprep.subr.bf16.mxu0 0
        %2848 = vmatpush2.bf16.msra.mxu0 0
        %2849 = vmatprep.subr.bf16.mxu0 0
        %2850 = vmatpush2.bf16.msra.mxu0 0
        %2851 = vmatprep.subr.bf16.mxu0 0
        %2852 = vmatpush2.bf16.msra.mxu0 0
        %2853 = vmatprep.subr.bf16.mxu0 0
        %2854 = vmatpush2.bf16.msra.mxu0 0
        %2855 = vmatprep.subr.bf16.mxu0 0
        %2856 = vmatpush2.bf16.msra.mxu0 0
        %2857 = vmatprep.mubr.bf16.mxu0 0
        %2858 = vmatmul.mubr.bf16.gmra.mxu0 %v1486
        %v2859 = vpop.f32.mrf.mxu0
        %v2860 = vadd.f32 %v2811, %v2859
        %v2861 = vpop.f32.mrf.mxu0
        %v2862 = vpop.f32.mrf.mxu0
        %v2863 = vadd.f32 %v2811, %v2862
        %v2864 = vpop.f32.mrf.mxu0
        %2865 = vdwg.mxu0
        %v2866 = vpack.c.bf16 %v2731, %v2728
        %2867 = vxpose.xlu0.b32.start [1/16] %v2794, 128
        %2868 = vxpose.xlu0.b32.cont [2/16] %v2797, 128
        %2869 = vxpose.xlu0.b32.cont [3/16] 0.0, 128
        %2870 = vxpose.xlu0.b32.cont [4/16] 0.0, 128
        %2871 = vxpose.xlu0.b32.cont [5/16] 0.0, 128
        %2872 = vxpose.xlu0.b32.cont [6/16] 0.0, 128
        %2873 = vxpose.xlu0.b32.cont [7/16] 0.0, 128
        %2874 = vxpose.xlu0.b32.cont [8/16] 0.0, 128
        %2875 = vxpose.xlu0.b32.cont [9/16] 0.0, 128
        %2876 = vxpose.xlu0.b32.cont [10/16] 0.0, 128
        %2877 = vxpose.xlu0.b32.cont [11/16] 0.0, 128
        %2878 = vxpose.xlu0.b32.cont [12/16] 0.0, 128
        %2879 = vxpose.xlu0.b32.cont [13/16] 0.0, 128
        %2880 = vxpose.xlu0.b32.cont [14/16] 0.0, 128
        %2881 = vxpose.xlu0.b32.cont [15/16] 0.0, 128
        %2882 = vxpose.xlu0.b32.end [16/16] 0.0, 128
        %v2883 = vpop.trf.xlu0
        %v2884 = vpop.trf.xlu0
        %v2885 = vpop.trf.xlu0
        %v2886 = vpop.trf.xlu0
        %v2887 = vpop.trf.xlu0
        %v2888 = vpop.trf.xlu0
        %v2889 = vpop.trf.xlu0
        %v2890 = vpop.trf.xlu0
        %v2891 = vpop.trf.xlu0
        %v2892 = vpop.trf.xlu0
        %v2893 = vpop.trf.xlu0
        %v2894 = vpop.trf.xlu0
        %v2895 = vpop.trf.xlu0
        %v2896 = vpop.trf.xlu0
        %v2897 = vpop.trf.xlu0
        %v2898 = vpop.trf.xlu0
        %v2899 = vpack.c.bf16 %v2883, %v2883
        %v2901 = vsel %vm1691, %v2866, 0
        %v2904 = vsel %vm1695, %v2899, 0
        %2906 = vmatprep.subr.bf16.mxu0 0
        %2907 = vmatpush1.bf16.msra.mxu0 0
        %2908 = vmatprep.subr.bf16.mxu0 0
        %2909 = vmatpush1.bf16.msra.mxu0 0
        %2910 = vmatprep.subr.bf16.mxu0 0
        %2911 = vmatpush1.bf16.msra.mxu0 0
        %2912 = vmatprep.subr.bf16.mxu0 0
        %2913 = vmatpush1.bf16.msra.mxu0 0
        %2914 = vmatprep.subr.bf16.mxu0 0
        %2915 = vmatpush1.bf16.msra.mxu0 0
        %2916 = vmatprep.subr.bf16.mxu0 0
        %2917 = vmatpush1.bf16.msra.mxu0 0
        %2918 = vmatprep.subr.bf16.mxu0 0
        %2919 = vmatpush1.bf16.msra.mxu0 0
        %2920 = vmatprep.subr.bf16.mxu0 0
        %2921 = vmatpush1.bf16.msra.mxu0 %v2904
        %2922 = vmatprep.subr.bf16.mxu0 0
        %2923 = vmatpush2.bf16.msra.mxu0 0
        %2924 = vmatprep.subr.bf16.mxu0 0
        %2925 = vmatpush2.bf16.msra.mxu0 0
        %2926 = vmatprep.subr.bf16.mxu0 0
        %2927 = vmatpush2.bf16.msra.mxu0 0
        %2928 = vmatprep.subr.bf16.mxu0 0
        %2929 = vmatpush2.bf16.msra.mxu0 0
        %2930 = vmatprep.subr.bf16.mxu0 0
        %2931 = vmatpush2.bf16.msra.mxu0 0
        %2932 = vmatprep.subr.bf16.mxu0 0
        %2933 = vmatpush2.bf16.msra.mxu0 0
        %2934 = vmatprep.subr.bf16.mxu0 0
        %2935 = vmatpush2.bf16.msra.mxu0 0
        %2936 = vmatprep.subr.bf16.mxu0 0
        %2937 = vmatpush2.bf16.msra.mxu0 0
        %2938 = vmatprep.mubr.bf16.mxu0 0
        %2939 = vmatmul.mubr.bf16.gmra.mxu0 %v2901
        %v2940 = vpop.f32.mrf.mxu0
        %v2941 = vadd.f32 0.0, %v2940
        %v2942 = vpop.f32.mrf.mxu0
        %v2943 = vpop.f32.mrf.mxu0
        %v2944 = vadd.f32 0.0, %v2943
        %v2945 = vpop.f32.mrf.mxu0
        %2946 = vdwg.mxu0
        %v2947 = vmul.f32 %v2941, 0.35355338
        %v2948 = vmul.f32 %v2944, 0.35355338
        %v2949 = vsel %vm1742, -1e+09, %v2947
        %v2950 = vsel %vm1743, -1e+09, %v2948
        %v2951 = vsel %vm1746, %v2949, -inf
        %2952 = vmax.xlane.f32.xlu0 %v2951
        %v2953 = vpop.xlane.xlu0 %2952
        %v2954 = vsel %vm1746, %v2950, -inf
        %2955 = vmax.xlane.f32.xlu0 %v2954
        %v2956 = vpop.xlane.xlu0 %2955
        %v2957 = vsub.f32 %v2949, %v2953
        %v2958 = vsub.f32 %v2950, %v2956
        %v2959 = vmul.f32 %v2957, 1.442695
        %v2960 = vpow.pop %v2959
        %v2961 = vmul.f32 %v2958, 1.442695
        %v2962 = vpow.pop %v2961
        %v2963 = vsel %vm1746, %v2960, 0.0
        %2964 = vadd.xlane.f32.xlu0 %v2963
        %v2965 = vpop.xlane.xlu0 %2964
        %v2966 = vsel %vm1746, %v2962, 0.0
        %2967 = vadd.xlane.f32.xlu0 %v2966
        %v2968 = vpop.xlane.xlu0 %2967
        %v2969 = vrcp.pop %v2965
        %v2970 = vrcp.pop %v2968
        %v2971 = vmul.f32 %v2960, %v2969
        %v2972 = vmul.f32 %v2962, %v2970
        %v2973 = vpack.c.bf16 %v2972, %v2971
        %v2974 = vpack.c.bf16 %v2863, %v2860
        %v2976 = vsel %vm1746, %v2973, 0
        %2978 = vmatprep.subr.bf16.mxu0 0
        %2979 = vmatpush1.bf16.msra.mxu0 0
        %2980 = vmatprep.subr.bf16.mxu0 0
        %2981 = vmatpush1.bf16.msra.mxu0 0
        %2982 = vmatprep.subr.bf16.mxu0 0
        %2983 = vmatpush1.bf16.msra.mxu0 0
        %2984 = vmatprep.subr.bf16.mxu0 0
        %2985 = vmatpush1.bf16.msra.mxu0 0
        %2986 = vmatprep.subr.bf16.mxu0 0
        %2987 = vmatpush1.bf16.msra.mxu0 0
        %2988 = vmatprep.subr.bf16.mxu0 0
        %2989 = vmatpush1.bf16.msra.mxu0 0
        %2990 = vmatprep.subr.bf16.mxu0 0
        %2991 = vmatpush1.bf16.msra.mxu0 0
        %2992 = vmatprep.subr.bf16.mxu0 0
        %2993 = vmatpush1.bf16.msra.mxu0 %v2974
        %2994 = vmatprep.subr.bf16.mxu0 0
        %2995 = vmatpush2.bf16.msra.mxu0 0
        %2996 = vmatprep.subr.bf16.mxu0 0
        %2997 = vmatpush2.bf16.msra.mxu0 0
        %2998 = vmatprep.subr.bf16.mxu0 0
        %2999 = vmatpush2.bf16.msra.mxu0 0
        %3000 = vmatprep.subr.bf16.mxu0 0
        %3001 = vmatpush2.bf16.msra.mxu0 0
        %3002 = vmatprep.subr.bf16.mxu0 0
        %3003 = vmatpush2.bf16.msra.mxu0 0
        %3004 = vmatprep.subr.bf16.mxu0 0
        %3005 = vmatpush2.bf16.msra.mxu0 0
        %3006 = vmatprep.subr.bf16.mxu0 0
        %3007 = vmatpush2.bf16.msra.mxu0 0
        %3008 = vmatprep.subr.bf16.mxu0 0
        %3009 = vmatpush2.bf16.msra.mxu0 0
        %3010 = vmatprep.mubr.bf16.mxu0 0
        %3011 = vmatmul.mubr.bf16.gmra.mxu0 %v2976
        %v3012 = vpop.f32.mrf.mxu0
        %v3013 = vadd.f32 0.0, %v3012
        %v3014 = vpop.f32.mrf.mxu0
        %v3015 = vpop.f32.mrf.mxu0
        %v3016 = vadd.f32 0.0, %v3015
        %v3017 = vpop.f32.mrf.mxu0
        %3018 = vdwg.mxu0
        %v3019 = vpack.c.bf16 %v3016, %v3013
        %s3020 = scalar_lea.vmem %s1370, 12
        %v3021 = vld [vmem:[%s3020] sm:$0xf]
        %v3023 = vsel %vm1691, %v3019, 0
        %v3026 = vsel %vm1695, %v3021, 0
        %3028 = vmatprep.subr.bf16.mxu0 0
        %3029 = vmatpush1.bf16.msra.mxu0 0
        %3030 = vmatprep.subr.bf16.mxu0 0
        %3031 = vmatpush1.bf16.msra.mxu0 0
        %3032 = vmatprep.subr.bf16.mxu0 0
        %3033 = vmatpush1.bf16.msra.mxu0 0
        %3034 = vmatprep.subr.bf16.mxu0 0
        %3035 = vmatpush1.bf16.msra.mxu0 0
        %3036 = vmatprep.subr.bf16.mxu0 0
        %3037 = vmatpush1.bf16.msra.mxu0 0
        %3038 = vmatprep.subr.bf16.mxu0 0
        %3039 = vmatpush1.bf16.msra.mxu0 0
        %3040 = vmatprep.subr.bf16.mxu0 0
        %3041 = vmatpush1.bf16.msra.mxu0 0
        %3042 = vmatprep.subr.bf16.mxu0 0
        %3043 = vmatpush1.bf16.msra.mxu0 %v3026
        %3044 = vmatprep.subr.bf16.mxu0 0
        %3045 = vmatpush2.bf16.msra.mxu0 0
        %3046 = vmatprep.subr.bf16.mxu0 0
        %3047 = vmatpush2.bf16.msra.mxu0 0
        %3048 = vmatprep.subr.bf16.mxu0 0
        %3049 = vmatpush2.bf16.msra.mxu0 0
        %3050 = vmatprep.subr.bf16.mxu0 0
        %3051 = vmatpush2.bf16.msra.mxu0 0
        %3052 = vmatprep.subr.bf16.mxu0 0
        %3053 = vmatpush2.bf16.msra.mxu0 0
        %3054 = vmatprep.subr.bf16.mxu0 0
        %3055 = vmatpush2.bf16.msra.mxu0 0
        %3056 = vmatprep.subr.bf16.mxu0 0
        %3057 = vmatpush2.bf16.msra.mxu0 0
        %3058 = vmatprep.subr.bf16.mxu0 0
        %3059 = vmatpush2.bf16.msra.mxu0 0
        %3060 = vmatprep.mubr.bf16.mxu0 0
        %3061 = vmatmul.mubr.bf16.gmra.mxu0 %v3023
        %v3062 = vpop.f32.mrf.mxu0
        %v3063 = vadd.f32 0.0, %v3062
        %v3064 = vpop.f32.mrf.mxu0
        %v3065 = vpop.f32.mrf.mxu0
        %v3066 = vadd.f32 0.0, %v3065
        %v3067 = vpop.f32.mrf.mxu0
        %3068 = vdwg.mxu0
        %v3069 = vadd.f32 %v2666, %v3063
        %v3070 = vadd.f32 %v2667, %v3066
        %v3071 = vld [vmem:[%s1373] sm:$0x1]
        %v3073 = vlaneseq
        %v3074 = vshrl.u32 %v3073, 7
        %v3075 = vsub.s32 0, %v3074
        %v3076 = vrot.slane %v3071, %v3075
        %v3078 = vadd.f32 %v3069, %v3076
        %v3079 = vadd.f32 %v3070, %v3076
        %v3080 = vadd.f32 %v1453, %v3078
        %v3081 = vadd.f32 %v1454, %v3079
        %v3082 = vsel %vm1484, %v3080, 0.0
        %3083 = vadd.xlane.f32.xlu0 %v3082
        %v3084 = vpop.xlane.xlu0 %3083
        %v3085 = vsel %vm1484, %v3081, 0.0
        %3086 = vadd.xlane.f32.xlu0 %v3085
        %v3087 = vpop.xlane.xlu0 %3086
        %v3088 = vrcp.pop 32.0
        %v3089 = vmul.f32 %v3084, %v3088
        %v3090 = vmul.f32 %v3087, %v3088
        %v3091 = vsub.f32 %v3080, %v3089
        %v3092 = vsub.f32 %v3081, %v3090
        %v3093 = vmul.f32 %v3091, %v3091
        %v3094 = vmul.f32 %v3092, %v3092
        %v3095 = vsel %vm1484, %v3093, 0.0
        %3096 = vadd.xlane.f32.xlu0 %v3095
        %v3097 = vpop.xlane.xlu0 %3096
        %v3098 = vsel %vm1484, %v3094, 0.0
        %3099 = vadd.xlane.f32.xlu0 %v3098
        %v3100 = vpop.xlane.xlu0 %3099
        %v3101 = vmul.f32 %v3097, %v3088
        %v3102 = vmul.f32 %v3100, %v3088
        %v3103 = vadd.f32 %v3101, 1e-06
        %v3104 = vadd.f32 %v3102, 1e-06
        %v3105 = vrsqrt.pop %v3103
        %v3106 = vrsqrt.pop %v3104
        %v3107 = vmul.f32 %v3091, %v3105
        %v3108 = vmul.f32 %v3092, %v3106
        %v3109 = vld [vmem:[%s1427] sm:$0x1]
        %v3111 = vlaneseq
        %v3112 = vshrl.u32 %v3111, 7
        %v3113 = vsub.s32 0, %v3112
        %v3114 = vrot.slane %v3109, %v3113
        %v3116 = vmul.f32 %v3107, %v3114
        %v3117 = vmul.f32 %v3108, %v3114
        %v3118 = vld [vmem:[%s1430] sm:$0x1]
        %v3120 = vlaneseq
        %v3121 = vshrl.u32 %v3120, 7
        %v3122 = vsub.s32 0, %v3121
        %v3123 = vrot.slane %v3118, %v3122
        %v3125 = vadd.f32 %v3116, %v3123
        %v3126 = vadd.f32 %v3117, %v3123
        %v3127 = vld [vmem:[%s1338] sm:$0xff]
        %v3128 = vld [vmem:[%s1338 + $0x8] sm:$0xff]
        %v3129 = vpack.c.bf16 %v3126, %v3125
        %v3130 = vld [vmem:[%s1378] sm:$0xf]
        %v3131 = vld [vmem:[%s1378 + $0x4] sm:$0xf]
        %v3132 = vld [vmem:[%s1378 + $0x8] sm:$0xf]
        %v3133 = vld [vmem:[%s1378 + $0xc] sm:$0xf]
        %v3134 = vld [vmem:[%s1382] sm:$0x1]
        %v3136 = vlaneseq
        %v3137 = vshrl.u32 %v3136, 7
        %v3138 = vsub.s32 0, %v3137
        %v3139 = vrot.slane %v3134, %v3138
        %v3145 = vunpack.c.l.b16 %v3130
        %v3146 = vunpack.c.l.b16 %v3131
        %v3147 = vunpack.c.l.b16 %v3132
        %v3148 = vunpack.c.l.b16 %v3133
        %v3149 = vpack.c.b16 %v3146, %v3145
        %v3150 = vpack.c.b16 %v3148, %v3147
        %v3154 = vsel %vm1484, %v3129, 0
        %3156 = vmatprep.subr.bf16.mxu0 0
        %3157 = vmatpush1.bf16.msra.mxu0 0
        %3158 = vmatprep.subr.bf16.mxu0 0
        %3159 = vmatpush1.bf16.msra.mxu0 0
        %3160 = vmatprep.subr.bf16.mxu0 0
        %3161 = vmatpush1.bf16.msra.mxu0 0
        %3162 = vmatprep.subr.bf16.mxu0 0
        %3163 = vmatpush1.bf16.msra.mxu0 0
        %3164 = vmatprep.subr.bf16.mxu0 0
        %3165 = vmatpush1.bf16.msra.mxu0 0
        %3166 = vmatprep.subr.bf16.mxu0 0
        %3167 = vmatpush1.bf16.msra.mxu0 0
        %3168 = vmatprep.subr.bf16.mxu0 0
        %3169 = vmatpush1.bf16.msra.mxu0 %v3150
        %3170 = vmatprep.subr.bf16.mxu0 0
        %3171 = vmatpush1.bf16.msra.mxu0 %v3149
        %3172 = vmatprep.subr.bf16.mxu0 0
        %3173 = vmatpush2.bf16.msra.mxu0 0
        %3174 = vmatprep.subr.bf16.mxu0 0
        %3175 = vmatpush2.bf16.msra.mxu0 0
        %3176 = vmatprep.subr.bf16.mxu0 0
        %3177 = vmatpush2.bf16.msra.mxu0 0
        %3178 = vmatprep.subr.bf16.mxu0 0
        %3179 = vmatpush2.bf16.msra.mxu0 0
        %3180 = vmatprep.subr.bf16.mxu0 0
        %3181 = vmatpush2.bf16.msra.mxu0 0
        %3182 = vmatprep.subr.bf16.mxu0 0
        %3183 = vmatpush2.bf16.msra.mxu0 0
        %3184 = vmatprep.subr.bf16.mxu0 0
        %3185 = vmatpush2.bf16.msra.mxu0 0
        %3186 = vmatprep.subr.bf16.mxu0 0
        %3187 = vmatpush2.bf16.msra.mxu0 0
        %3188 = vmatprep.mubr.bf16.mxu0 0
        %3189 = vmatmul.mubr.bf16.gmra.mxu0 %v3154
        %v3190 = vpop.f32.mrf.mxu0
        %v3191 = vadd.f32 %v3139, %v3190
        %v3192 = vpop.f32.mrf.mxu0
        %v3193 = vpop.f32.mrf.mxu0
        %v3194 = vadd.f32 %v3139, %v3193
        %v3195 = vpop.f32.mrf.mxu0
        %3196 = vdwg.mxu0
        %v3197 = vld [vmem:[%s1387] sm:$0xf]
        %v3198 = vld [vmem:[%s1387 + $0x4] sm:$0xf]
        %v3199 = vld [vmem:[%s1387 + $0x8] sm:$0xf]
        %v3200 = vld [vmem:[%s1387 + $0xc] sm:$0xf]
        %v3201 = vld [vmem:[%s1391] sm:$0x1]
        %v3203 = vlaneseq
        %v3204 = vshrl.u32 %v3203, 7
        %v3205 = vsub.s32 0, %v3204
        %v3206 = vrot.slane %v3201, %v3205
        %v3212 = vunpack.c.l.b16 %v3197
        %v3213 = vunpack.c.l.b16 %v3198
        %v3214 = vunpack.c.l.b16 %v3199
        %v3215 = vunpack.c.l.b16 %v3200
        %v3216 = vpack.c.b16 %v3213, %v3212
        %v3217 = vpack.c.b16 %v3215, %v3214
        %v3221 = vsel %vm1484, %v1457, 0
        %3223 = vmatprep.subr.bf16.mxu0 0
        %3224 = vmatpush1.bf16.msra.mxu0 0
        %3225 = vmatprep.subr.bf16.mxu0 0
        %3226 = vmatpush1.bf16.msra.mxu0 0
        %3227 = vmatprep.subr.bf16.mxu0 0
        %3228 = vmatpush1.bf16.msra.mxu0 0
        %3229 = vmatprep.subr.bf16.mxu0 0
        %3230 = vmatpush1.bf16.msra.mxu0 0
        %3231 = vmatprep.subr.bf16.mxu0 0
        %3232 = vmatpush1.bf16.msra.mxu0 0
        %3233 = vmatprep.subr.bf16.mxu0 0
        %3234 = vmatpush1.bf16.msra.mxu0 0
        %3235 = vmatprep.subr.bf16.mxu0 0
        %3236 = vmatpush1.bf16.msra.mxu0 %v3217
        %3237 = vmatprep.subr.bf16.mxu0 0
        %3238 = vmatpush1.bf16.msra.mxu0 %v3216
        %3239 = vmatprep.subr.bf16.mxu0 0
        %3240 = vmatpush2.bf16.msra.mxu0 0
        %3241 = vmatprep.subr.bf16.mxu0 0
        %3242 = vmatpush2.bf16.msra.mxu0 0
        %3243 = vmatprep.subr.bf16.mxu0 0
        %3244 = vmatpush2.bf16.msra.mxu0 0
        %3245 = vmatprep.subr.bf16.mxu0 0
        %3246 = vmatpush2.bf16.msra.mxu0 0
        %3247 = vmatprep.subr.bf16.mxu0 0
        %3248 = vmatpush2.bf16.msra.mxu0 0
        %3249 = vmatprep.subr.bf16.mxu0 0
        %3250 = vmatpush2.bf16.msra.mxu0 0
        %3251 = vmatprep.subr.bf16.mxu0 0
        %3252 = vmatpush2.bf16.msra.mxu0 0
        %3253 = vmatprep.subr.bf16.mxu0 0
        %3254 = vmatpush2.bf16.msra.mxu0 0
        %3255 = vmatprep.mubr.bf16.mxu0 0
        %3256 = vmatmul.mubr.bf16.gmra.mxu0 %v3221
        %v3257 = vpop.f32.mrf.mxu0
        %v3258 = vadd.f32 %v3206, %v3257
        %v3259 = vpop.f32.mrf.mxu0
        %v3260 = vpop.f32.mrf.mxu0
        %v3261 = vadd.f32 %v3206, %v3260
        %v3262 = vpop.f32.mrf.mxu0
        %3263 = vdwg.mxu0
        %v3264 = vld [vmem:[%s1396] sm:$0xf]
        %v3265 = vld [vmem:[%s1396 + $0x4] sm:$0xf]
        %v3266 = vld [vmem:[%s1396 + $0x8] sm:$0xf]
        %v3267 = vld [vmem:[%s1396 + $0xc] sm:$0xf]
        %v3268 = vld [vmem:[%s1400] sm:$0x1]
        %v3270 = vlaneseq
        %v3271 = vshrl.u32 %v3270, 7
        %v3272 = vsub.s32 0, %v3271
        %v3273 = vrot.slane %v3268, %v3272
        %v3279 = vunpack.c.l.b16 %v3264
        %v3280 = vunpack.c.l.b16 %v3265
        %v3281 = vunpack.c.l.b16 %v3266
        %v3282 = vunpack.c.l.b16 %v3267
        %v3283 = vpack.c.b16 %v3280, %v3279
        %v3284 = vpack.c.b16 %v3282, %v3281
        %3287 = vmatprep.subr.bf16.mxu0 0
        %3288 = vmatpush1.bf16.msra.mxu0 0
        %3289 = vmatprep.subr.bf16.mxu0 0
        %3290 = vmatpush1.bf16.msra.mxu0 0
        %3291 = vmatprep.subr.bf16.mxu0 0
        %3292 = vmatpush1.bf16.msra.mxu0 0
        %3293 = vmatprep.subr.bf16.mxu0 0
        %3294 = vmatpush1.bf16.msra.mxu0 0
        %3295 = vmatprep.subr.bf16.mxu0 0
        %3296 = vmatpush1.bf16.msra.mxu0 0
        %3297 = vmatprep.subr.bf16.mxu0 0
        %3298 = vmatpush1.bf16.msra.mxu0 0
        %3299 = vmatprep.subr.bf16.mxu0 0
        %3300 = vmatpush1.bf16.msra.mxu0 %v3284
        %3301 = vmatprep.subr.bf16.mxu0 0
        %3302 = vmatpush1.bf16.msra.mxu0 %v3283
        %3303 = vmatprep.subr.bf16.mxu0 0
        %3304 = vmatpush2.bf16.msra.mxu0 0
        %3305 = vmatprep.subr.bf16.mxu0 0
        %3306 = vmatpush2.bf16.msra.mxu0 0
        %3307 = vmatprep.subr.bf16.mxu0 0
        %3308 = vmatpush2.bf16.msra.mxu0 0
        %3309 = vmatprep.subr.bf16.mxu0 0
        %3310 = vmatpush2.bf16.msra.mxu0 0
        %3311 = vmatprep.subr.bf16.mxu0 0
        %3312 = vmatpush2.bf16.msra.mxu0 0
        %3313 = vmatprep.subr.bf16.mxu0 0
        %3314 = vmatpush2.bf16.msra.mxu0 0
        %3315 = vmatprep.subr.bf16.mxu0 0
        %3316 = vmatpush2.bf16.msra.mxu0 0
        %3317 = vmatprep.subr.bf16.mxu0 0
        %3318 = vmatpush2.bf16.msra.mxu0 0
        %3319 = vmatprep.mubr.bf16.mxu0 0
        %3320 = vmatmul.mubr.bf16.gmra.mxu0 %v3221
        %v3321 = vpop.f32.mrf.mxu0
        %v3322 = vadd.f32 %v3273, %v3321
        %v3323 = vpop.f32.mrf.mxu0
        %v3324 = vpop.f32.mrf.mxu0
        %v3325 = vadd.f32 %v3273, %v3324
        %v3326 = vpop.f32.mrf.mxu0
        %3327 = vdwg.mxu0
        %v3328 = vpack.c.bf16 %v3194, %v3191
        %3329 = vxpose.xlu0.b32.start [1/16] %v3258, 128
        %3330 = vxpose.xlu0.b32.cont [2/16] %v3261, 128
        %3331 = vxpose.xlu0.b32.cont [3/16] 0.0, 128
        %3332 = vxpose.xlu0.b32.cont [4/16] 0.0, 128
        %3333 = vxpose.xlu0.b32.cont [5/16] 0.0, 128
        %3334 = vxpose.xlu0.b32.cont [6/16] 0.0, 128
        %3335 = vxpose.xlu0.b32.cont [7/16] 0.0, 128
        %3336 = vxpose.xlu0.b32.cont [8/16] 0.0, 128
        %3337 = vxpose.xlu0.b32.cont [9/16] 0.0, 128
        %3338 = vxpose.xlu0.b32.cont [10/16] 0.0, 128
        %3339 = vxpose.xlu0.b32.cont [11/16] 0.0, 128
        %3340 = vxpose.xlu0.b32.cont [12/16] 0.0, 128
        %3341 = vxpose.xlu0.b32.cont [13/16] 0.0, 128
        %3342 = vxpose.xlu0.b32.cont [14/16] 0.0, 128
        %3343 = vxpose.xlu0.b32.cont [15/16] 0.0, 128
        %3344 = vxpose.xlu0.b32.end [16/16] 0.0, 128
        %v3345 = vpop.trf.xlu0
        %v3346 = vpop.trf.xlu0
        %v3347 = vpop.trf.xlu0
        %v3348 = vpop.trf.xlu0
        %v3349 = vpop.trf.xlu0
        %v3350 = vpop.trf.xlu0
        %v3351 = vpop.trf.xlu0
        %v3352 = vpop.trf.xlu0
        %v3353 = vpop.trf.xlu0
        %v3354 = vpop.trf.xlu0
        %v3355 = vpop.trf.xlu0
        %v3356 = vpop.trf.xlu0
        %v3357 = vpop.trf.xlu0
        %v3358 = vpop.trf.xlu0
        %v3359 = vpop.trf.xlu0
        %v3360 = vpop.trf.xlu0
        %v3361 = vpack.c.bf16 %v3345, %v3345
        %v3363 = vsel %vm1691, %v3328, 0
        %v3366 = vsel %vm1695, %v3361, 0
        %3368 = vmatprep.subr.bf16.mxu0 0
        %3369 = vmatpush1.bf16.msra.mxu0 0
        %3370 = vmatprep.subr.bf16.mxu0 0
        %3371 = vmatpush1.bf16.msra.mxu0 0
        %3372 = vmatprep.subr.bf16.mxu0 0
        %3373 = vmatpush1.bf16.msra.mxu0 0
        %3374 = vmatprep.subr.bf16.mxu0 0
        %3375 = vmatpush1.bf16.msra.mxu0 0
        %3376 = vmatprep.subr.bf16.mxu0 0
        %3377 = vmatpush1.bf16.msra.mxu0 0
        %3378 = vmatprep.subr.bf16.mxu0 0
        %3379 = vmatpush1.bf16.msra.mxu0 0
        %3380 = vmatprep.subr.bf16.mxu0 0
        %3381 = vmatpush1.bf16.msra.mxu0 0
        %3382 = vmatprep.subr.bf16.mxu0 0
        %3383 = vmatpush1.bf16.msra.mxu0 %v3366
        %3384 = vmatprep.subr.bf16.mxu0 0
        %3385 = vmatpush2.bf16.msra.mxu0 0
        %3386 = vmatprep.subr.bf16.mxu0 0
        %3387 = vmatpush2.bf16.msra.mxu0 0
        %3388 = vmatprep.subr.bf16.mxu0 0
        %3389 = vmatpush2.bf16.msra.mxu0 0
        %3390 = vmatprep.subr.bf16.mxu0 0
        %3391 = vmatpush2.bf16.msra.mxu0 0
        %3392 = vmatprep.subr.bf16.mxu0 0
        %3393 = vmatpush2.bf16.msra.mxu0 0
        %3394 = vmatprep.subr.bf16.mxu0 0
        %3395 = vmatpush2.bf16.msra.mxu0 0
        %3396 = vmatprep.subr.bf16.mxu0 0
        %3397 = vmatpush2.bf16.msra.mxu0 0
        %3398 = vmatprep.subr.bf16.mxu0 0
        %3399 = vmatpush2.bf16.msra.mxu0 0
        %3400 = vmatprep.mubr.bf16.mxu0 0
        %3401 = vmatmul.mubr.bf16.gmra.mxu0 %v3363
        %v3402 = vpop.f32.mrf.mxu0
        %v3403 = vadd.f32 0.0, %v3402
        %v3404 = vpop.f32.mrf.mxu0
        %v3405 = vpop.f32.mrf.mxu0
        %v3406 = vadd.f32 0.0, %v3405
        %v3407 = vpop.f32.mrf.mxu0
        %3408 = vdwg.mxu0
        %v3409 = vmul.f32 %v3403, 0.35355338
        %v3410 = vmul.f32 %v3406, 0.35355338
        %vm3411 = vcmp.gt.f32.partialorder %v3127, 0.0
        %vm3412 = vcmp.gt.f32.partialorder %v3128, 0.0
        %v3413 = vsel %vm3411, -1e+09, %v3409
        %v3414 = vsel %vm3412, -1e+09, %v3410
        %v3415 = vsel %vm1746, %v3413, -inf
        %3416 = vmax.xlane.f32.xlu0 %v3415
        %v3417 = vpop.xlane.xlu0 %3416
        %v3418 = vsel %vm1746, %v3414, -inf
        %3419 = vmax.xlane.f32.xlu0 %v3418
        %v3420 = vpop.xlane.xlu0 %3419
        %v3421 = vsub.f32 %v3413, %v3417
        %v3422 = vsub.f32 %v3414, %v3420
        %v3423 = vmul.f32 %v3421, 1.442695
        %v3424 = vpow.pop %v3423
        %v3425 = vmul.f32 %v3422, 1.442695
        %v3426 = vpow.pop %v3425
        %v3427 = vsel %vm1746, %v3424, 0.0
        %3428 = vadd.xlane.f32.xlu0 %v3427
        %v3429 = vpop.xlane.xlu0 %3428
        %v3430 = vsel %vm1746, %v3426, 0.0
        %3431 = vadd.xlane.f32.xlu0 %v3430
        %v3432 = vpop.xlane.xlu0 %3431
        %v3433 = vrcp.pop %v3429
        %v3434 = vrcp.pop %v3432
        %v3435 = vmul.f32 %v3424, %v3433
        %v3436 = vmul.f32 %v3426, %v3434
        %v3437 = vpack.c.bf16 %v3436, %v3435
        %v3438 = vpack.c.bf16 %v3325, %v3322
        %v3440 = vsel %vm1746, %v3437, 0
        %3442 = vmatprep.subr.bf16.mxu0 0
        %3443 = vmatpush1.bf16.msra.mxu0 0
        %3444 = vmatprep.subr.bf16.mxu0 0
        %3445 = vmatpush1.bf16.msra.mxu0 0
        %3446 = vmatprep.subr.bf16.mxu0 0
        %3447 = vmatpush1.bf16.msra.mxu0 0
        %3448 = vmatprep.subr.bf16.mxu0 0
        %3449 = vmatpush1.bf16.msra.mxu0 0
        %3450 = vmatprep.subr.bf16.mxu0 0
        %3451 = vmatpush1.bf16.msra.mxu0 0
        %3452 = vmatprep.subr.bf16.mxu0 0
        %3453 = vmatpush1.bf16.msra.mxu0 0
        %3454 = vmatprep.subr.bf16.mxu0 0
        %3455 = vmatpush1.bf16.msra.mxu0 0
        %3456 = vmatprep.subr.bf16.mxu0 0
        %3457 = vmatpush1.bf16.msra.mxu0 %v3438
        %3458 = vmatprep.subr.bf16.mxu0 0
        %3459 = vmatpush2.bf16.msra.mxu0 0
        %3460 = vmatprep.subr.bf16.mxu0 0
        %3461 = vmatpush2.bf16.msra.mxu0 0
        %3462 = vmatprep.subr.bf16.mxu0 0
        %3463 = vmatpush2.bf16.msra.mxu0 0
        %3464 = vmatprep.subr.bf16.mxu0 0
        %3465 = vmatpush2.bf16.msra.mxu0 0
        %3466 = vmatprep.subr.bf16.mxu0 0
        %3467 = vmatpush2.bf16.msra.mxu0 0
        %3468 = vmatprep.subr.bf16.mxu0 0
        %3469 = vmatpush2.bf16.msra.mxu0 0
        %3470 = vmatprep.subr.bf16.mxu0 0
        %3471 = vmatpush2.bf16.msra.mxu0 0
        %3472 = vmatprep.subr.bf16.mxu0 0
        %3473 = vmatpush2.bf16.msra.mxu0 0
        %3474 = vmatprep.mubr.bf16.mxu0 0
        %3475 = vmatmul.mubr.bf16.gmra.mxu0 %v3440
        %v3476 = vpop.f32.mrf.mxu0
        %v3477 = vadd.f32 0.0, %v3476
        %v3478 = vpop.f32.mrf.mxu0
        %v3479 = vpop.f32.mrf.mxu0
        %v3480 = vadd.f32 0.0, %v3479
        %v3481 = vpop.f32.mrf.mxu0
        %3482 = vdwg.mxu0
        %v3483 = vpack.c.bf16 %v3480, %v3477
        %v3484 = vld [vmem:[%s1405] sm:$0xf]
        %s3485 = scalar_lea.vmem %s1378, 16
        %v3486 = vld [vmem:[%s3485] sm:$0xf]
        %v3487 = vld [vmem:[%s3485 + $0x4] sm:$0xf]
        %v3488 = vld [vmem:[%s3485 + $0x8] sm:$0xf]
        %v3489 = vld [vmem:[%s3485 + $0xc] sm:$0xf]
        %s3490 = scalar_lea.vmem %s1382, 1
        %v3491 = vld [vmem:[%s3490] sm:$0x1]
        %v3493 = vlaneseq
        %v3494 = vshrl.u32 %v3493, 7
        %v3495 = vsub.s32 0, %v3494
        %v3496 = vrot.slane %v3491, %v3495
        %v3502 = vunpack.c.l.b16 %v3486
        %v3503 = vunpack.c.l.b16 %v3487
        %v3504 = vunpack.c.l.b16 %v3488
        %v3505 = vunpack.c.l.b16 %v3489
        %v3506 = vpack.c.b16 %v3503, %v3502
        %v3507 = vpack.c.b16 %v3505, %v3504
        %3510 = vmatprep.subr.bf16.mxu0 0
        %3511 = vmatpush1.bf16.msra.mxu0 0
        %3512 = vmatprep.subr.bf16.mxu0 0
        %3513 = vmatpush1.bf16.msra.mxu0 0
        %3514 = vmatprep.subr.bf16.mxu0 0
        %3515 = vmatpush1.bf16.msra.mxu0 0
        %3516 = vmatprep.subr.bf16.mxu0 0
        %3517 = vmatpush1.bf16.msra.mxu0 0
        %3518 = vmatprep.subr.bf16.mxu0 0
        %3519 = vmatpush1.bf16.msra.mxu0 0
        %3520 = vmatprep.subr.bf16.mxu0 0
        %3521 = vmatpush1.bf16.msra.mxu0 0
        %3522 = vmatprep.subr.bf16.mxu0 0
        %3523 = vmatpush1.bf16.msra.mxu0 %v3507
        %3524 = vmatprep.subr.bf16.mxu0 0
        %3525 = vmatpush1.bf16.msra.mxu0 %v3506
        %3526 = vmatprep.subr.bf16.mxu0 0
        %3527 = vmatpush2.bf16.msra.mxu0 0
        %3528 = vmatprep.subr.bf16.mxu0 0
        %3529 = vmatpush2.bf16.msra.mxu0 0
        %3530 = vmatprep.subr.bf16.mxu0 0
        %3531 = vmatpush2.bf16.msra.mxu0 0
        %3532 = vmatprep.subr.bf16.mxu0 0
        %3533 = vmatpush2.bf16.msra.mxu0 0
        %3534 = vmatprep.subr.bf16.mxu0 0
        %3535 = vmatpush2.bf16.msra.mxu0 0
        %3536 = vmatprep.subr.bf16.mxu0 0
        %3537 = vmatpush2.bf16.msra.mxu0 0
        %3538 = vmatprep.subr.bf16.mxu0 0
        %3539 = vmatpush2.bf16.msra.mxu0 0
        %3540 = vmatprep.subr.bf16.mxu0 0
        %3541 = vmatpush2.bf16.msra.mxu0 0
        %3542 = vmatprep.mubr.bf16.mxu0 0
        %3543 = vmatmul.mubr.bf16.gmra.mxu0 %v3154
        %v3544 = vpop.f32.mrf.mxu0
        %v3545 = vadd.f32 %v3496, %v3544
        %v3546 = vpop.f32.mrf.mxu0
        %v3547 = vpop.f32.mrf.mxu0
        %v3548 = vadd.f32 %v3496, %v3547
        %v3549 = vpop.f32.mrf.mxu0
        %3550 = vdwg.mxu0
        %s3551 = scalar_lea.vmem %s1387, 16
        %v3552 = vld [vmem:[%s3551] sm:$0xf]
        %v3553 = vld [vmem:[%s3551 + $0x4] sm:$0xf]
        %v3554 = vld [vmem:[%s3551 + $0x8] sm:$0xf]
        %v3555 = vld [vmem:[%s3551 + $0xc] sm:$0xf]
        %s3556 = scalar_lea.vmem %s1391, 1
        %v3557 = vld [vmem:[%s3556] sm:$0x1]
        %v3559 = vlaneseq
        %v3560 = vshrl.u32 %v3559, 7
        %v3561 = vsub.s32 0, %v3560
        %v3562 = vrot.slane %v3557, %v3561
        %v3568 = vunpack.c.l.b16 %v3552
        %v3569 = vunpack.c.l.b16 %v3553
        %v3570 = vunpack.c.l.b16 %v3554
        %v3571 = vunpack.c.l.b16 %v3555
        %v3572 = vpack.c.b16 %v3569, %v3568
        %v3573 = vpack.c.b16 %v3571, %v3570
        %3576 = vmatprep.subr.bf16.mxu0 0
        %3577 = vmatpush1.bf16.msra.mxu0 0
        %3578 = vmatprep.subr.bf16.mxu0 0
        %3579 = vmatpush1.bf16.msra.mxu0 0
        %3580 = vmatprep.subr.bf16.mxu0 0
        %3581 = vmatpush1.bf16.msra.mxu0 0
        %3582 = vmatprep.subr.bf16.mxu0 0
        %3583 = vmatpush1.bf16.msra.mxu0 0
        %3584 = vmatprep.subr.bf16.mxu0 0
        %3585 = vmatpush1.bf16.msra.mxu0 0
        %3586 = vmatprep.subr.bf16.mxu0 0
        %3587 = vmatpush1.bf16.msra.mxu0 0
        %3588 = vmatprep.subr.bf16.mxu0 0
        %3589 = vmatpush1.bf16.msra.mxu0 %v3573
        %3590 = vmatprep.subr.bf16.mxu0 0
        %3591 = vmatpush1.bf16.msra.mxu0 %v3572
        %3592 = vmatprep.subr.bf16.mxu0 0
        %3593 = vmatpush2.bf16.msra.mxu0 0
        %3594 = vmatprep.subr.bf16.mxu0 0
        %3595 = vmatpush2.bf16.msra.mxu0 0
        %3596 = vmatprep.subr.bf16.mxu0 0
        %3597 = vmatpush2.bf16.msra.mxu0 0
        %3598 = vmatprep.subr.bf16.mxu0 0
        %3599 = vmatpush2.bf16.msra.mxu0 0
        %3600 = vmatprep.subr.bf16.mxu0 0
        %3601 = vmatpush2.bf16.msra.mxu0 0
        %3602 = vmatprep.subr.bf16.mxu0 0
        %3603 = vmatpush2.bf16.msra.mxu0 0
        %3604 = vmatprep.subr.bf16.mxu0 0
        %3605 = vmatpush2.bf16.msra.mxu0 0
        %3606 = vmatprep.subr.bf16.mxu0 0
        %3607 = vmatpush2.bf16.msra.mxu0 0
        %3608 = vmatprep.mubr.bf16.mxu0 0
        %3609 = vmatmul.mubr.bf16.gmra.mxu0 %v3221
        %v3610 = vpop.f32.mrf.mxu0
        %v3611 = vadd.f32 %v3562, %v3610
        %v3612 = vpop.f32.mrf.mxu0
        %v3613 = vpop.f32.mrf.mxu0
        %v3614 = vadd.f32 %v3562, %v3613
        %v3615 = vpop.f32.mrf.mxu0
        %3616 = vdwg.mxu0
        %s3617 = scalar_lea.vmem %s1396, 16
        %v3618 = vld [vmem:[%s3617] sm:$0xf]
        %v3619 = vld [vmem:[%s3617 + $0x4] sm:$0xf]
        %v3620 = vld [vmem:[%s3617 + $0x8] sm:$0xf]
        %v3621 = vld [vmem:[%s3617 + $0xc] sm:$0xf]
        %s3622 = scalar_lea.vmem %s1400, 1
        %v3623 = vld [vmem:[%s3622] sm:$0x1]
        %v3625 = vlaneseq
        %v3626 = vshrl.u32 %v3625, 7
        %v3627 = vsub.s32 0, %v3626
        %v3628 = vrot.slane %v3623, %v3627
        %v3634 = vunpack.c.l.b16 %v3618
        %v3635 = vunpack.c.l.b16 %v3619
        %v3636 = vunpack.c.l.b16 %v3620
        %v3637 = vunpack.c.l.b16 %v3621
        %v3638 = vpack.c.b16 %v3635, %v3634
        %v3639 = vpack.c.b16 %v3637, %v3636
        %3642 = vmatprep.subr.bf16.mxu0 0
        %3643 = vmatpush1.bf16.msra.mxu0 0
        %3644 = vmatprep.subr.bf16.mxu0 0
        %3645 = vmatpush1.bf16.msra.mxu0 0
        %3646 = vmatprep.subr.bf16.mxu0 0
        %3647 = vmatpush1.bf16.msra.mxu0 0
        %3648 = vmatprep.subr.bf16.mxu0 0
        %3649 = vmatpush1.bf16.msra.mxu0 0
        %3650 = vmatprep.subr.bf16.mxu0 0
        %3651 = vmatpush1.bf16.msra.mxu0 0
        %3652 = vmatprep.subr.bf16.mxu0 0
        %3653 = vmatpush1.bf16.msra.mxu0 0
        %3654 = vmatprep.subr.bf16.mxu0 0
        %3655 = vmatpush1.bf16.msra.mxu0 %v3639
        %3656 = vmatprep.subr.bf16.mxu0 0
        %3657 = vmatpush1.bf16.msra.mxu0 %v3638
        %3658 = vmatprep.subr.bf16.mxu0 0
        %3659 = vmatpush2.bf16.msra.mxu0 0
        %3660 = vmatprep.subr.bf16.mxu0 0
        %3661 = vmatpush2.bf16.msra.mxu0 0
        %3662 = vmatprep.subr.bf16.mxu0 0
        %3663 = vmatpush2.bf16.msra.mxu0 0
        %3664 = vmatprep.subr.bf16.mxu0 0
        %3665 = vmatpush2.bf16.msra.mxu0 0
        %3666 = vmatprep.subr.bf16.mxu0 0
        %3667 = vmatpush2.bf16.msra.mxu0 0
        %3668 = vmatprep.subr.bf16.mxu0 0
        %3669 = vmatpush2.bf16.msra.mxu0 0
        %3670 = vmatprep.subr.bf16.mxu0 0
        %3671 = vmatpush2.bf16.msra.mxu0 0
        %3672 = vmatprep.subr.bf16.mxu0 0
        %3673 = vmatpush2.bf16.msra.mxu0 0
        %3674 = vmatprep.mubr.bf16.mxu0 0
        %3675 = vmatmul.mubr.bf16.gmra.mxu0 %v3221
        %v3676 = vpop.f32.mrf.mxu0
        %v3677 = vadd.f32 %v3628, %v3676
        %v3678 = vpop.f32.mrf.mxu0
        %v3679 = vpop.f32.mrf.mxu0
        %v3680 = vadd.f32 %v3628, %v3679
        %v3681 = vpop.f32.mrf.mxu0
        %3682 = vdwg.mxu0
        %v3683 = vpack.c.bf16 %v3548, %v3545
        %3684 = vxpose.xlu0.b32.start [1/16] %v3611, 128
        %3685 = vxpose.xlu0.b32.cont [2/16] %v3614, 128
        %3686 = vxpose.xlu0.b32.cont [3/16] 0.0, 128
        %3687 = vxpose.xlu0.b32.cont [4/16] 0.0, 128
        %3688 = vxpose.xlu0.b32.cont [5/16] 0.0, 128
        %3689 = vxpose.xlu0.b32.cont [6/16] 0.0, 128
        %3690 = vxpose.xlu0.b32.cont [7/16] 0.0, 128
        %3691 = vxpose.xlu0.b32.cont [8/16] 0.0, 128
        %3692 = vxpose.xlu0.b32.cont [9/16] 0.0, 128
        %3693 = vxpose.xlu0.b32.cont [10/16] 0.0, 128
        %3694 = vxpose.xlu0.b32.cont [11/16] 0.0, 128
        %3695 = vxpose.xlu0.b32.cont [12/16] 0.0, 128
        %3696 = vxpose.xlu0.b32.cont [13/16] 0.0, 128
        %3697 = vxpose.xlu0.b32.cont [14/16] 0.0, 128
        %3698 = vxpose.xlu0.b32.cont [15/16] 0.0, 128
        %3699 = vxpose.xlu0.b32.end [16/16] 0.0, 128
        %v3700 = vpop.trf.xlu0
        %v3701 = vpop.trf.xlu0
        %v3702 = vpop.trf.xlu0
        %v3703 = vpop.trf.xlu0
        %v3704 = vpop.trf.xlu0
        %v3705 = vpop.trf.xlu0
        %v3706 = vpop.trf.xlu0
        %v3707 = vpop.trf.xlu0
        %v3708 = vpop.trf.xlu0
        %v3709 = vpop.trf.xlu0
        %v3710 = vpop.trf.xlu0
        %v3711 = vpop.trf.xlu0
        %v3712 = vpop.trf.xlu0
        %v3713 = vpop.trf.xlu0
        %v3714 = vpop.trf.xlu0
        %v3715 = vpop.trf.xlu0
        %v3716 = vpack.c.bf16 %v3700, %v3700
        %v3718 = vsel %vm1691, %v3683, 0
        %v3721 = vsel %vm1695, %v3716, 0
        %3723 = vmatprep.subr.bf16.mxu0 0
        %3724 = vmatpush1.bf16.msra.mxu0 0
        %3725 = vmatprep.subr.bf16.mxu0 0
        %3726 = vmatpush1.bf16.msra.mxu0 0
        %3727 = vmatprep.subr.bf16.mxu0 0
        %3728 = vmatpush1.bf16.msra.mxu0 0
        %3729 = vmatprep.subr.bf16.mxu0 0
        %3730 = vmatpush1.bf16.msra.mxu0 0
        %3731 = vmatprep.subr.bf16.mxu0 0
        %3732 = vmatpush1.bf16.msra.mxu0 0
        %3733 = vmatprep.subr.bf16.mxu0 0
        %3734 = vmatpush1.bf16.msra.mxu0 0
        %3735 = vmatprep.subr.bf16.mxu0 0
        %3736 = vmatpush1.bf16.msra.mxu0 0
        %3737 = vmatprep.subr.bf16.mxu0 0
        %3738 = vmatpush1.bf16.msra.mxu0 %v3721
        %3739 = vmatprep.subr.bf16.mxu0 0
        %3740 = vmatpush2.bf16.msra.mxu0 0
        %3741 = vmatprep.subr.bf16.mxu0 0
        %3742 = vmatpush2.bf16.msra.mxu0 0
        %3743 = vmatprep.subr.bf16.mxu0 0
        %3744 = vmatpush2.bf16.msra.mxu0 0
        %3745 = vmatprep.subr.bf16.mxu0 0
        %3746 = vmatpush2.bf16.msra.mxu0 0
        %3747 = vmatprep.subr.bf16.mxu0 0
        %3748 = vmatpush2.bf16.msra.mxu0 0
        %3749 = vmatprep.subr.bf16.mxu0 0
        %3750 = vmatpush2.bf16.msra.mxu0 0
        %3751 = vmatprep.subr.bf16.mxu0 0
        %3752 = vmatpush2.bf16.msra.mxu0 0
        %3753 = vmatprep.subr.bf16.mxu0 0
        %3754 = vmatpush2.bf16.msra.mxu0 0
        %3755 = vmatprep.mubr.bf16.mxu0 0
        %3756 = vmatmul.mubr.bf16.gmra.mxu0 %v3718
        %v3757 = vpop.f32.mrf.mxu0
        %v3758 = vadd.f32 0.0, %v3757
        %v3759 = vpop.f32.mrf.mxu0
        %v3760 = vpop.f32.mrf.mxu0
        %v3761 = vadd.f32 0.0, %v3760
        %v3762 = vpop.f32.mrf.mxu0
        %3763 = vdwg.mxu0
        %v3764 = vmul.f32 %v3758, 0.35355338
        %v3765 = vmul.f32 %v3761, 0.35355338
        %v3766 = vsel %vm3411, -1e+09, %v3764
        %v3767 = vsel %vm3412, -1e+09, %v3765
        %v3768 = vsel %vm1746, %v3766, -inf
        %3769 = vmax.xlane.f32.xlu0 %v3768
        %v3770 = vpop.xlane.xlu0 %3769
        %v3771 = vsel %vm1746, %v3767, -inf
        %3772 = vmax.xlane.f32.xlu0 %v3771
        %v3773 = vpop.xlane.xlu0 %3772
        %v3774 = vsub.f32 %v3766, %v3770
        %v3775 = vsub.f32 %v3767, %v3773
        %v3776 = vmul.f32 %v3774, 1.442695
        %v3777 = vpow.pop %v3776
        %v3778 = vmul.f32 %v3775, 1.442695
        %v3779 = vpow.pop %v3778
        %v3780 = vsel %vm1746, %v3777, 0.0
        %3781 = vadd.xlane.f32.xlu0 %v3780
        %v3782 = vpop.xlane.xlu0 %3781
        %v3783 = vsel %vm1746, %v3779, 0.0
        %3784 = vadd.xlane.f32.xlu0 %v3783
        %v3785 = vpop.xlane.xlu0 %3784
        %v3786 = vrcp.pop %v3782
        %v3787 = vrcp.pop %v3785
        %v3788 = vmul.f32 %v3777, %v3786
        %v3789 = vmul.f32 %v3779, %v3787
        %v3790 = vpack.c.bf16 %v3789, %v3788
        %v3791 = vpack.c.bf16 %v3680, %v3677
        %v3793 = vsel %vm1746, %v3790, 0
        %3795 = vmatprep.subr.bf16.mxu0 0
        %3796 = vmatpush1.bf16.msra.mxu0 0
        %3797 = vmatprep.subr.bf16.mxu0 0
        %3798 = vmatpush1.bf16.msra.mxu0 0
        %3799 = vmatprep.subr.bf16.mxu0 0
        %3800 = vmatpush1.bf16.msra.mxu0 0
        %3801 = vmatprep.subr.bf16.mxu0 0
        %3802 = vmatpush1.bf16.msra.mxu0 0
        %3803 = vmatprep.subr.bf16.mxu0 0
        %3804 = vmatpush1.bf16.msra.mxu0 0
        %3805 = vmatprep.subr.bf16.mxu0 0
        %3806 = vmatpush1.bf16.msra.mxu0 0
        %3807 = vmatprep.subr.bf16.mxu0 0
        %3808 = vmatpush1.bf16.msra.mxu0 0
        %3809 = vmatprep.subr.bf16.mxu0 0
        %3810 = vmatpush1.bf16.msra.mxu0 %v3791
        %3811 = vmatprep.subr.bf16.mxu0 0
        %3812 = vmatpush2.bf16.msra.mxu0 0
        %3813 = vmatprep.subr.bf16.mxu0 0
        %3814 = vmatpush2.bf16.msra.mxu0 0
        %3815 = vmatprep.subr.bf16.mxu0 0
        %3816 = vmatpush2.bf16.msra.mxu0 0
        %3817 = vmatprep.subr.bf16.mxu0 0
        %3818 = vmatpush2.bf16.msra.mxu0 0
        %3819 = vmatprep.subr.bf16.mxu0 0
        %3820 = vmatpush2.bf16.msra.mxu0 0
        %3821 = vmatprep.subr.bf16.mxu0 0
        %3822 = vmatpush2.bf16.msra.mxu0 0
        %3823 = vmatprep.subr.bf16.mxu0 0
        %3824 = vmatpush2.bf16.msra.mxu0 0
        %3825 = vmatprep.subr.bf16.mxu0 0
        %3826 = vmatpush2.bf16.msra.mxu0 0
        %3827 = vmatprep.mubr.bf16.mxu0 0
        %3828 = vmatmul.mubr.bf16.gmra.mxu0 %v3793
        %v3829 = vpop.f32.mrf.mxu0
        %v3830 = vadd.f32 0.0, %v3829
        %v3831 = vpop.f32.mrf.mxu0
        %v3832 = vpop.f32.mrf.mxu0
        %v3833 = vadd.f32 0.0, %v3832
        %v3834 = vpop.f32.mrf.mxu0
        %3835 = vdwg.mxu0
        %v3836 = vpack.c.bf16 %v3833, %v3830
        %s3837 = scalar_lea.vmem %s1405, 4
        %v3838 = vld [vmem:[%s3837] sm:$0xf]
        %v3840 = vsel %vm1691, %v3836, 0
        %v3843 = vsel %vm1695, %v3838, 0
        %3845 = vmatprep.subr.bf16.mxu0 0
        %3846 = vmatpush1.bf16.msra.mxu0 0
        %3847 = vmatprep.subr.bf16.mxu0 0
        %3848 = vmatpush1.bf16.msra.mxu0 0
        %3849 = vmatprep.subr.bf16.mxu0 0
        %3850 = vmatpush1.bf16.msra.mxu0 0
        %3851 = vmatprep.subr.bf16.mxu0 0
        %3852 = vmatpush1.bf16.msra.mxu0 0
        %3853 = vmatprep.subr.bf16.mxu0 0
        %3854 = vmatpush1.bf16.msra.mxu0 0
        %3855 = vmatprep.subr.bf16.mxu0 0
        %3856 = vmatpush1.bf16.msra.mxu0 0
        %3857 = vmatprep.subr.bf16.mxu0 0
        %3858 = vmatpush1.bf16.msra.mxu0 0
        %3859 = vmatprep.subr.bf16.mxu0 0
        %3860 = vmatpush1.bf16.msra.mxu0 %v3843
        %3861 = vmatprep.subr.bf16.mxu0 0
        %3862 = vmatpush2.bf16.msra.mxu0 0
        %3863 = vmatprep.subr.bf16.mxu0 0
        %3864 = vmatpush2.bf16.msra.mxu0 0
        %3865 = vmatprep.subr.bf16.mxu0 0
        %3866 = vmatpush2.bf16.msra.mxu0 0
        %3867 = vmatprep.subr.bf16.mxu0 0
        %3868 = vmatpush2.bf16.msra.mxu0 0
        %3869 = vmatprep.subr.bf16.mxu0 0
        %3870 = vmatpush2.bf16.msra.mxu0 0
        %3871 = vmatprep.subr.bf16.mxu0 0
        %3872 = vmatpush2.bf16.msra.mxu0 0
        %3873 = vmatprep.subr.bf16.mxu0 0
        %3874 = vmatpush2.bf16.msra.mxu0 0
        %3875 = vmatprep.subr.bf16.mxu0 0
        %3876 = vmatpush2.bf16.msra.mxu0 0
        %3877 = vmatprep.mubr.bf16.mxu0 0
        %3878 = vmatmul.mubr.bf16.gmra.mxu0 %v3840
        %v3879 = vpop.f32.mrf.mxu0
        %v3880 = vadd.f32 0.0, %v3879
        %v3881 = vpop.f32.mrf.mxu0
        %v3882 = vpop.f32.mrf.mxu0
        %v3883 = vadd.f32 0.0, %v3882
        %v3884 = vpop.f32.mrf.mxu0
        %3885 = vdwg.mxu0
        %v3887 = vsel %vm1691, %v3483, 0
        %v3890 = vsel %vm1695, %v3484, 0
        %3892 = vmatprep.subr.bf16.mxu0 0
        %3893 = vmatpush1.bf16.msra.mxu0 0
        %3894 = vmatprep.subr.bf16.mxu0 0
        %3895 = vmatpush1.bf16.msra.mxu0 0
        %3896 = vmatprep.subr.bf16.mxu0 0
        %3897 = vmatpush1.bf16.msra.mxu0 0
        %3898 = vmatprep.subr.bf16.mxu0 0
        %3899 = vmatpush1.bf16.msra.mxu0 0
        %3900 = vmatprep.subr.bf16.mxu0 0
        %3901 = vmatpush1.bf16.msra.mxu0 0
        %3902 = vmatprep.subr.bf16.mxu0 0
        %3903 = vmatpush1.bf16.msra.mxu0 0
        %3904 = vmatprep.subr.bf16.mxu0 0
        %3905 = vmatpush1.bf16.msra.mxu0 0
        %3906 = vmatprep.subr.bf16.mxu0 0
        %3907 = vmatpush1.bf16.msra.mxu0 %v3890
        %3908 = vmatprep.subr.bf16.mxu0 0
        %3909 = vmatpush2.bf16.msra.mxu0 0
        %3910 = vmatprep.subr.bf16.mxu0 0
        %3911 = vmatpush2.bf16.msra.mxu0 0
        %3912 = vmatprep.subr.bf16.mxu0 0
        %3913 = vmatpush2.bf16.msra.mxu0 0
        %3914 = vmatprep.subr.bf16.mxu0 0
        %3915 = vmatpush2.bf16.msra.mxu0 0
        %3916 = vmatprep.subr.bf16.mxu0 0
        %3917 = vmatpush2.bf16.msra.mxu0 0
        %3918 = vmatprep.subr.bf16.mxu0 0
        %3919 = vmatpush2.bf16.msra.mxu0 0
        %3920 = vmatprep.subr.bf16.mxu0 0
        %3921 = vmatpush2.bf16.msra.mxu0 0
        %3922 = vmatprep.subr.bf16.mxu0 0
        %3923 = vmatpush2.bf16.msra.mxu0 0
        %3924 = vmatprep.mubr.bf16.mxu0 0
        %3925 = vmatmul.mubr.bf16.gmra.mxu0 %v3887
        %v3926 = vpop.f32.mrf.mxu0
        %v3927 = vadd.f32 %v3880, %v3926
        %v3928 = vpop.f32.mrf.mxu0
        %v3929 = vpop.f32.mrf.mxu0
        %v3930 = vadd.f32 %v3883, %v3929
        %v3931 = vpop.f32.mrf.mxu0
        %3932 = vdwg.mxu0
        %s3933 = scalar_lea.vmem %s1378, 32
        %v3934 = vld [vmem:[%s3933] sm:$0xf]
        %v3935 = vld [vmem:[%s3933 + $0x4] sm:$0xf]
        %v3936 = vld [vmem:[%s3933 + $0x8] sm:$0xf]
        %v3937 = vld [vmem:[%s3933 + $0xc] sm:$0xf]
        %s3938 = scalar_lea.vmem %s1382, 2
        %v3939 = vld [vmem:[%s3938] sm:$0x1]
        %v3941 = vlaneseq
        %v3942 = vshrl.u32 %v3941, 7
        %v3943 = vsub.s32 0, %v3942
        %v3944 = vrot.slane %v3939, %v3943
        %v3950 = vunpack.c.l.b16 %v3934
        %v3951 = vunpack.c.l.b16 %v3935
        %v3952 = vunpack.c.l.b16 %v3936
        %v3953 = vunpack.c.l.b16 %v3937
        %v3954 = vpack.c.b16 %v3951, %v3950
        %v3955 = vpack.c.b16 %v3953, %v3952
        %3958 = vmatprep.subr.bf16.mxu0 0
        %3959 = vmatpush1.bf16.msra.mxu0 0
        %3960 = vmatprep.subr.bf16.mxu0 0
        %3961 = vmatpush1.bf16.msra.mxu0 0
        %3962 = vmatprep.subr.bf16.mxu0 0
        %3963 = vmatpush1.bf16.msra.mxu0 0
        %3964 = vmatprep.subr.bf16.mxu0 0
        %3965 = vmatpush1.bf16.msra.mxu0 0
        %3966 = vmatprep.subr.bf16.mxu0 0
        %3967 = vmatpush1.bf16.msra.mxu0 0
        %3968 = vmatprep.subr.bf16.mxu0 0
        %3969 = vmatpush1.bf16.msra.mxu0 0
        %3970 = vmatprep.subr.bf16.mxu0 0
        %3971 = vmatpush1.bf16.msra.mxu0 %v3955
        %3972 = vmatprep.subr.bf16.mxu0 0
        %3973 = vmatpush1.bf16.msra.mxu0 %v3954
        %3974 = vmatprep.subr.bf16.mxu0 0
        %3975 = vmatpush2.bf16.msra.mxu0 0
        %3976 = vmatprep.subr.bf16.mxu0 0
        %3977 = vmatpush2.bf16.msra.mxu0 0
        %3978 = vmatprep.subr.bf16.mxu0 0
        %3979 = vmatpush2.bf16.msra.mxu0 0
        %3980 = vmatprep.subr.bf16.mxu0 0
        %3981 = vmatpush2.bf16.msra.mxu0 0
        %3982 = vmatprep.subr.bf16.mxu0 0
        %3983 = vmatpush2.bf16.msra.mxu0 0
        %3984 = vmatprep.subr.bf16.mxu0 0
        %3985 = vmatpush2.bf16.msra.mxu0 0
        %3986 = vmatprep.subr.bf16.mxu0 0
        %3987 = vmatpush2.bf16.msra.mxu0 0
        %3988 = vmatprep.subr.bf16.mxu0 0
        %3989 = vmatpush2.bf16.msra.mxu0 0
        %3990 = vmatprep.mubr.bf16.mxu0 0
        %3991 = vmatmul.mubr.bf16.gmra.mxu0 %v3154
        %v3992 = vpop.f32.mrf.mxu0
        %v3993 = vadd.f32 %v3944, %v3992
        %v3994 = vpop.f32.mrf.mxu0
        %v3995 = vpop.f32.mrf.mxu0
        %v3996 = vadd.f32 %v3944, %v3995
        %v3997 = vpop.f32.mrf.mxu0
        %3998 = vdwg.mxu0
        %s3999 = scalar_lea.vmem %s1387, 32
        %v4000 = vld [vmem:[%s3999] sm:$0xf]
        %v4001 = vld [vmem:[%s3999 + $0x4] sm:$0xf]
        %v4002 = vld [vmem:[%s3999 + $0x8] sm:$0xf]
        %v4003 = vld [vmem:[%s3999 + $0xc] sm:$0xf]
        %s4004 = scalar_lea.vmem %s1391, 2
        %v4005 = vld [vmem:[%s4004] sm:$0x1]
        %v4007 = vlaneseq
        %v4008 = vshrl.u32 %v4007, 7
        %v4009 = vsub.s32 0, %v4008
        %v4010 = vrot.slane %v4005, %v4009
        %v4016 = vunpack.c.l.b16 %v4000
        %v4017 = vunpack.c.l.b16 %v4001
        %v4018 = vunpack.c.l.b16 %v4002
        %v4019 = vunpack.c.l.b16 %v4003
        %v4020 = vpack.c.b16 %v4017, %v4016
        %v4021 = vpack.c.b16 %v4019, %v4018
        %4024 = vmatprep.subr.bf16.mxu0 0
        %4025 = vmatpush1.bf16.msra.mxu0 0
        %4026 = vmatprep.subr.bf16.mxu0 0
        %4027 = vmatpush1.bf16.msra.mxu0 0
        %4028 = vmatprep.subr.bf16.mxu0 0
        %4029 = vmatpush1.bf16.msra.mxu0 0
        %4030 = vmatprep.subr.bf16.mxu0 0
        %4031 = vmatpush1.bf16.msra.mxu0 0
        %4032 = vmatprep.subr.bf16.mxu0 0
        %4033 = vmatpush1.bf16.msra.mxu0 0
        %4034 = vmatprep.subr.bf16.mxu0 0
        %4035 = vmatpush1.bf16.msra.mxu0 0
        %4036 = vmatprep.subr.bf16.mxu0 0
        %4037 = vmatpush1.bf16.msra.mxu0 %v4021
        %4038 = vmatprep.subr.bf16.mxu0 0
        %4039 = vmatpush1.bf16.msra.mxu0 %v4020
        %4040 = vmatprep.subr.bf16.mxu0 0
        %4041 = vmatpush2.bf16.msra.mxu0 0
        %4042 = vmatprep.subr.bf16.mxu0 0
        %4043 = vmatpush2.bf16.msra.mxu0 0
        %4044 = vmatprep.subr.bf16.mxu0 0
        %4045 = vmatpush2.bf16.msra.mxu0 0
        %4046 = vmatprep.subr.bf16.mxu0 0
        %4047 = vmatpush2.bf16.msra.mxu0 0
        %4048 = vmatprep.subr.bf16.mxu0 0
        %4049 = vmatpush2.bf16.msra.mxu0 0
        %4050 = vmatprep.subr.bf16.mxu0 0
        %4051 = vmatpush2.bf16.msra.mxu0 0
        %4052 = vmatprep.subr.bf16.mxu0 0
        %4053 = vmatpush2.bf16.msra.mxu0 0
        %4054 = vmatprep.subr.bf16.mxu0 0
        %4055 = vmatpush2.bf16.msra.mxu0 0
        %4056 = vmatprep.mubr.bf16.mxu0 0
        %4057 = vmatmul.mubr.bf16.gmra.mxu0 %v3221
        %v4058 = vpop.f32.mrf.mxu0
        %v4059 = vadd.f32 %v4010, %v4058
        %v4060 = vpop.f32.mrf.mxu0
        %v4061 = vpop.f32.mrf.mxu0
        %v4062 = vadd.f32 %v4010, %v4061
        %v4063 = vpop.f32.mrf.mxu0
        %4064 = vdwg.mxu0
        %s4065 = scalar_lea.vmem %s1396, 32
        %v4066 = vld [vmem:[%s4065] sm:$0xf]
        %v4067 = vld [vmem:[%s4065 + $0x4] sm:$0xf]
        %v4068 = vld [vmem:[%s4065 + $0x8] sm:$0xf]
        %v4069 = vld [vmem:[%s4065 + $0xc] sm:$0xf]
        %s4070 = scalar_lea.vmem %s1400, 2
        %v4071 = vld [vmem:[%s4070] sm:$0x1]
        %v4073 = vlaneseq
        %v4074 = vshrl.u32 %v4073, 7
        %v4075 = vsub.s32 0, %v4074
        %v4076 = vrot.slane %v4071, %v4075
        %v4082 = vunpack.c.l.b16 %v4066
        %v4083 = vunpack.c.l.b16 %v4067
        %v4084 = vunpack.c.l.b16 %v4068
        %v4085 = vunpack.c.l.b16 %v4069
        %v4086 = vpack.c.b16 %v4083, %v4082
        %v4087 = vpack.c.b16 %v4085, %v4084
        %4090 = vmatprep.subr.bf16.mxu0 0
        %4091 = vmatpush1.bf16.msra.mxu0 0
        %4092 = vmatprep.subr.bf16.mxu0 0
        %4093 = vmatpush1.bf16.msra.mxu0 0
        %4094 = vmatprep.subr.bf16.mxu0 0
        %4095 = vmatpush1.bf16.msra.mxu0 0
        %4096 = vmatprep.subr.bf16.mxu0 0
        %4097 = vmatpush1.bf16.msra.mxu0 0
        %4098 = vmatprep.subr.bf16.mxu0 0
        %4099 = vmatpush1.bf16.msra.mxu0 0
        %4100 = vmatprep.subr.bf16.mxu0 0
        %4101 = vmatpush1.bf16.msra.mxu0 0
        %4102 = vmatprep.subr.bf16.mxu0 0
        %4103 = vmatpush1.bf16.msra.mxu0 %v4087
        %4104 = vmatprep.subr.bf16.mxu0 0
        %4105 = vmatpush1.bf16.msra.mxu0 %v4086
        %4106 = vmatprep.subr.bf16.mxu0 0
        %4107 = vmatpush2.bf16.msra.mxu0 0
        %4108 = vmatprep.subr.bf16.mxu0 0
        %4109 = vmatpush2.bf16.msra.mxu0 0
        %4110 = vmatprep.subr.bf16.mxu0 0
        %4111 = vmatpush2.bf16.msra.mxu0 0
        %4112 = vmatprep.subr.bf16.mxu0 0
        %4113 = vmatpush2.bf16.msra.mxu0 0
        %4114 = vmatprep.subr.bf16.mxu0 0
        %4115 = vmatpush2.bf16.msra.mxu0 0
        %4116 = vmatprep.subr.bf16.mxu0 0
        %4117 = vmatpush2.bf16.msra.mxu0 0
        %4118 = vmatprep.subr.bf16.mxu0 0
        %4119 = vmatpush2.bf16.msra.mxu0 0
        %4120 = vmatprep.subr.bf16.mxu0 0
        %4121 = vmatpush2.bf16.msra.mxu0 0
        %4122 = vmatprep.mubr.bf16.mxu0 0
        %4123 = vmatmul.mubr.bf16.gmra.mxu0 %v3221
        %v4124 = vpop.f32.mrf.mxu0
        %v4125 = vadd.f32 %v4076, %v4124
        %v4126 = vpop.f32.mrf.mxu0
        %v4127 = vpop.f32.mrf.mxu0
        %v4128 = vadd.f32 %v4076, %v4127
        %v4129 = vpop.f32.mrf.mxu0
        %4130 = vdwg.mxu0
        %v4131 = vpack.c.bf16 %v3996, %v3993
        %4132 = vxpose.xlu0.b32.start [1/16] %v4059, 128
        %4133 = vxpose.xlu0.b32.cont [2/16] %v4062, 128
        %4134 = vxpose.xlu0.b32.cont [3/16] 0.0, 128
        %4135 = vxpose.xlu0.b32.cont [4/16] 0.0, 128
        %4136 = vxpose.xlu0.b32.cont [5/16] 0.0, 128
        %4137 = vxpose.xlu0.b32.cont [6/16] 0.0, 128
        %4138 = vxpose.xlu0.b32.cont [7/16] 0.0, 128
        %4139 = vxpose.xlu0.b32.cont [8/16] 0.0, 128
        %4140 = vxpose.xlu0.b32.cont [9/16] 0.0, 128
        %4141 = vxpose.xlu0.b32.cont [10/16] 0.0, 128
        %4142 = vxpose.xlu0.b32.cont [11/16] 0.0, 128
        %4143 = vxpose.xlu0.b32.cont [12/16] 0.0, 128
        %4144 = vxpose.xlu0.b32.cont [13/16] 0.0, 128
        %4145 = vxpose.xlu0.b32.cont [14/16] 0.0, 128
        %4146 = vxpose.xlu0.b32.cont [15/16] 0.0, 128
        %4147 = vxpose.xlu0.b32.end [16/16] 0.0, 128
        %v4148 = vpop.trf.xlu0
        %v4149 = vpop.trf.xlu0
        %v4150 = vpop.trf.xlu0
        %v4151 = vpop.trf.xlu0
        %v4152 = vpop.trf.xlu0
        %v4153 = vpop.trf.xlu0
        %v4154 = vpop.trf.xlu0
        %v4155 = vpop.trf.xlu0
        %v4156 = vpop.trf.xlu0
        %v4157 = vpop.trf.xlu0
        %v4158 = vpop.trf.xlu0
        %v4159 = vpop.trf.xlu0
        %v4160 = vpop.trf.xlu0
        %v4161 = vpop.trf.xlu0
        %v4162 = vpop.trf.xlu0
        %v4163 = vpop.trf.xlu0
        %v4164 = vpack.c.bf16 %v4148, %v4148
        %v4166 = vsel %vm1691, %v4131, 0
        %v4169 = vsel %vm1695, %v4164, 0
        %4171 = vmatprep.subr.bf16.mxu0 0
        %4172 = vmatpush1.bf16.msra.mxu0 0
        %4173 = vmatprep.subr.bf16.mxu0 0
        %4174 = vmatpush1.bf16.msra.mxu0 0
        %4175 = vmatprep.subr.bf16.mxu0 0
        %4176 = vmatpush1.bf16.msra.mxu0 0
        %4177 = vmatprep.subr.bf16.mxu0 0
        %4178 = vmatpush1.bf16.msra.mxu0 0
        %4179 = vmatprep.subr.bf16.mxu0 0
        %4180 = vmatpush1.bf16.msra.mxu0 0
        %4181 = vmatprep.subr.bf16.mxu0 0
        %4182 = vmatpush1.bf16.msra.mxu0 0
        %4183 = vmatprep.subr.bf16.mxu0 0
        %4184 = vmatpush1.bf16.msra.mxu0 0
        %4185 = vmatprep.subr.bf16.mxu0 0
        %4186 = vmatpush1.bf16.msra.mxu0 %v4169
        %4187 = vmatprep.subr.bf16.mxu0 0
        %4188 = vmatpush2.bf16.msra.mxu0 0
        %4189 = vmatprep.subr.bf16.mxu0 0
        %4190 = vmatpush2.bf16.msra.mxu0 0
        %4191 = vmatprep.subr.bf16.mxu0 0
        %4192 = vmatpush2.bf16.msra.mxu0 0
        %4193 = vmatprep.subr.bf16.mxu0 0
        %4194 = vmatpush2.bf16.msra.mxu0 0
        %4195 = vmatprep.subr.bf16.mxu0 0
        %4196 = vmatpush2.bf16.msra.mxu0 0
        %4197 = vmatprep.subr.bf16.mxu0 0
        %4198 = vmatpush2.bf16.msra.mxu0 0
        %4199 = vmatprep.subr.bf16.mxu0 0
        %4200 = vmatpush2.bf16.msra.mxu0 0
        %4201 = vmatprep.subr.bf16.mxu0 0
        %4202 = vmatpush2.bf16.msra.mxu0 0
        %4203 = vmatprep.mubr.bf16.mxu0 0
        %4204 = vmatmul.mubr.bf16.gmra.mxu0 %v4166
        %v4205 = vpop.f32.mrf.mxu0
        %v4206 = vadd.f32 0.0, %v4205
        %v4207 = vpop.f32.mrf.mxu0
        %v4208 = vpop.f32.mrf.mxu0
        %v4209 = vadd.f32 0.0, %v4208
        %v4210 = vpop.f32.mrf.mxu0
        %4211 = vdwg.mxu0
        %v4212 = vmul.f32 %v4206, 0.35355338
        %v4213 = vmul.f32 %v4209, 0.35355338
        %v4214 = vsel %vm3411, -1e+09, %v4212
        %v4215 = vsel %vm3412, -1e+09, %v4213
        %v4216 = vsel %vm1746, %v4214, -inf
        %4217 = vmax.xlane.f32.xlu0 %v4216
        %v4218 = vpop.xlane.xlu0 %4217
        %v4219 = vsel %vm1746, %v4215, -inf
        %4220 = vmax.xlane.f32.xlu0 %v4219
        %v4221 = vpop.xlane.xlu0 %4220
        %v4222 = vsub.f32 %v4214, %v4218
        %v4223 = vsub.f32 %v4215, %v4221
        %v4224 = vmul.f32 %v4222, 1.442695
        %v4225 = vpow.pop %v4224
        %v4226 = vmul.f32 %v4223, 1.442695
        %v4227 = vpow.pop %v4226
        %v4228 = vsel %vm1746, %v4225, 0.0
        %4229 = vadd.xlane.f32.xlu0 %v4228
        %v4230 = vpop.xlane.xlu0 %4229
        %v4231 = vsel %vm1746, %v4227, 0.0
        %4232 = vadd.xlane.f32.xlu0 %v4231
        %v4233 = vpop.xlane.xlu0 %4232
        %v4234 = vrcp.pop %v4230
        %v4235 = vrcp.pop %v4233
        %v4236 = vmul.f32 %v4225, %v4234
        %v4237 = vmul.f32 %v4227, %v4235
        %v4238 = vpack.c.bf16 %v4237, %v4236
        %v4239 = vpack.c.bf16 %v4128, %v4125
        %v4241 = vsel %vm1746, %v4238, 0
        %4243 = vmatprep.subr.bf16.mxu0 0
        %4244 = vmatpush1.bf16.msra.mxu0 0
        %4245 = vmatprep.subr.bf16.mxu0 0
        %4246 = vmatpush1.bf16.msra.mxu0 0
        %4247 = vmatprep.subr.bf16.mxu0 0
        %4248 = vmatpush1.bf16.msra.mxu0 0
        %4249 = vmatprep.subr.bf16.mxu0 0
        %4250 = vmatpush1.bf16.msra.mxu0 0
        %4251 = vmatprep.subr.bf16.mxu0 0
        %4252 = vmatpush1.bf16.msra.mxu0 0
        %4253 = vmatprep.subr.bf16.mxu0 0
        %4254 = vmatpush1.bf16.msra.mxu0 0
        %4255 = vmatprep.subr.bf16.mxu0 0
        %4256 = vmatpush1.bf16.msra.mxu0 0
        %4257 = vmatprep.subr.bf16.mxu0 0
        %4258 = vmatpush1.bf16.msra.mxu0 %v4239
        %4259 = vmatprep.subr.bf16.mxu0 0
        %4260 = vmatpush2.bf16.msra.mxu0 0
        %4261 = vmatprep.subr.bf16.mxu0 0
        %4262 = vmatpush2.bf16.msra.mxu0 0
        %4263 = vmatprep.subr.bf16.mxu0 0
        %4264 = vmatpush2.bf16.msra.mxu0 0
        %4265 = vmatprep.subr.bf16.mxu0 0
        %4266 = vmatpush2.bf16.msra.mxu0 0
        %4267 = vmatprep.subr.bf16.mxu0 0
        %4268 = vmatpush2.bf16.msra.mxu0 0
        %4269 = vmatprep.subr.bf16.mxu0 0
        %4270 = vmatpush2.bf16.msra.mxu0 0
        %4271 = vmatprep.subr.bf16.mxu0 0
        %4272 = vmatpush2.bf16.msra.mxu0 0
        %4273 = vmatprep.subr.bf16.mxu0 0
        %4274 = vmatpush2.bf16.msra.mxu0 0
        %4275 = vmatprep.mubr.bf16.mxu0 0
        %4276 = vmatmul.mubr.bf16.gmra.mxu0 %v4241
        %v4277 = vpop.f32.mrf.mxu0
        %v4278 = vadd.f32 0.0, %v4277
        %v4279 = vpop.f32.mrf.mxu0
        %v4280 = vpop.f32.mrf.mxu0
        %v4281 = vadd.f32 0.0, %v4280
        %v4282 = vpop.f32.mrf.mxu0
        %4283 = vdwg.mxu0
        %v4284 = vpack.c.bf16 %v4281, %v4278
        %s4285 = scalar_lea.vmem %s1405, 8
        %v4286 = vld [vmem:[%s4285] sm:$0xf]
        %v4288 = vsel %vm1691, %v4284, 0
        %v4291 = vsel %vm1695, %v4286, 0
        %4293 = vmatprep.subr.bf16.mxu0 0
        %4294 = vmatpush1.bf16.msra.mxu0 0
        %4295 = vmatprep.subr.bf16.mxu0 0
        %4296 = vmatpush1.bf16.msra.mxu0 0
        %4297 = vmatprep.subr.bf16.mxu0 0
        %4298 = vmatpush1.bf16.msra.mxu0 0
        %4299 = vmatprep.subr.bf16.mxu0 0
        %4300 = vmatpush1.bf16.msra.mxu0 0
        %4301 = vmatprep.subr.bf16.mxu0 0
        %4302 = vmatpush1.bf16.msra.mxu0 0
        %4303 = vmatprep.subr.bf16.mxu0 0
        %4304 = vmatpush1.bf16.msra.mxu0 0
        %4305 = vmatprep.subr.bf16.mxu0 0
        %4306 = vmatpush1.bf16.msra.mxu0 0
        %4307 = vmatprep.subr.bf16.mxu0 0
        %4308 = vmatpush1.bf16.msra.mxu0 %v4291
        %4309 = vmatprep.subr.bf16.mxu0 0
        %4310 = vmatpush2.bf16.msra.mxu0 0
        %4311 = vmatprep.subr.bf16.mxu0 0
        %4312 = vmatpush2.bf16.msra.mxu0 0
        %4313 = vmatprep.subr.bf16.mxu0 0
        %4314 = vmatpush2.bf16.msra.mxu0 0
        %4315 = vmatprep.subr.bf16.mxu0 0
        %4316 = vmatpush2.bf16.msra.mxu0 0
        %4317 = vmatprep.subr.bf16.mxu0 0
        %4318 = vmatpush2.bf16.msra.mxu0 0
        %4319 = vmatprep.subr.bf16.mxu0 0
        %4320 = vmatpush2.bf16.msra.mxu0 0
        %4321 = vmatprep.subr.bf16.mxu0 0
        %4322 = vmatpush2.bf16.msra.mxu0 0
        %4323 = vmatprep.subr.bf16.mxu0 0
        %4324 = vmatpush2.bf16.msra.mxu0 0
        %4325 = vmatprep.mubr.bf16.mxu0 0
        %4326 = vmatmul.mubr.bf16.gmra.mxu0 %v4288
        %v4327 = vpop.f32.mrf.mxu0
        %v4328 = vadd.f32 0.0, %v4327
        %v4329 = vpop.f32.mrf.mxu0
        %v4330 = vpop.f32.mrf.mxu0
        %v4331 = vadd.f32 0.0, %v4330
        %v4332 = vpop.f32.mrf.mxu0
        %4333 = vdwg.mxu0
        %v4334 = vadd.f32 %v3927, %v4328
        %v4335 = vadd.f32 %v3930, %v4331
        %s4336 = scalar_lea.vmem %s1378, 48
        %v4337 = vld [vmem:[%s4336] sm:$0xf]
        %v4338 = vld [vmem:[%s4336 + $0x4] sm:$0xf]
        %v4339 = vld [vmem:[%s4336 + $0x8] sm:$0xf]
        %v4340 = vld [vmem:[%s4336 + $0xc] sm:$0xf]
        %s4341 = scalar_lea.vmem %s1382, 3
        %v4342 = vld [vmem:[%s4341] sm:$0x1]
        %v4344 = vlaneseq
        %v4345 = vshrl.u32 %v4344, 7
        %v4346 = vsub.s32 0, %v4345
        %v4347 = vrot.slane %v4342, %v4346
        %v4353 = vunpack.c.l.b16 %v4337
        %v4354 = vunpack.c.l.b16 %v4338
        %v4355 = vunpack.c.l.b16 %v4339
        %v4356 = vunpack.c.l.b16 %v4340
        %v4357 = vpack.c.b16 %v4354, %v4353
        %v4358 = vpack.c.b16 %v4356, %v4355
        %4361 = vmatprep.subr.bf16.mxu0 0
        %4362 = vmatpush1.bf16.msra.mxu0 0
        %4363 = vmatprep.subr.bf16.mxu0 0
        %4364 = vmatpush1.bf16.msra.mxu0 0
        %4365 = vmatprep.subr.bf16.mxu0 0
        %4366 = vmatpush1.bf16.msra.mxu0 0
        %4367 = vmatprep.subr.bf16.mxu0 0
        %4368 = vmatpush1.bf16.msra.mxu0 0
        %4369 = vmatprep.subr.bf16.mxu0 0
        %4370 = vmatpush1.bf16.msra.mxu0 0
        %4371 = vmatprep.subr.bf16.mxu0 0
        %4372 = vmatpush1.bf16.msra.mxu0 0
        %4373 = vmatprep.subr.bf16.mxu0 0
        %4374 = vmatpush1.bf16.msra.mxu0 %v4358
        %4375 = vmatprep.subr.bf16.mxu0 0
        %4376 = vmatpush1.bf16.msra.mxu0 %v4357
        %4377 = vmatprep.subr.bf16.mxu0 0
        %4378 = vmatpush2.bf16.msra.mxu0 0
        %4379 = vmatprep.subr.bf16.mxu0 0
        %4380 = vmatpush2.bf16.msra.mxu0 0
        %4381 = vmatprep.subr.bf16.mxu0 0
        %4382 = vmatpush2.bf16.msra.mxu0 0
        %4383 = vmatprep.subr.bf16.mxu0 0
        %4384 = vmatpush2.bf16.msra.mxu0 0
        %4385 = vmatprep.subr.bf16.mxu0 0
        %4386 = vmatpush2.bf16.msra.mxu0 0
        %4387 = vmatprep.subr.bf16.mxu0 0
        %4388 = vmatpush2.bf16.msra.mxu0 0
        %4389 = vmatprep.subr.bf16.mxu0 0
        %4390 = vmatpush2.bf16.msra.mxu0 0
        %4391 = vmatprep.subr.bf16.mxu0 0
        %4392 = vmatpush2.bf16.msra.mxu0 0
        %4393 = vmatprep.mubr.bf16.mxu0 0
        %4394 = vmatmul.mubr.bf16.gmra.mxu0 %v3154
        %v4395 = vpop.f32.mrf.mxu0
        %v4396 = vadd.f32 %v4347, %v4395
        %v4397 = vpop.f32.mrf.mxu0
        %v4398 = vpop.f32.mrf.mxu0
        %v4399 = vadd.f32 %v4347, %v4398
        %v4400 = vpop.f32.mrf.mxu0
        %4401 = vdwg.mxu0
        %s4402 = scalar_lea.vmem %s1387, 48
        %v4403 = vld [vmem:[%s4402] sm:$0xf]
        %v4404 = vld [vmem:[%s4402 + $0x4] sm:$0xf]
        %v4405 = vld [vmem:[%s4402 + $0x8] sm:$0xf]
        %v4406 = vld [vmem:[%s4402 + $0xc] sm:$0xf]
        %s4407 = scalar_lea.vmem %s1391, 3
        %v4408 = vld [vmem:[%s4407] sm:$0x1]
        %v4410 = vlaneseq
        %v4411 = vshrl.u32 %v4410, 7
        %v4412 = vsub.s32 0, %v4411
        %v4413 = vrot.slane %v4408, %v4412
        %v4419 = vunpack.c.l.b16 %v4403
        %v4420 = vunpack.c.l.b16 %v4404
        %v4421 = vunpack.c.l.b16 %v4405
        %v4422 = vunpack.c.l.b16 %v4406
        %v4423 = vpack.c.b16 %v4420, %v4419
        %v4424 = vpack.c.b16 %v4422, %v4421
        %4427 = vmatprep.subr.bf16.mxu0 0
        %4428 = vmatpush1.bf16.msra.mxu0 0
        %4429 = vmatprep.subr.bf16.mxu0 0
        %4430 = vmatpush1.bf16.msra.mxu0 0
        %4431 = vmatprep.subr.bf16.mxu0 0
        %4432 = vmatpush1.bf16.msra.mxu0 0
        %4433 = vmatprep.subr.bf16.mxu0 0
        %4434 = vmatpush1.bf16.msra.mxu0 0
        %4435 = vmatprep.subr.bf16.mxu0 0
        %4436 = vmatpush1.bf16.msra.mxu0 0
        %4437 = vmatprep.subr.bf16.mxu0 0
        %4438 = vmatpush1.bf16.msra.mxu0 0
        %4439 = vmatprep.subr.bf16.mxu0 0
        %4440 = vmatpush1.bf16.msra.mxu0 %v4424
        %4441 = vmatprep.subr.bf16.mxu0 0
        %4442 = vmatpush1.bf16.msra.mxu0 %v4423
        %4443 = vmatprep.subr.bf16.mxu0 0
        %4444 = vmatpush2.bf16.msra.mxu0 0
        %4445 = vmatprep.subr.bf16.mxu0 0
        %4446 = vmatpush2.bf16.msra.mxu0 0
        %4447 = vmatprep.subr.bf16.mxu0 0
        %4448 = vmatpush2.bf16.msra.mxu0 0
        %4449 = vmatprep.subr.bf16.mxu0 0
        %4450 = vmatpush2.bf16.msra.mxu0 0
        %4451 = vmatprep.subr.bf16.mxu0 0
        %4452 = vmatpush2.bf16.msra.mxu0 0
        %4453 = vmatprep.subr.bf16.mxu0 0
        %4454 = vmatpush2.bf16.msra.mxu0 0
        %4455 = vmatprep.subr.bf16.mxu0 0
        %4456 = vmatpush2.bf16.msra.mxu0 0
        %4457 = vmatprep.subr.bf16.mxu0 0
        %4458 = vmatpush2.bf16.msra.mxu0 0
        %4459 = vmatprep.mubr.bf16.mxu0 0
        %4460 = vmatmul.mubr.bf16.gmra.mxu0 %v3221
        %v4461 = vpop.f32.mrf.mxu0
        %v4462 = vadd.f32 %v4413, %v4461
        %v4463 = vpop.f32.mrf.mxu0
        %v4464 = vpop.f32.mrf.mxu0
        %v4465 = vadd.f32 %v4413, %v4464
        %v4466 = vpop.f32.mrf.mxu0
        %4467 = vdwg.mxu0
        %s4468 = scalar_lea.vmem %s1396, 48
        %v4469 = vld [vmem:[%s4468] sm:$0xf]
        %v4470 = vld [vmem:[%s4468 + $0x4] sm:$0xf]
        %v4471 = vld [vmem:[%s4468 + $0x8] sm:$0xf]
        %v4472 = vld [vmem:[%s4468 + $0xc] sm:$0xf]
        %s4473 = scalar_lea.vmem %s1400, 3
        %v4474 = vld [vmem:[%s4473] sm:$0x1]
        %v4476 = vlaneseq
        %v4477 = vshrl.u32 %v4476, 7
        %v4478 = vsub.s32 0, %v4477
        %v4479 = vrot.slane %v4474, %v4478
        %v4485 = vunpack.c.l.b16 %v4469
        %v4486 = vunpack.c.l.b16 %v4470
        %v4487 = vunpack.c.l.b16 %v4471
        %v4488 = vunpack.c.l.b16 %v4472
        %v4489 = vpack.c.b16 %v4486, %v4485
        %v4490 = vpack.c.b16 %v4488, %v4487
        %4493 = vmatprep.subr.bf16.mxu0 0
        %4494 = vmatpush1.bf16.msra.mxu0 0
        %4495 = vmatprep.subr.bf16.mxu0 0
        %4496 = vmatpush1.bf16.msra.mxu0 0
        %4497 = vmatprep.subr.bf16.mxu0 0
        %4498 = vmatpush1.bf16.msra.mxu0 0
        %4499 = vmatprep.subr.bf16.mxu0 0
        %4500 = vmatpush1.bf16.msra.mxu0 0
        %4501 = vmatprep.subr.bf16.mxu0 0
        %4502 = vmatpush1.bf16.msra.mxu0 0
        %4503 = vmatprep.subr.bf16.mxu0 0
        %4504 = vmatpush1.bf16.msra.mxu0 0
        %4505 = vmatprep.subr.bf16.mxu0 0
        %4506 = vmatpush1.bf16.msra.mxu0 %v4490
        %4507 = vmatprep.subr.bf16.mxu0 0
        %4508 = vmatpush1.bf16.msra.mxu0 %v4489
        %4509 = vmatprep.subr.bf16.mxu0 0
        %4510 = vmatpush2.bf16.msra.mxu0 0
        %4511 = vmatprep.subr.bf16.mxu0 0
        %4512 = vmatpush2.bf16.msra.mxu0 0
        %4513 = vmatprep.subr.bf16.mxu0 0
        %4514 = vmatpush2.bf16.msra.mxu0 0
        %4515 = vmatprep.subr.bf16.mxu0 0
        %4516 = vmatpush2.bf16.msra.mxu0 0
        %4517 = vmatprep.subr.bf16.mxu0 0
        %4518 = vmatpush2.bf16.msra.mxu0 0
        %4519 = vmatprep.subr.bf16.mxu0 0
        %4520 = vmatpush2.bf16.msra.mxu0 0
        %4521 = vmatprep.subr.bf16.mxu0 0
        %4522 = vmatpush2.bf16.msra.mxu0 0
        %4523 = vmatprep.subr.bf16.mxu0 0
        %4524 = vmatpush2.bf16.msra.mxu0 0
        %4525 = vmatprep.mubr.bf16.mxu0 0
        %4526 = vmatmul.mubr.bf16.gmra.mxu0 %v3221
        %v4527 = vpop.f32.mrf.mxu0
        %v4528 = vadd.f32 %v4479, %v4527
        %v4529 = vpop.f32.mrf.mxu0
        %v4530 = vpop.f32.mrf.mxu0
        %v4531 = vadd.f32 %v4479, %v4530
        %v4532 = vpop.f32.mrf.mxu0
        %4533 = vdwg.mxu0
        %v4534 = vpack.c.bf16 %v4399, %v4396
        %4535 = vxpose.xlu0.b32.start [1/16] %v4462, 128
        %4536 = vxpose.xlu0.b32.cont [2/16] %v4465, 128
        %4537 = vxpose.xlu0.b32.cont [3/16] 0.0, 128
        %4538 = vxpose.xlu0.b32.cont [4/16] 0.0, 128
        %4539 = vxpose.xlu0.b32.cont [5/16] 0.0, 128
        %4540 = vxpose.xlu0.b32.cont [6/16] 0.0, 128
        %4541 = vxpose.xlu0.b32.cont [7/16] 0.0, 128
        %4542 = vxpose.xlu0.b32.cont [8/16] 0.0, 128
        %4543 = vxpose.xlu0.b32.cont [9/16] 0.0, 128
        %4544 = vxpose.xlu0.b32.cont [10/16] 0.0, 128
        %4545 = vxpose.xlu0.b32.cont [11/16] 0.0, 128
        %4546 = vxpose.xlu0.b32.cont [12/16] 0.0, 128
        %4547 = vxpose.xlu0.b32.cont [13/16] 0.0, 128
        %4548 = vxpose.xlu0.b32.cont [14/16] 0.0, 128
        %4549 = vxpose.xlu0.b32.cont [15/16] 0.0, 128
        %4550 = vxpose.xlu0.b32.end [16/16] 0.0, 128
        %v4551 = vpop.trf.xlu0
        %v4552 = vpop.trf.xlu0
        %v4553 = vpop.trf.xlu0
        %v4554 = vpop.trf.xlu0
        %v4555 = vpop.trf.xlu0
        %v4556 = vpop.trf.xlu0
        %v4557 = vpop.trf.xlu0
        %v4558 = vpop.trf.xlu0
        %v4559 = vpop.trf.xlu0
        %v4560 = vpop.trf.xlu0
        %v4561 = vpop.trf.xlu0
        %v4562 = vpop.trf.xlu0
        %v4563 = vpop.trf.xlu0
        %v4564 = vpop.trf.xlu0
        %v4565 = vpop.trf.xlu0
        %v4566 = vpop.trf.xlu0
        %v4567 = vpack.c.bf16 %v4551, %v4551
        %v4569 = vsel %vm1691, %v4534, 0
        %v4572 = vsel %vm1695, %v4567, 0
        %4574 = vmatprep.subr.bf16.mxu0 0
        %4575 = vmatpush1.bf16.msra.mxu0 0
        %4576 = vmatprep.subr.bf16.mxu0 0
        %4577 = vmatpush1.bf16.msra.mxu0 0
        %4578 = vmatprep.subr.bf16.mxu0 0
        %4579 = vmatpush1.bf16.msra.mxu0 0
        %4580 = vmatprep.subr.bf16.mxu0 0
        %4581 = vmatpush1.bf16.msra.mxu0 0
        %4582 = vmatprep.subr.bf16.mxu0 0
        %4583 = vmatpush1.bf16.msra.mxu0 0
        %4584 = vmatprep.subr.bf16.mxu0 0
        %4585 = vmatpush1.bf16.msra.mxu0 0
        %4586 = vmatprep.subr.bf16.mxu0 0
        %4587 = vmatpush1.bf16.msra.mxu0 0
        %4588 = vmatprep.subr.bf16.mxu0 0
        %4589 = vmatpush1.bf16.msra.mxu0 %v4572
        %4590 = vmatprep.subr.bf16.mxu0 0
        %4591 = vmatpush2.bf16.msra.mxu0 0
        %4592 = vmatprep.subr.bf16.mxu0 0
        %4593 = vmatpush2.bf16.msra.mxu0 0
        %4594 = vmatprep.subr.bf16.mxu0 0
        %4595 = vmatpush2.bf16.msra.mxu0 0
        %4596 = vmatprep.subr.bf16.mxu0 0
        %4597 = vmatpush2.bf16.msra.mxu0 0
        %4598 = vmatprep.subr.bf16.mxu0 0
        %4599 = vmatpush2.bf16.msra.mxu0 0
        %4600 = vmatprep.subr.bf16.mxu0 0
        %4601 = vmatpush2.bf16.msra.mxu0 0
        %4602 = vmatprep.subr.bf16.mxu0 0
        %4603 = vmatpush2.bf16.msra.mxu0 0
        %4604 = vmatprep.subr.bf16.mxu0 0
        %4605 = vmatpush2.bf16.msra.mxu0 0
        %4606 = vmatprep.mubr.bf16.mxu0 0
        %4607 = vmatmul.mubr.bf16.gmra.mxu0 %v4569
        %v4608 = vpop.f32.mrf.mxu0
        %v4609 = vadd.f32 0.0, %v4608
        %v4610 = vpop.f32.mrf.mxu0
        %v4611 = vpop.f32.mrf.mxu0
        %v4612 = vadd.f32 0.0, %v4611
        %v4613 = vpop.f32.mrf.mxu0
        %4614 = vdwg.mxu0
        %v4615 = vmul.f32 %v4609, 0.35355338
        %v4616 = vmul.f32 %v4612, 0.35355338
        %v4617 = vsel %vm3411, -1e+09, %v4615
        %v4618 = vsel %vm3412, -1e+09, %v4616
        %v4619 = vsel %vm1746, %v4617, -inf
        %4620 = vmax.xlane.f32.xlu0 %v4619
        %v4621 = vpop.xlane.xlu0 %4620
        %v4622 = vsel %vm1746, %v4618, -inf
        %4623 = vmax.xlane.f32.xlu0 %v4622
        %v4624 = vpop.xlane.xlu0 %4623
        %v4625 = vsub.f32 %v4617, %v4621
        %v4626 = vsub.f32 %v4618, %v4624
        %v4627 = vmul.f32 %v4625, 1.442695
        %v4628 = vpow.pop %v4627
        %v4629 = vmul.f32 %v4626, 1.442695
        %v4630 = vpow.pop %v4629
        %v4631 = vsel %vm1746, %v4628, 0.0
        %4632 = vadd.xlane.f32.xlu0 %v4631
        %v4633 = vpop.xlane.xlu0 %4632
        %v4634 = vsel %vm1746, %v4630, 0.0
        %4635 = vadd.xlane.f32.xlu0 %v4634
        %v4636 = vpop.xlane.xlu0 %4635
        %v4637 = vrcp.pop %v4633
        %v4638 = vrcp.pop %v4636
        %v4639 = vmul.f32 %v4628, %v4637
        %v4640 = vmul.f32 %v4630, %v4638
        %v4641 = vpack.c.bf16 %v4640, %v4639
        %v4642 = vpack.c.bf16 %v4531, %v4528
        %v4644 = vsel %vm1746, %v4641, 0
        %4646 = vmatprep.subr.bf16.mxu0 0
        %4647 = vmatpush1.bf16.msra.mxu0 0
        %4648 = vmatprep.subr.bf16.mxu0 0
        %4649 = vmatpush1.bf16.msra.mxu0 0
        %4650 = vmatprep.subr.bf16.mxu0 0
        %4651 = vmatpush1.bf16.msra.mxu0 0
        %4652 = vmatprep.subr.bf16.mxu0 0
        %4653 = vmatpush1.bf16.msra.mxu0 0
        %4654 = vmatprep.subr.bf16.mxu0 0
        %4655 = vmatpush1.bf16.msra.mxu0 0
        %4656 = vmatprep.subr.bf16.mxu0 0
        %4657 = vmatpush1.bf16.msra.mxu0 0
        %4658 = vmatprep.subr.bf16.mxu0 0
        %4659 = vmatpush1.bf16.msra.mxu0 0
        %4660 = vmatprep.subr.bf16.mxu0 0
        %4661 = vmatpush1.bf16.msra.mxu0 %v4642
        %4662 = vmatprep.subr.bf16.mxu0 0
        %4663 = vmatpush2.bf16.msra.mxu0 0
        %4664 = vmatprep.subr.bf16.mxu0 0
        %4665 = vmatpush2.bf16.msra.mxu0 0
        %4666 = vmatprep.subr.bf16.mxu0 0
        %4667 = vmatpush2.bf16.msra.mxu0 0
        %4668 = vmatprep.subr.bf16.mxu0 0
        %4669 = vmatpush2.bf16.msra.mxu0 0
        %4670 = vmatprep.subr.bf16.mxu0 0
        %4671 = vmatpush2.bf16.msra.mxu0 0
        %4672 = vmatprep.subr.bf16.mxu0 0
        %4673 = vmatpush2.bf16.msra.mxu0 0
        %4674 = vmatprep.subr.bf16.mxu0 0
        %4675 = vmatpush2.bf16.msra.mxu0 0
        %4676 = vmatprep.subr.bf16.mxu0 0
        %4677 = vmatpush2.bf16.msra.mxu0 0
        %4678 = vmatprep.mubr.bf16.mxu0 0
        %4679 = vmatmul.mubr.bf16.gmra.mxu0 %v4644
        %v4680 = vpop.f32.mrf.mxu0
        %v4681 = vadd.f32 0.0, %v4680
        %v4682 = vpop.f32.mrf.mxu0
        %v4683 = vpop.f32.mrf.mxu0
        %v4684 = vadd.f32 0.0, %v4683
        %v4685 = vpop.f32.mrf.mxu0
        %4686 = vdwg.mxu0
        %v4687 = vpack.c.bf16 %v4684, %v4681
        %s4688 = scalar_lea.vmem %s1405, 12
        %v4689 = vld [vmem:[%s4688] sm:$0xf]
        %v4691 = vsel %vm1691, %v4687, 0
        %v4694 = vsel %vm1695, %v4689, 0
        %4696 = vmatprep.subr.bf16.mxu0 0
        %4697 = vmatpush1.bf16.msra.mxu0 0
        %4698 = vmatprep.subr.bf16.mxu0 0
        %4699 = vmatpush1.bf16.msra.mxu0 0
        %4700 = vmatprep.subr.bf16.mxu0 0
        %4701 = vmatpush1.bf16.msra.mxu0 0
        %4702 = vmatprep.subr.bf16.mxu0 0
        %4703 = vmatpush1.bf16.msra.mxu0 0
        %4704 = vmatprep.subr.bf16.mxu0 0
        %4705 = vmatpush1.bf16.msra.mxu0 0
        %4706 = vmatprep.subr.bf16.mxu0 0
        %4707 = vmatpush1.bf16.msra.mxu0 0
        %4708 = vmatprep.subr.bf16.mxu0 0
        %4709 = vmatpush1.bf16.msra.mxu0 0
        %4710 = vmatprep.subr.bf16.mxu0 0
        %4711 = vmatpush1.bf16.msra.mxu0 %v4694
        %4712 = vmatprep.subr.bf16.mxu0 0
        %4713 = vmatpush2.bf16.msra.mxu0 0
        %4714 = vmatprep.subr.bf16.mxu0 0
        %4715 = vmatpush2.bf16.msra.mxu0 0
        %4716 = vmatprep.subr.bf16.mxu0 0
        %4717 = vmatpush2.bf16.msra.mxu0 0
        %4718 = vmatprep.subr.bf16.mxu0 0
        %4719 = vmatpush2.bf16.msra.mxu0 0
        %4720 = vmatprep.subr.bf16.mxu0 0
        %4721 = vmatpush2.bf16.msra.mxu0 0
        %4722 = vmatprep.subr.bf16.mxu0 0
        %4723 = vmatpush2.bf16.msra.mxu0 0
        %4724 = vmatprep.subr.bf16.mxu0 0
        %4725 = vmatpush2.bf16.msra.mxu0 0
        %4726 = vmatprep.subr.bf16.mxu0 0
        %4727 = vmatpush2.bf16.msra.mxu0 0
        %4728 = vmatprep.mubr.bf16.mxu0 0
        %4729 = vmatmul.mubr.bf16.gmra.mxu0 %v4691
        %v4730 = vpop.f32.mrf.mxu0
        %v4731 = vadd.f32 0.0, %v4730
        %v4732 = vpop.f32.mrf.mxu0
        %v4733 = vpop.f32.mrf.mxu0
        %v4734 = vadd.f32 0.0, %v4733
        %v4735 = vpop.f32.mrf.mxu0
        %4736 = vdwg.mxu0
        %v4737 = vadd.f32 %v4334, %v4731
        %v4738 = vadd.f32 %v4335, %v4734
        %v4739 = vld [vmem:[%s1408] sm:$0x1]
        %v4741 = vlaneseq
        %v4742 = vshrl.u32 %v4741, 7
        %v4743 = vsub.s32 0, %v4742
        %v4744 = vrot.slane %v4739, %v4743
        %v4746 = vadd.f32 %v4737, %v4744
        %v4747 = vadd.f32 %v4738, %v4744
        %v4748 = vadd.f32 %v3125, %v4746
        %v4749 = vadd.f32 %v3126, %v4747
        %v4750 = vsel %vm1484, %v4748, 0.0
        %4751 = vadd.xlane.f32.xlu0 %v4750
        %v4752 = vpop.xlane.xlu0 %4751
        %v4753 = vsel %vm1484, %v4749, 0.0
        %4754 = vadd.xlane.f32.xlu0 %v4753
        %v4755 = vpop.xlane.xlu0 %4754
        %v4756 = vmul.f32 %v4752, %v3088
        %v4757 = vmul.f32 %v4755, %v3088
        %v4758 = vsub.f32 %v4748, %v4756
        %v4759 = vsub.f32 %v4749, %v4757
        %v4760 = vmul.f32 %v4758, %v4758
        %v4761 = vmul.f32 %v4759, %v4759
        %v4762 = vsel %vm1484, %v4760, 0.0
        %4763 = vadd.xlane.f32.xlu0 %v4762
        %v4764 = vpop.xlane.xlu0 %4763
        %v4765 = vsel %vm1484, %v4761, 0.0
        %4766 = vadd.xlane.f32.xlu0 %v4765
        %v4767 = vpop.xlane.xlu0 %4766
        %v4768 = vmul.f32 %v4764, %v3088
        %v4769 = vmul.f32 %v4767, %v3088
        %v4770 = vadd.f32 %v4768, 1e-06
        %v4771 = vadd.f32 %v4769, 1e-06
        %v4772 = vrsqrt.pop %v4770
        %v4773 = vrsqrt.pop %v4771
        %v4774 = vmul.f32 %v4758, %v4772
        %v4775 = vmul.f32 %v4759, %v4773
        %v4776 = vld [vmem:[%s1433] sm:$0x1]
        %v4778 = vlaneseq
        %v4779 = vshrl.u32 %v4778, 7
        %v4780 = vsub.s32 0, %v4779
        %v4781 = vrot.slane %v4776, %v4780
        %v4783 = vmul.f32 %v4774, %v4781
        %v4784 = vmul.f32 %v4775, %v4781
        %v4785 = vld [vmem:[%s1436] sm:$0x1]
        %v4787 = vlaneseq
        %v4788 = vshrl.u32 %v4787, 7
        %v4789 = vsub.s32 0, %v4788
        %v4790 = vrot.slane %v4785, %v4789
        %v4792 = vadd.f32 %v4783, %v4790
        %v4793 = vadd.f32 %v4784, %v4790
        %v4794 = vpack.c.bf16 %v4793, %v4792
        %v4795 = vld [vmem:[%s1413] sm:$0xf]
        %v4796 = vld [vmem:[%s1413 + $0x4] sm:$0xf]
        %v4797 = vld [vmem:[%s1413 + $0x8] sm:$0xf]
        %v4798 = vld [vmem:[%s1413 + $0xc] sm:$0xf]
        %v4799 = vld [vmem:[%s1416] sm:$0x1]
        %v4801 = vlaneseq
        %v4802 = vshrl.u32 %v4801, 7
        %v4803 = vsub.s32 0, %v4802
        %v4804 = vrot.slane %v4799, %v4803
        %v4810 = vunpack.c.l.b16 %v4795
        %v4811 = vunpack.c.l.b16 %v4796
        %v4812 = vunpack.c.l.b16 %v4797
        %v4813 = vunpack.c.l.b16 %v4798
        %v4814 = vpack.c.b16 %v4811, %v4810
        %v4815 = vpack.c.b16 %v4813, %v4812
        %v4819 = vsel %vm1484, %v4794, 0
        %4821 = vmatprep.subr.bf16.mxu0 0
        %4822 = vmatpush1.bf16.msra.mxu0 0
        %4823 = vmatprep.subr.bf16.mxu0 0
        %4824 = vmatpush1.bf16.msra.mxu0 0
        %4825 = vmatprep.subr.bf16.mxu0 0
        %4826 = vmatpush1.bf16.msra.mxu0 0
        %4827 = vmatprep.subr.bf16.mxu0 0
        %4828 = vmatpush1.bf16.msra.mxu0 0
        %4829 = vmatprep.subr.bf16.mxu0 0
        %4830 = vmatpush1.bf16.msra.mxu0 0
        %4831 = vmatprep.subr.bf16.mxu0 0
        %4832 = vmatpush1.bf16.msra.mxu0 0
        %4833 = vmatprep.subr.bf16.mxu0 0
        %4834 = vmatpush1.bf16.msra.mxu0 %v4815
        %4835 = vmatprep.subr.bf16.mxu0 0
        %4836 = vmatpush1.bf16.msra.mxu0 %v4814
        %4837 = vmatprep.subr.bf16.mxu0 0
        %4838 = vmatpush2.bf16.msra.mxu0 0
        %4839 = vmatprep.subr.bf16.mxu0 0
        %4840 = vmatpush2.bf16.msra.mxu0 0
        %4841 = vmatprep.subr.bf16.mxu0 0
        %4842 = vmatpush2.bf16.msra.mxu0 0
        %4843 = vmatprep.subr.bf16.mxu0 0
        %4844 = vmatpush2.bf16.msra.mxu0 0
        %4845 = vmatprep.subr.bf16.mxu0 0
        %4846 = vmatpush2.bf16.msra.mxu0 0
        %4847 = vmatprep.subr.bf16.mxu0 0
        %4848 = vmatpush2.bf16.msra.mxu0 0
        %4849 = vmatprep.subr.bf16.mxu0 0
        %4850 = vmatpush2.bf16.msra.mxu0 0
        %4851 = vmatprep.subr.bf16.mxu0 0
        %4852 = vmatpush2.bf16.msra.mxu0 0
        %4853 = vmatprep.mubr.bf16.mxu0 0
        %4854 = vmatmul.mubr.bf16.gmra.mxu0 %v4819
        %v4855 = vpop.f32.mrf.mxu0
        %v4856 = vadd.f32 %v4804, %v4855
        %v4857 = vpop.f32.mrf.mxu0
        %v4858 = vpop.f32.mrf.mxu0
        %v4859 = vadd.f32 %v4804, %v4858
        %v4860 = vpop.f32.mrf.mxu0
        %4861 = vdwg.mxu0
        %v4862 = vmax.f32 %v4856, 0.0
        %v4863 = vmax.f32 %v4859, 0.0
        %v4864 = vpack.c.bf16 %v4863, %v4862
        %v4865 = vld [vmem:[%s1421] sm:$0xf]
        %v4866 = vld [vmem:[%s1421 + $0x4] sm:$0xf]
        %v4867 = vld [vmem:[%s1421 + $0x8] sm:$0xf]
        %v4868 = vld [vmem:[%s1421 + $0xc] sm:$0xf]
        %v4869 = vld [vmem:[%s1421 + $0x10] sm:$0xf]
        %v4870 = vld [vmem:[%s1421 + $0x14] sm:$0xf]
        %v4871 = vld [vmem:[%s1421 + $0x18] sm:$0xf]
        %v4872 = vld [vmem:[%s1421 + $0x1c] sm:$0xf]
        %v4873 = vld [vmem:[%s1424] sm:$0x1]
        %v4875 = vlaneseq
        %v4876 = vshrl.u32 %v4875, 7
        %v4877 = vsub.s32 0, %v4876
        %v4878 = vrot.slane %v4873, %v4877
        %v4888 = vunpack.c.l.b16 %v4865
        %v4889 = vunpack.c.l.b16 %v4866
        %v4890 = vunpack.c.l.b16 %v4867
        %v4891 = vunpack.c.l.b16 %v4868
        %v4892 = vunpack.c.l.b16 %v4869
        %v4893 = vunpack.c.l.b16 %v4870
        %v4894 = vunpack.c.l.b16 %v4871
        %v4895 = vunpack.c.l.b16 %v4872
        %v4896 = vpack.c.b16 %v4889, %v4888
        %v4897 = vpack.c.b16 %v4891, %v4890
        %v4898 = vpack.c.b16 %v4893, %v4892
        %v4899 = vpack.c.b16 %v4895, %v4894
        %vm4904 = vcmask 523264
        %v4906 = vsel %vm4904, %v4864, 0
        %4908 = vmatprep.subr.bf16.mxu0 0
        %4909 = vmatpush1.bf16.msra.mxu0 0
        %4910 = vmatprep.subr.bf16.mxu0 0
        %4911 = vmatpush1.bf16.msra.mxu0 0
        %4912 = vmatprep.subr.bf16.mxu0 0
        %4913 = vmatpush1.bf16.msra.mxu0 0
        %4914 = vmatprep.subr.bf16.mxu0 0
        %4915 = vmatpush1.bf16.msra.mxu0 0
        %4916 = vmatprep.subr.bf16.mxu0 0
        %4917 = vmatpush1.bf16.msra.mxu0 %v4899
        %4918 = vmatprep.subr.bf16.mxu0 0
        %4919 = vmatpush1.bf16.msra.mxu0 %v4898
        %4920 = vmatprep.subr.bf16.mxu0 0
        %4921 = vmatpush1.bf16.msra.mxu0 %v4897
        %4922 = vmatprep.subr.bf16.mxu0 0
        %4923 = vmatpush1.bf16.msra.mxu0 %v4896
        %4924 = vmatprep.subr.bf16.mxu0 0
        %4925 = vmatpush2.bf16.msra.mxu0 0
        %4926 = vmatprep.subr.bf16.mxu0 0
        %4927 = vmatpush2.bf16.msra.mxu0 0
        %4928 = vmatprep.subr.bf16.mxu0 0
        %4929 = vmatpush2.bf16.msra.mxu0 0
        %4930 = vmatprep.subr.bf16.mxu0 0
        %4931 = vmatpush2.bf16.msra.mxu0 0
        %4932 = vmatprep.subr.bf16.mxu0 0
        %4933 = vmatpush2.bf16.msra.mxu0 0
        %4934 = vmatprep.subr.bf16.mxu0 0
        %4935 = vmatpush2.bf16.msra.mxu0 0
        %4936 = vmatprep.subr.bf16.mxu0 0
        %4937 = vmatpush2.bf16.msra.mxu0 0
        %4938 = vmatprep.subr.bf16.mxu0 0
        %4939 = vmatpush2.bf16.msra.mxu0 0
        %4940 = vmatprep.mubr.bf16.mxu0 0
        %4941 = vmatmul.mubr.bf16.gmra.mxu0 %v4906
        %v4942 = vpop.f32.mrf.mxu0
        %v4943 = vadd.f32 %v4878, %v4942
        %v4944 = vpop.f32.mrf.mxu0
        %v4945 = vpop.f32.mrf.mxu0
        %v4946 = vadd.f32 %v4878, %v4945
        %v4947 = vpop.f32.mrf.mxu0
        %4948 = vdwg.mxu0
        %v4949 = vadd.f32 %v4792, %v4943
        %v4950 = vadd.f32 %v4793, %v4946
        %v4951 = vsel %vm1484, %v4949, 0.0
        %4952 = vadd.xlane.f32.xlu0 %v4951
        %v4953 = vpop.xlane.xlu0 %4952
        %v4954 = vsel %vm1484, %v4950, 0.0
        %4955 = vadd.xlane.f32.xlu0 %v4954
        %v4956 = vpop.xlane.xlu0 %4955
        %v4957 = vmul.f32 %v4953, %v3088
        %v4958 = vmul.f32 %v4956, %v3088
        %v4959 = vsub.f32 %v4949, %v4957
        %v4960 = vsub.f32 %v4950, %v4958
        %v4961 = vmul.f32 %v4959, %v4959
        %v4962 = vmul.f32 %v4960, %v4960
        %v4963 = vsel %vm1484, %v4961, 0.0
        %4964 = vadd.xlane.f32.xlu0 %v4963
        %v4965 = vpop.xlane.xlu0 %4964
        %v4966 = vsel %vm1484, %v4962, 0.0
        %4967 = vadd.xlane.f32.xlu0 %v4966
        %v4968 = vpop.xlane.xlu0 %4967
        %v4969 = vmul.f32 %v4965, %v3088
        %v4970 = vmul.f32 %v4968, %v3088
        %v4971 = vadd.f32 %v4969, 1e-06
        %v4972 = vadd.f32 %v4970, 1e-06
        %v4973 = vrsqrt.pop %v4971
        %v4974 = vrsqrt.pop %v4972
        %v4975 = vmul.f32 %v4959, %v4973
        %v4976 = vmul.f32 %v4960, %v4974
        %v4977 = vld [vmem:[%s1439] sm:$0x1]
        %v4979 = vlaneseq
        %v4980 = vshrl.u32 %v4979, 7
        %v4981 = vsub.s32 0, %v4980
        %v4982 = vrot.slane %v4977, %v4981
        %v4984 = vmul.f32 %v4975, %v4982
        %v4985 = vmul.f32 %v4976, %v4982
        %v4986 = vld [vmem:[%s1442] sm:$0x1]
        %v4988 = vlaneseq
        %v4989 = vshrl.u32 %v4988, 7
        %v4990 = vsub.s32 0, %v4989
        %v4991 = vrot.slane %v4986, %v4990
        %v4993 = vadd.f32 %v4984, %v4991
        %v4994 = vadd.f32 %v4985, %v4991
        %4995 = vst.msk [vmem:[%s1318] sm:$0xff] %vm1484, %v4993
        %4996 = vst.msk [vmem:[%s1318 + $0x8] sm:$0xff] %vm1484, %v4994
        %s4997 = sand.u32 %s875, 1
        %s4998 = scalar_lea.sflag [#allocation3], %s4997
        %s4999 = sand.u32 %s875, 1
        %s5000 = smul.addr %s4999, 16
        %s5001 = scalar_lea.vmem [#allocation2], %s5000
        // Predicated region
        $region145: #{tpu_custom_call.1} parent=139 // pred_check
          %p5002 = pneg %p885
        $region146: #{tpu_custom_call.1} parent=139 // pred_check_branch
          %5004 = sbr.rel (%p5002) target = $region148
        $region147: #{tpu_custom_call.1} parent=139 // pred_region
          %s5006 = ssub.s32 256, 256
          %5007 = vsyncadd %s4998, %s5006
          %s5008 = smul.addr %s79, 2
          %s5009 = smul.addr %s5008, 128
          %s5010 = scalar_lea.hbm %s61, %s5009
          %s5011 = sshll.u32 %s5001, 4
          %s5012 = int_to_ptr.vmem [resolvable:$true] %s5011
          %5017 = dma.vmem_to_hbm [thread:$0]  %s5012, 256, %s5010, %s4998, 128, 128, 8
        $region148: #{tpu_custom_call.1} parent=139 // pred_fallthru
          _
      $region140: #{tpu_custom_call.1} parent=5 // pred_fallthru
        _
      %p5018 = scmp.le.s32.totalorder 2, %s70
      // Predicated region
      $region149: #{tpu_custom_call.1} parent=5 // pred_check
        %p5019 = pneg %p5018
      $region150: #{tpu_custom_call.1} parent=5 // pred_check_branch
        %5021 = sbr.rel (%p5019) target = $region152
      $region151: #{tpu_custom_call.1} parent=5 // pred_region
        %s5022 = ssub.s32 %s70, 2
        // Predicated region
        $region153: #{tpu_custom_call.1} parent=151 // pred_check
          %p5023 = pneg %p891
        $region154: #{tpu_custom_call.1} parent=151 // pred_check_branch
          %5025 = sbr.rel (%p5023) target = $region156
        $region155: #{tpu_custom_call.1} parent=151 // pred_region
          %s5026 = sand.u32 %s876, 1
          %s5027 = scalar_lea.sflag [#allocation3], %s5026
          %s5028 = sand.u32 %s876, 1
          %s5029 = smul.addr %s5028, 16
          %s5030 = scalar_lea.vmem [#allocation2], %s5029
          %5031 = dma.done %s5027, 256
        $region156: #{tpu_custom_call.1} parent=151 // pred_fallthru
          _
      $region152: #{tpu_custom_call.1} parent=5 // pred_fallthru
        _
    $region6: #{tpu_custom_call.1} parent=1 // loop_footer
      %s74 = sadd.s32 1, %s70
    $region7: #{tpu_custom_call.1} parent=1 // loop_footer_branch
      %69 = sbr.rel target = $region3
    $region8: #{tpu_custom_call.1} parent=1 // loop_exit
      _
    %5032 = vsyncpa [#allocation3], 1
    %s5033 = scalar_lea.sflag [#allocation3], 1
    %5034 = vsyncpa %s5033, 1

</llo_original>
